<compile_context>
chip_gen: v7x
topology: tpu7x:2x2x1
jax: 0.10.0
libtpu: 0.0.40
codegen_flags: <defaults>
</compile_context>

<pallas_src>
import functools

import jax
import jax.numpy as jnp
from jax import lax
from jax.experimental import pallas as pl
from jax.experimental.pallas import tpu as pltpu


# ------------------------------ Pallas kernel -------------------------------

def _conv3x3_kernel(*refs, stride, shortcut, relu):
    """Fused 3x3 conv (+folded BN) + bias [+ shortcut] (+ ReLU), one shot.

    Ref layout (per grid step = one batch image x one Cout tile):
      x_ref  : (G, Hs, Ws, Cin_p)  bf16   G = stride*stride parity planes
      w_ref  : (9, Cin_p, tn)      bf16   BN scale already folded in
      b_ref  : (1, tn)             f32    bias (BN beta - mean*scale [+ sc bias])
      proj    : xs_ref (1, Ho, Wo, Csc_p) bf16, wsc_ref (Csc_p, tn) bf16
      identity: res_ref (1, Ho, Wo, tn)   bf16
      o_ref  : (1, Ho, Wo, tn)
    """
    if shortcut == "proj":
        x_ref, w_ref, b_ref, xs_ref, wsc_ref, o_ref = refs
    elif shortcut == "identity":
        x_ref, w_ref, b_ref, res_ref, o_ref = refs
    else:
        x_ref, w_ref, b_ref, o_ref = refs

    _, Ho, Wo, tn = o_ref.shape
    cin = x_ref.shape[-1]
    n = Ho * Wo

    # 9-tap in-kernel im2col: each tap is a contiguous shifted window of one
    # parity plane; accumulate in f32.
    acc = jnp.zeros((n, tn), jnp.float32)
    for kh in range(3):
        for kw in range(3):
            g = (kh % stride) * stride + (kw % stride)
            oh0, ow0 = kh // stride, kw // stride
            win = x_ref[g, oh0:oh0 + Ho, ow0:ow0 + Wo, :]       # (Ho, Wo, Cin_p)
            acc = acc + jnp.dot(win.reshape(n, cin), w_ref[kh * 3 + kw],
                                preferred_element_type=jnp.float32)

    out = acc + b_ref[...]                                      # bias broadcast
    if shortcut == "proj":
        xs = xs_ref[0].reshape(n, xs_ref.shape[-1])
        out = out + jnp.dot(xs, wsc_ref[...], preferred_element_type=jnp.float32)
    elif shortcut == "identity":
        out = out + res_ref[0].reshape(n, tn).astype(jnp.float32)
    if relu:
        out = jnp.maximum(out, 0.0)
    o_ref[...] = out.reshape(1, Ho, Wo, tn).astype(o_ref.dtype)


# ------------------------------- wrapper ------------------------------------

def _round_up(x, m):
    return (x + m - 1) // m * m


def conv3x3_block(xq, w9, bias, *, stride, out_hw, relu=True,
                  out_dtype=jnp.bfloat16, shortcut="none", res=None,
                  xs=None, wsc=None):
    """out[b] = act(conv3x3(x[b]) * bn_scale + bias [+ shortcut(x[b])]).

    xq: (B * stride^2, Hs, Ws, Cin_p) bf16  -- spatially padded activation
        (stride=1) or its 4-way parity decomposition (stride=2).
    """
    G = stride * stride
    BG, Hs, Ws, cin_p = xq.shape
    B = BG // G
    cout_p = w9.shape[-1]
    Ho, Wo = out_hw
    # tn=128 also suits v5e's 128-wide MXU; 256 only when it divides evenly.
    tn = 256 if cout_p % 256 == 0 else 128
    # Cout tiles outermost -> the (9, Cin_p, tn) weight strip stays resident
    # across the whole (inner) batch sweep.  Batch axis (extent >= 2) is
    # parallel so v7x's two TensorCores both get work.
    grid = (cout_p // tn, B)

    in_specs = [
        pl.BlockSpec((G, Hs, Ws, cin_p), lambda j, b: (b, 0, 0, 0)),
        pl.BlockSpec((9, cin_p, tn), lambda j, b: (0, 0, j)),
        pl.BlockSpec((1, tn), lambda j, b: (0, j)),
    ]
    args = [xq, w9, bias]
    blk_bytes = G * Hs * Ws * cin_p * 2 + 9 * cin_p * tn * 2 + tn * 4

    if shortcut == "proj":
        csc_p = xs.shape[-1]
        in_specs.append(pl.BlockSpec((1, Ho, Wo, csc_p), lambda j, b: (b, 0, 0, 0)))
        in_specs.append(pl.BlockSpec((csc_p, tn), lambda j, b: (0, j)))
        args += [xs, wsc]
        blk_bytes += Ho * Wo * csc_p * 2 + csc_p * tn * 2
    elif shortcut == "identity":
        in_specs.append(pl.BlockSpec((1, Ho, Wo, tn), lambda j, b: (b, 0, 0, j)))
        args.append(res)
        blk_bytes += Ho * Wo * tn * 2

    out_spec = pl.BlockSpec((1, Ho, Wo, tn), lambda j, b: (b, 0, 0, j))
    blk_bytes += Ho * Wo * tn * jnp.dtype(out_dtype).itemsize

    # Double-buffered blocks + headroom; clamp so it is safe on v7x (64 MiB).
    vmem_limit = int(min(max(2 * blk_bytes + (4 << 20), 16 << 20), 48 << 20))

    kernel = functools.partial(_conv3x3_kernel, stride=stride,
                               shortcut=shortcut, relu=relu)
    return pl.pallas_call(
        kernel,
        out_shape=jax.ShapeDtypeStruct((B, Ho, Wo, cout_p), out_dtype),
        grid_spec=pltpu.PrefetchScalarGridSpec(
            num_scalar_prefetch=0,
            grid=grid,
            in_specs=in_specs,
            out_specs=out_spec,
        ),
        compiler_params=pltpu.CompilerParams(
            dimension_semantics=("parallel", "parallel"),
            vmem_limit_bytes=vmem_limit,
        ),
    )(*args)


# ------------------------------ JAX glue ------------------------------------

def _bn_fold(gamma, beta, mean, var, eps=1e-5):
    scale = gamma / jnp.sqrt(var + eps)
    return scale, beta - mean * scale


def _parity_split(xp):
    """(B, Hp, Wp, C) -> (B*4, ceil(Hp/2), ceil(Wp/2), C): stride-2 parity grids.

    Total bytes equal the input (no im2col amplification); every 3x3/stride-2
    tap window becomes a contiguous, unit-stride slice of one parity grid.
    """
    B, Hp, Wp, C = xp.shape
    xp = jnp.pad(xp, ((0, 0), (0, Hp % 2), (0, Wp % 2), (0, 0)))
    Hp2, Wp2 = (Hp + 1) // 2, (Wp + 1) // 2
    xq = xp.reshape(B, Hp2, 2, Wp2, 2, C)
    xq = jnp.transpose(xq, (0, 2, 4, 1, 3, 5))          # (B, a, c, Hp2, Wp2, C)
    return xq.reshape(B * 4, Hp2, Wp2, C)


def prepare_params(params, in_planes, planes, stride):
    """One-time (outside jit) weight prep: BN fold, layout, 128-lane pad, bf16."""
    cin_p = _round_up(in_planes, 128)
    cout_p = _round_up(planes, 128)
    s1, b1 = _bn_fold(*params["bn1"])
    s2, b2 = _bn_fold(*params["bn2"])

    def w3x3(w_oihw, scale, ci, co):
        w = jnp.transpose(w_oihw, (2, 3, 1, 0)) * scale          # (3,3,Cin,Cout)
        w = w.reshape(9, ci, co).astype(jnp.bfloat16)
        return jnp.pad(w, ((0, 0), (0, cin_if(ci) - ci), (0, cout_p - co)))

    def cin_if(ci):
        return _round_up(ci, 128)

    def vec(b, co):
        return jnp.pad(b.astype(jnp.float32), (0, cout_p - co)).reshape(1, cout_p)

    proj = (stride != 1) or (in_planes != planes)
    prep = {
        "w1": w3x3(params["conv1_w"], s1, in_planes, planes),
        "b1": vec(b1, planes),
        "w2": w3x3(params["conv2_w"], s2, planes, planes),
    }
    if proj:
        ssc, bsc = _bn_fold(*params["bn_sc"])
        wsc = jnp.transpose(params["conv_sc_w"].reshape(planes, in_planes),
                            (1, 0)) * ssc                        # (Cin, Cout)
        prep["wsc"] = jnp.pad(wsc.astype(jnp.bfloat16),
                              ((0, cin_p - in_planes), (0, cout_p - planes)))
        prep["b2"] = vec(b2 + bsc, planes)   # shortcut-BN bias folded in
    else:
        prep["b2"] = vec(b2, planes)
    return prep


def basic_block_forward(x_nchw, prep, *, stride, planes):
    """Pallas implementation of BasicBlock.forward (inference-mode BN)."""
    cin_p = prep["w1"].shape[1]
    B, in_planes, H, W = x_nchw.shape
    Ho = (H - 1) // stride + 1
    Wo = (W - 1) // stride + 1

    # NCHW -> NHWC, bf16, channel-pad to a 128-lane multiple.
    x = jnp.transpose(x_nchw, (0, 2, 3, 1)).astype(jnp.bfloat16)
    x = jnp.pad(x, ((0, 0), (0, 0), (0, 0), (0, cin_p - in_planes)))
    xp = jnp.pad(x, ((0, 0), (1, 1), (1, 1), (0, 0)))             # conv pad = 1
    xq1 = xp if stride == 1 else _parity_split(xp)

    # conv1 + bn1 + relu (bf16 output: halves HBM traffic into conv2).
    out1 = conv3x3_block(xq1, prep["w1"], prep["b1"], stride=stride,
                         out_hw=(Ho, Wo), relu=True, out_dtype=jnp.bfloat16)
    out1p = jnp.pad(out1, ((0, 0), (1, 1), (1, 1), (0, 0)))

    # conv2 + bn2 + shortcut + residual add + relu, fully fused in one kernel.
    if "wsc" in prep:  # projection shortcut (1x1 conv stride s + BN)
        xs = x[:, ::stride, ::stride, :]
        out = conv3x3_block(out1p, prep["w2"], prep["b2"], stride=1,
                            out_hw=(Ho, Wo), relu=True, out_dtype=jnp.float32,
                            shortcut="proj", xs=xs, wsc=prep["wsc"])
    else:              # identity shortcut
        out = conv3x3_block(out1p, prep["w2"], prep["b2"], stride=1,
                            out_hw=(Ho, Wo), relu=True, out_dtype=jnp.float32,
                            shortcut="identity", res=x)

    out = out[..., :planes]
    return jnp.transpose(out, (0, 3, 1, 2))                      # back to NCHW


# --------------------------- pure-JAX reference -----------------------------

def basic_block_reference(x_nchw, params, stride):
    """lax.conv reference with the same bf16-operand / f32-accumulate numerics."""
    x = jnp.transpose(x_nchw, (0, 2, 3, 1)).astype(jnp.float32)
    s1, b1 = _bn_fold(*params["bn1"])
    s2, b2 = _bn_fold(*params["bn2"])
    in_planes, planes = x.shape[-1], params["conv1_w"].shape[0]

    def conv(x_nhwc, w_oihw, scale, st, pad):
        w_hwio = jnp.transpose(w_oihw, (2, 3, 1, 0)) * scale     # fold BN scale
        return lax.conv_general_dilated(
            x_nhwc.astype(jnp.bfloat16), w_hwio.astype(jnp.bfloat16),
            window_strides=(st, st), padding=[(pad, pad), (pad, pad)],
            dimension_numbers=("NHWC", "HWIO", "NHWC"),
            preferred_element_type=jnp.float32)

    out = jnp.maximum(conv(x, params["conv1_w"], s1, stride, 1) + b1, 0.0)
    out = conv(out, params["conv2_w"], s2, 1, 1) + b2
    if stride != 1 or in_planes != planes:
        ssc, bsc = _bn_fold(*params["bn_sc"])
        sc = conv(x, params["conv_sc_w"], ssc, stride, 0) + bsc
    else:
        sc = x
    out = jnp.maximum(out + sc, 0.0)
    return jnp.transpose(out, (0, 3, 1, 2))


# --------------------------------- main --------------------------------------

def _init_params(key, in_planes, planes):
    ks = jax.random.split(key, 12)

    def bn_params(k):
        kg, kb, km, kv = jax.random.split(k, 4)
        gamma = 1.0 + 0.1 * jax.random.normal(kg, (planes,), jnp.float32)
        beta = 0.1 * jax.random.normal(kb, (planes,), jnp.float32)
        mean = 0.1 * jax.random.normal(km, (planes,), jnp.float32)
        var = jnp.abs(jax.random.normal(kv, (planes,), jnp.float32)) + 0.5
        return (gamma, beta, mean, var)

    return {
        "conv1_w": 0.2 * jax.random.normal(ks[0], (planes, in_planes, 3, 3), jnp.float32),
        "conv2_w": 0.2 * jax.random.normal(ks[1], (planes, planes, 3, 3), jnp.float32),
        "conv_sc_w": 0.2 * jax.random.normal(ks[2], (planes, in_planes, 1, 1), jnp.float32),
        "bn1": bn_params(ks[3]),
        "bn2": bn_params(ks[4]),
        "bn_sc": bn_params(ks[5]),
    }


if __name__ == "__main__":
    key = jax.random.PRNGKey(0)
    kx, kp = jax.random.split(key)

    batch, in_planes, planes, spatial, stride = 2, 4, 8, 16, 2
    x = jax.random.normal(kx, (batch, in_planes, spatial, spatial), jnp.float32)
    params = _init_params(kp, in_planes, planes)

    # Weight-side preprocessing runs once, outside jit (cached across calls).
    prep = prepare_params(params, in_planes, planes, stride)

    fwd = jax.jit(functools.partial(basic_block_forward, stride=stride, planes=planes))
    out = jax.block_until_ready(fwd(x, prep))

    ref = jax.block_until_ready(basic_block_reference(x, params, stride))
    assert out.shape == (batch, planes, spatial // stride, spatial // stride)
    assert jnp.allclose(out, ref, atol=1e-2, rtol=1e-2), "mismatch vs reference"

    print("KERNEL_OK")
</pallas_src>

<mosaic_0001>
module attributes {stable_mosaic.version = 11 : i64} {
  func.func @_conv3x3_kernel(%arg0: i32, %arg1: i32, %arg2: memref<4x9x9x128xbf16, #tpu.memory_space<vmem>>, %arg3: memref<9x128x128xbf16, #tpu.memory_space<vmem>>, %arg4: memref<1x128xf32, #tpu.memory_space<vmem>>, %arg5: memref<1x8x8x128xbf16, #tpu.memory_space<vmem>>) attributes {dimension_semantics = [#tpu.dimension_semantics<parallel>, #tpu.dimension_semantics<parallel>], iteration_bounds = array<i64: 1, 2>, scalar_prefetch = 0 : i64, scratch_operands = 0 : i64, tpu.core_type = #tpu.core_type<tc>, window_params = [{transform_indices = @transform_0, window_bounds = array<i64: 4, 9, 9, 128>}, {transform_indices = @transform_1, window_bounds = array<i64: 9, 128, 128>}, {transform_indices = @transform_2, window_bounds = array<i64: 1, 128>}, {transform_indices = @transform_3, window_bounds = array<i64: 1, 8, 8, 128>}]} {
    %cst = arith.constant 0.000000e+00 : f32
    %0 = vector.broadcast %cst : f32 to vector<64x128xf32>
    %c0 = arith.constant 0 : index
    %c0_0 = arith.constant 0 : index
    %c0_1 = arith.constant 0 : index
    %c0_2 = arith.constant 0 : index
    %1 = vector.load %arg2[%c0, %c0_0, %c0_1, %c0_2] : memref<4x9x9x128xbf16, #tpu.memory_space<vmem>>, vector<1x8x8x128xbf16>
    %2 = vector.shape_cast %1 : vector<1x8x8x128xbf16> to vector<8x8x128xbf16>
    %3 = vector.shape_cast %2 : vector<8x8x128xbf16> to vector<64x128xbf16>
    %c0_3 = arith.constant 0 : index
    %c0_4 = arith.constant 0 : index
    %c0_5 = arith.constant 0 : index
    %4 = vector.load %arg3[%c0_3, %c0_4, %c0_5] : memref<9x128x128xbf16, #tpu.memory_space<vmem>>, vector<1x128x128xbf16>
    %5 = vector.shape_cast %4 : vector<1x128x128xbf16> to vector<128x128xbf16>
    %cst_6 = arith.constant dense<0.000000e+00> : vector<64x128xf32>
    %6 = tpu.matmul %3, %5, %cst_6 {dimension_numbers = #tpu.dot_dimension_numbers<[1], [0], [0], [1], [0, 0, 1, 1], [], []>} : vector<64x128xbf16>, vector<128x128xbf16>, vector<64x128xf32> -> vector<64x128xf32>
    %7 = arith.addf %0, %6 : vector<64x128xf32>
    %c1 = arith.constant 1 : index
    %c0_7 = arith.constant 0 : index
    %c0_8 = arith.constant 0 : index
    %c0_9 = arith.constant 0 : index
    %8 = vector.load %arg2[%c1, %c0_7, %c0_8, %c0_9] : memref<4x9x9x128xbf16, #tpu.memory_space<vmem>>, vector<1x8x8x128xbf16>
    %9 = vector.shape_cast %8 : vector<1x8x8x128xbf16> to vector<8x8x128xbf16>
    %10 = vector.shape_cast %9 : vector<8x8x128xbf16> to vector<64x128xbf16>
    %c1_10 = arith.constant 1 : index
    %c0_11 = arith.constant 0 : index
    %c0_12 = arith.constant 0 : index
    %11 = vector.load %arg3[%c1_10, %c0_11, %c0_12] : memref<9x128x128xbf16, #tpu.memory_space<vmem>>, vector<1x128x128xbf16>
    %12 = vector.shape_cast %11 : vector<1x128x128xbf16> to vector<128x128xbf16>
    %cst_13 = arith.constant dense<0.000000e+00> : vector<64x128xf32>
    %13 = tpu.matmul %10, %12, %cst_13 {dimension_numbers = #tpu.dot_dimension_numbers<[1], [0], [0], [1], [0, 0, 1, 1], [], []>} : vector<64x128xbf16>, vector<128x128xbf16>, vector<64x128xf32> -> vector<64x128xf32>
    %14 = arith.addf %7, %13 : vector<64x128xf32>
    %c0_14 = arith.constant 0 : index
    %c0_15 = arith.constant 0 : index
    %c1_16 = arith.constant 1 : index
    %c0_17 = arith.constant 0 : index
    %15 = vector.load %arg2[%c0_14, %c0_15, %c1_16, %c0_17] : memref<4x9x9x128xbf16, #tpu.memory_space<vmem>>, vector<1x8x8x128xbf16>
    %16 = vector.shape_cast %15 : vector<1x8x8x128xbf16> to vector<8x8x128xbf16>
    %17 = vector.shape_cast %16 : vector<8x8x128xbf16> to vector<64x128xbf16>
    %c2 = arith.constant 2 : index
    %c0_18 = arith.constant 0 : index
    %c0_19 = arith.constant 0 : index
    %18 = vector.load %arg3[%c2, %c0_18, %c0_19] : memref<9x128x128xbf16, #tpu.memory_space<vmem>>, vector<1x128x128xbf16>
    %19 = vector.shape_cast %18 : vector<1x128x128xbf16> to vector<128x128xbf16>
    %cst_20 = arith.constant dense<0.000000e+00> : vector<64x128xf32>
    %20 = tpu.matmul %17, %19, %cst_20 {dimension_numbers = #tpu.dot_dimension_numbers<[1], [0], [0], [1], [0, 0, 1, 1], [], []>} : vector<64x128xbf16>, vector<128x128xbf16>, vector<64x128xf32> -> vector<64x128xf32>
    %21 = arith.addf %14, %20 : vector<64x128xf32>
    %c2_21 = arith.constant 2 : index
    %c0_22 = arith.constant 0 : index
    %c0_23 = arith.constant 0 : index
    %c0_24 = arith.constant 0 : index
    %22 = vector.load %arg2[%c2_21, %c0_22, %c0_23, %c0_24] : memref<4x9x9x128xbf16, #tpu.memory_space<vmem>>, vector<1x8x8x128xbf16>
    %23 = vector.shape_cast %22 : vector<1x8x8x128xbf16> to vector<8x8x128xbf16>
    %24 = vector.shape_cast %23 : vector<8x8x128xbf16> to vector<64x128xbf16>
    %c3 = arith.constant 3 : index
    %c0_25 = arith.constant 0 : index
    %c0_26 = arith.constant 0 : index
    %25 = vector.load %arg3[%c3, %c0_25, %c0_26] : memref<9x128x128xbf16, #tpu.memory_space<vmem>>, vector<1x128x128xbf16>
    %26 = vector.shape_cast %25 : vector<1x128x128xbf16> to vector<128x128xbf16>
    %cst_27 = arith.constant dense<0.000000e+00> : vector<64x128xf32>
    %27 = tpu.matmul %24, %26, %cst_27 {dimension_numbers = #tpu.dot_dimension_numbers<[1], [0], [0], [1], [0, 0, 1, 1], [], []>} : vector<64x128xbf16>, vector<128x128xbf16>, vector<64x128xf32> -> vector<64x128xf32>
    %28 = arith.addf %21, %27 : vector<64x128xf32>
    %c3_28 = arith.constant 3 : index
    %c0_29 = arith.constant 0 : index
    %c0_30 = arith.constant 0 : index
    %c0_31 = arith.constant 0 : index
    %29 = vector.load %arg2[%c3_28, %c0_29, %c0_30, %c0_31] : memref<4x9x9x128xbf16, #tpu.memory_space<vmem>>, vector<1x8x8x128xbf16>
    %30 = vector.shape_cast %29 : vector<1x8x8x128xbf16> to vector<8x8x128xbf16>
    %31 = vector.shape_cast %30 : vector<8x8x128xbf16> to vector<64x128xbf16>
    %c4 = arith.constant 4 : index
    %c0_32 = arith.constant 0 : index
    %c0_33 = arith.constant 0 : index
    %32 = vector.load %arg3[%c4, %c0_32, %c0_33] : memref<9x128x128xbf16, #tpu.memory_space<vmem>>, vector<1x128x128xbf16>
    %33 = vector.shape_cast %32 : vector<1x128x128xbf16> to vector<128x128xbf16>
    %cst_34 = arith.constant dense<0.000000e+00> : vector<64x128xf32>
    %34 = tpu.matmul %31, %33, %cst_34 {dimension_numbers = #tpu.dot_dimension_numbers<[1], [0], [0], [1], [0, 0, 1, 1], [], []>} : vector<64x128xbf16>, vector<128x128xbf16>, vector<64x128xf32> -> vector<64x128xf32>
    %35 = arith.addf %28, %34 : vector<64x128xf32>
    %c2_35 = arith.constant 2 : index
    %c0_36 = arith.constant 0 : index
    %c1_37 = arith.constant 1 : index
    %c0_38 = arith.constant 0 : index
    %36 = vector.load %arg2[%c2_35, %c0_36, %c1_37, %c0_38] : memref<4x9x9x128xbf16, #tpu.memory_space<vmem>>, vector<1x8x8x128xbf16>
    %37 = vector.shape_cast %36 : vector<1x8x8x128xbf16> to vector<8x8x128xbf16>
    %38 = vector.shape_cast %37 : vector<8x8x128xbf16> to vector<64x128xbf16>
    %c5 = arith.constant 5 : index
    %c0_39 = arith.constant 0 : index
    %c0_40 = arith.constant 0 : index
    %39 = vector.load %arg3[%c5, %c0_39, %c0_40] : memref<9x128x128xbf16, #tpu.memory_space<vmem>>, vector<1x128x128xbf16>
    %40 = vector.shape_cast %39 : vector<1x128x128xbf16> to vector<128x128xbf16>
    %cst_41 = arith.constant dense<0.000000e+00> : vector<64x128xf32>
    %41 = tpu.matmul %38, %40, %cst_41 {dimension_numbers = #tpu.dot_dimension_numbers<[1], [0], [0], [1], [0, 0, 1, 1], [], []>} : vector<64x128xbf16>, vector<128x128xbf16>, vector<64x128xf32> -> vector<64x128xf32>
    %42 = arith.addf %35, %41 : vector<64x128xf32>
    %c0_42 = arith.constant 0 : index
    %c1_43 = arith.constant 1 : index
    %c0_44 = arith.constant 0 : index
    %c0_45 = arith.constant 0 : index
    %43 = vector.load %arg2[%c0_42, %c1_43, %c0_44, %c0_45] : memref<4x9x9x128xbf16, #tpu.memory_space<vmem>>, vector<1x8x8x128xbf16>
    %44 = vector.shape_cast %43 : vector<1x8x8x128xbf16> to vector<8x8x128xbf16>
    %45 = vector.shape_cast %44 : vector<8x8x128xbf16> to vector<64x128xbf16>
    %c6 = arith.constant 6 : index
    %c0_46 = arith.constant 0 : index
    %c0_47 = arith.constant 0 : index
    %46 = vector.load %arg3[%c6, %c0_46, %c0_47] : memref<9x128x128xbf16, #tpu.memory_space<vmem>>, vector<1x128x128xbf16>
    %47 = vector.shape_cast %46 : vector<1x128x128xbf16> to vector<128x128xbf16>
    %cst_48 = arith.constant dense<0.000000e+00> : vector<64x128xf32>
    %48 = tpu.matmul %45, %47, %cst_48 {dimension_numbers = #tpu.dot_dimension_numbers<[1], [0], [0], [1], [0, 0, 1, 1], [], []>} : vector<64x128xbf16>, vector<128x128xbf16>, vector<64x128xf32> -> vector<64x128xf32>
    %49 = arith.addf %42, %48 : vector<64x128xf32>
    %c1_49 = arith.constant 1 : index
    %c1_50 = arith.constant 1 : index
    %c0_51 = arith.constant 0 : index
    %c0_52 = arith.constant 0 : index
    %50 = vector.load %arg2[%c1_49, %c1_50, %c0_51, %c0_52] : memref<4x9x9x128xbf16, #tpu.memory_space<vmem>>, vector<1x8x8x128xbf16>
    %51 = vector.shape_cast %50 : vector<1x8x8x128xbf16> to vector<8x8x128xbf16>
    %52 = vector.shape_cast %51 : vector<8x8x128xbf16> to vector<64x128xbf16>
    %c7 = arith.constant 7 : index
    %c0_53 = arith.constant 0 : index
    %c0_54 = arith.constant 0 : index
    %53 = vector.load %arg3[%c7, %c0_53, %c0_54] : memref<9x128x128xbf16, #tpu.memory_space<vmem>>, vector<1x128x128xbf16>
    %54 = vector.shape_cast %53 : vector<1x128x128xbf16> to vector<128x128xbf16>
    %cst_55 = arith.constant dense<0.000000e+00> : vector<64x128xf32>
    %55 = tpu.matmul %52, %54, %cst_55 {dimension_numbers = #tpu.dot_dimension_numbers<[1], [0], [0], [1], [0, 0, 1, 1], [], []>} : vector<64x128xbf16>, vector<128x128xbf16>, vector<64x128xf32> -> vector<64x128xf32>
    %56 = arith.addf %49, %55 : vector<64x128xf32>
    %c0_56 = arith.constant 0 : index
    %c1_57 = arith.constant 1 : index
    %c1_58 = arith.constant 1 : index
    %c0_59 = arith.constant 0 : index
    %57 = vector.load %arg2[%c0_56, %c1_57, %c1_58, %c0_59] : memref<4x9x9x128xbf16, #tpu.memory_space<vmem>>, vector<1x8x8x128xbf16>
    %58 = vector.shape_cast %57 : vector<1x8x8x128xbf16> to vector<8x8x128xbf16>
    %59 = vector.shape_cast %58 : vector<8x8x128xbf16> to vector<64x128xbf16>
    %c8 = arith.constant 8 : index
    %c0_60 = arith.constant 0 : index
    %c0_61 = arith.constant 0 : index
    %60 = vector.load %arg3[%c8, %c0_60, %c0_61] : memref<9x128x128xbf16, #tpu.memory_space<vmem>>, vector<1x128x128xbf16>
    %61 = vector.shape_cast %60 : vector<1x128x128xbf16> to vector<128x128xbf16>
    %cst_62 = arith.constant dense<0.000000e+00> : vector<64x128xf32>
    %62 = tpu.matmul %59, %61, %cst_62 {dimension_numbers = #tpu.dot_dimension_numbers<[1], [0], [0], [1], [0, 0, 1, 1], [], []>} : vector<64x128xbf16>, vector<128x128xbf16>, vector<64x128xf32> -> vector<64x128xf32>
    %63 = arith.addf %56, %62 : vector<64x128xf32>
    %c0_63 = arith.constant 0 : index
    %c0_64 = arith.constant 0 : index
    %64 = vector.load %arg4[%c0_63, %c0_64] : memref<1x128xf32, #tpu.memory_space<vmem>>, vector<1x128xf32>
    %65 = vector.broadcast %64 : vector<1x128xf32> to vector<64x128xf32>
    %66 = arith.addf %63, %65 : vector<64x128xf32>
    %cst_65 = arith.constant 0.000000e+00 : f32
    %67 = vector.broadcast %cst_65 : f32 to vector<64x128xf32>
    %68 = arith.maximumf %66, %67 : vector<64x128xf32>
    %69 = vector.shape_cast %68 : vector<64x128xf32> to vector<1x8x8x128xf32>
    %70 = arith.truncf %69 : vector<1x8x8x128xf32> to vector<1x8x8x128xbf16>
    %c0_66 = arith.constant 0 : index
    %c0_67 = arith.constant 0 : index
    %c0_68 = arith.constant 0 : index
    %c0_69 = arith.constant 0 : index
    %71 = vector.load %arg5[%c0_66, %c0_67, %c0_68, %c0_69] : memref<1x8x8x128xbf16, #tpu.memory_space<vmem>>, vector<1x8x8x128xbf16>
    tpu.vector_store %arg5[%c0_66, %c0_67, %c0_68, %c0_69], %70 {strides = array<i32>} : memref<1x8x8x128xbf16, #tpu.memory_space<vmem>>, vector<1x8x8x128xbf16>,
    return
  }
  func.func @transform_0(%arg0: i32, %arg1: i32) -> (i32, i32, i32, i32) {
    %c0_i32 = arith.constant 0 : i32
    %c0_i32_0 = arith.constant 0 : i32
    %c0_i32_1 = arith.constant 0 : i32
    %c0_i32_2 = arith.constant 0 : i32
    return %arg1, %c0_i32, %c0_i32_0, %c0_i32_1 : i32, i32, i32, i32
  }
  func.func @transform_1(%arg0: i32, %arg1: i32) -> (i32, i32, i32) {
    %c0_i32 = arith.constant 0 : i32
    %c0_i32_0 = arith.constant 0 : i32
    %c0_i32_1 = arith.constant 0 : i32
    return %c0_i32, %c0_i32_0, %arg0 : i32, i32, i32
  }
  func.func @transform_2(%arg0: i32, %arg1: i32) -> (i32, i32) {
    %c0_i32 = arith.constant 0 : i32
    %c0_i32_0 = arith.constant 0 : i32
    return %c0_i32, %arg0 : i32, i32
  }
  func.func @transform_3(%arg0: i32, %arg1: i32) -> (i32, i32, i32, i32) {
    %c0_i32 = arith.constant 0 : i32
    %c0_i32_0 = arith.constant 0 : i32
    %c0_i32_1 = arith.constant 0 : i32
    return %arg1, %c0_i32, %c0_i32_0, %arg0 : i32, i32, i32, i32
  }
}

module attributes {stable_mosaic.version = 11 : i64} {
  func.func @_conv3x3_kernel(%arg0: i32, %arg1: i32, %arg2: memref<1x10x10x128xbf16, #tpu.memory_space<vmem>>, %arg3: memref<9x128x128xbf16, #tpu.memory_space<vmem>>, %arg4: memref<1x128xf32, #tpu.memory_space<vmem>>, %arg5: memref<1x8x8x128xbf16, #tpu.memory_space<vmem>>, %arg6: memref<128x128xbf16, #tpu.memory_space<vmem>>, %arg7: memref<1x8x8x128xf32, #tpu.memory_space<vmem>>) attributes {dimension_semantics = [#tpu.dimension_semantics<parallel>, #tpu.dimension_semantics<parallel>], iteration_bounds = array<i64: 1, 2>, scalar_prefetch = 0 : i64, scratch_operands = 0 : i64, tpu.core_type = #tpu.core_type<tc>, window_params = [{transform_indices = @transform_0, window_bounds = array<i64: 1, 10, 10, 128>}, {transform_indices = @transform_1, window_bounds = array<i64: 9, 128, 128>}, {transform_indices = @transform_2, window_bounds = array<i64: 1, 128>}, {transform_indices = @transform_3, window_bounds = array<i64: 1, 8, 8, 128>}, {transform_indices = @transform_4, window_bounds = array<i64: 128, 128>}, {transform_indices = @transform_5, window_bounds = array<i64: 1, 8, 8, 128>}]} {
    %cst = arith.constant 0.000000e+00 : f32
    %0 = vector.broadcast %cst : f32 to vector<64x128xf32>
    %c0 = arith.constant 0 : index
    %c0_0 = arith.constant 0 : index
    %c0_1 = arith.constant 0 : index
    %c0_2 = arith.constant 0 : index
    %1 = vector.load %arg2[%c0, %c0_0, %c0_1, %c0_2] : memref<1x10x10x128xbf16, #tpu.memory_space<vmem>>, vector<1x8x8x128xbf16>
    %2 = vector.shape_cast %1 : vector<1x8x8x128xbf16> to vector<8x8x128xbf16>
    %3 = vector.shape_cast %2 : vector<8x8x128xbf16> to vector<64x128xbf16>
    %c0_3 = arith.constant 0 : index
    %c0_4 = arith.constant 0 : index
    %c0_5 = arith.constant 0 : index
    %4 = vector.load %arg3[%c0_3, %c0_4, %c0_5] : memref<9x128x128xbf16, #tpu.memory_space<vmem>>, vector<1x128x128xbf16>
    %5 = vector.shape_cast %4 : vector<1x128x128xbf16> to vector<128x128xbf16>
    %cst_6 = arith.constant dense<0.000000e+00> : vector<64x128xf32>
    %6 = tpu.matmul %3, %5, %cst_6 {dimension_numbers = #tpu.dot_dimension_numbers<[1], [0], [0], [1], [0, 0, 1, 1], [], []>} : vector<64x128xbf16>, vector<128x128xbf16>, vector<64x128xf32> -> vector<64x128xf32>
    %7 = arith.addf %0, %6 : vector<64x128xf32>
    %c0_7 = arith.constant 0 : index
    %c0_8 = arith.constant 0 : index
    %c1 = arith.constant 1 : index
    %c0_9 = arith.constant 0 : index
    %8 = vector.load %arg2[%c0_7, %c0_8, %c1, %c0_9] : memref<1x10x10x128xbf16, #tpu.memory_space<vmem>>, vector<1x8x8x128xbf16>
    %9 = vector.shape_cast %8 : vector<1x8x8x128xbf16> to vector<8x8x128xbf16>
    %10 = vector.shape_cast %9 : vector<8x8x128xbf16> to vector<64x128xbf16>
    %c1_10 = arith.constant 1 : index
    %c0_11 = arith.constant 0 : index
    %c0_12 = arith.constant 0 : index
    %11 = vector.load %arg3[%c1_10, %c0_11, %c0_12] : memref<9x128x128xbf16, #tpu.memory_space<vmem>>, vector<1x128x128xbf16>
    %12 = vector.shape_cast %11 : vector<1x128x128xbf16> to vector<128x128xbf16>
    %cst_13 = arith.constant dense<0.000000e+00> : vector<64x128xf32>
    %13 = tpu.matmul %10, %12, %cst_13 {dimension_numbers = #tpu.dot_dimension_numbers<[1], [0], [0], [1], [0, 0, 1, 1], [], []>} : vector<64x128xbf16>, vector<128x128xbf16>, vector<64x128xf32> -> vector<64x128xf32>
    %14 = arith.addf %7, %13 : vector<64x128xf32>
    %c0_14 = arith.constant 0 : index
    %c0_15 = arith.constant 0 : index
    %c2 = arith.constant 2 : index
    %c0_16 = arith.constant 0 : index
    %15 = vector.load %arg2[%c0_14, %c0_15, %c2, %c0_16] : memref<1x10x10x128xbf16, #tpu.memory_space<vmem>>, vector<1x8x8x128xbf16>
    %16 = vector.shape_cast %15 : vector<1x8x8x128xbf16> to vector<8x8x128xbf16>
    %17 = vector.shape_cast %16 : vector<8x8x128xbf16> to vector<64x128xbf16>
    %c2_17 = arith.constant 2 : index
    %c0_18 = arith.constant 0 : index
    %c0_19 = arith.constant 0 : index
    %18 = vector.load %arg3[%c2_17, %c0_18, %c0_19] : memref<9x128x128xbf16, #tpu.memory_space<vmem>>, vector<1x128x128xbf16>
    %19 = vector.shape_cast %18 : vector<1x128x128xbf16> to vector<128x128xbf16>
    %cst_20 = arith.constant dense<0.000000e+00> : vector<64x128xf32>
    %20 = tpu.matmul %17, %19, %cst_20 {dimension_numbers = #tpu.dot_dimension_numbers<[1], [0], [0], [1], [0, 0, 1, 1], [], []>} : vector<64x128xbf16>, vector<128x128xbf16>, vector<64x128xf32> -> vector<64x128xf32>
    %21 = arith.addf %14, %20 : vector<64x128xf32>
    %c0_21 = arith.constant 0 : index
    %c1_22 = arith.constant 1 : index
    %c0_23 = arith.constant 0 : index
    %c0_24 = arith.constant 0 : index
    %22 = vector.load %arg2[%c0_21, %c1_22, %c0_23, %c0_24] : memref<1x10x10x128xbf16, #tpu.memory_space<vmem>>, vector<1x8x8x128xbf16>
    %23 = vector.shape_cast %22 : vector<1x8x8x128xbf16> to vector<8x8x128xbf16>
    %24 = vector.shape_cast %23 : vector<8x8x128xbf16> to vector<64x128xbf16>
    %c3 = arith.constant 3 : index
    %c0_25 = arith.constant 0 : index
    %c0_26 = arith.constant 0 : index
    %25 = vector.load %arg3[%c3, %c0_25, %c0_26] : memref<9x128x128xbf16, #tpu.memory_space<vmem>>, vector<1x128x128xbf16>
    %26 = vector.shape_cast %25 : vector<1x128x128xbf16> to vector<128x128xbf16>
    %cst_27 = arith.constant dense<0.000000e+00> : vector<64x128xf32>
    %27 = tpu.matmul %24, %26, %cst_27 {dimension_numbers = #tpu.dot_dimension_numbers<[1], [0], [0], [1], [0, 0, 1, 1], [], []>} : vector<64x128xbf16>, vector<128x128xbf16>, vector<64x128xf32> -> vector<64x128xf32>
    %28 = arith.addf %21, %27 : vector<64x128xf32>
    %c0_28 = arith.constant 0 : index
    %c1_29 = arith.constant 1 : index
    %c1_30 = arith.constant 1 : index
    %c0_31 = arith.constant 0 : index
    %29 = vector.load %arg2[%c0_28, %c1_29, %c1_30, %c0_31] : memref<1x10x10x128xbf16, #tpu.memory_space<vmem>>, vector<1x8x8x128xbf16>
    %30 = vector.shape_cast %29 : vector<1x8x8x128xbf16> to vector<8x8x128xbf16>
    %31 = vector.shape_cast %30 : vector<8x8x128xbf16> to vector<64x128xbf16>
    %c4 = arith.constant 4 : index
    %c0_32 = arith.constant 0 : index
    %c0_33 = arith.constant 0 : index
    %32 = vector.load %arg3[%c4, %c0_32, %c0_33] : memref<9x128x128xbf16, #tpu.memory_space<vmem>>, vector<1x128x128xbf16>
    %33 = vector.shape_cast %32 : vector<1x128x128xbf16> to vector<128x128xbf16>
    %cst_34 = arith.constant dense<0.000000e+00> : vector<64x128xf32>
    %34 = tpu.matmul %31, %33, %cst_34 {dimension_numbers = #tpu.dot_dimension_numbers<[1], [0], [0], [1], [0, 0, 1, 1], [], []>} : vector<64x128xbf16>, vector<128x128xbf16>, vector<64x128xf32> -> vector<64x128xf32>
    %35 = arith.addf %28, %34 : vector<64x128xf32>
    %c0_35 = arith.constant 0 : index
    %c1_36 = arith.constant 1 : index
    %c2_37 = arith.constant 2 : index
    %c0_38 = arith.constant 0 : index
    %36 = vector.load %arg2[%c0_35, %c1_36, %c2_37, %c0_38] : memref<1x10x10x128xbf16, #tpu.memory_space<vmem>>, vector<1x8x8x128xbf16>
    %37 = vector.shape_cast %36 : vector<1x8x8x128xbf16> to vector<8x8x128xbf16>
    %38 = vector.shape_cast %37 : vector<8x8x128xbf16> to vector<64x128xbf16>
    %c5 = arith.constant 5 : index
    %c0_39 = arith.constant 0 : index
    %c0_40 = arith.constant 0 : index
    %39 = vector.load %arg3[%c5, %c0_39, %c0_40] : memref<9x128x128xbf16, #tpu.memory_space<vmem>>, vector<1x128x128xbf16>
    %40 = vector.shape_cast %39 : vector<1x128x128xbf16> to vector<128x128xbf16>
    %cst_41 = arith.constant dense<0.000000e+00> : vector<64x128xf32>
    %41 = tpu.matmul %38, %40, %cst_41 {dimension_numbers = #tpu.dot_dimension_numbers<[1], [0], [0], [1], [0, 0, 1, 1], [], []>} : vector<64x128xbf16>, vector<128x128xbf16>, vector<64x128xf32> -> vector<64x128xf32>
    %42 = arith.addf %35, %41 : vector<64x128xf32>
    %c0_42 = arith.constant 0 : index
    %c2_43 = arith.constant 2 : index
    %c0_44 = arith.constant 0 : index
    %c0_45 = arith.constant 0 : index
    %43 = vector.load %arg2[%c0_42, %c2_43, %c0_44, %c0_45] : memref<1x10x10x128xbf16, #tpu.memory_space<vmem>>, vector<1x8x8x128xbf16>
    %44 = vector.shape_cast %43 : vector<1x8x8x128xbf16> to vector<8x8x128xbf16>
    %45 = vector.shape_cast %44 : vector<8x8x128xbf16> to vector<64x128xbf16>
    %c6 = arith.constant 6 : index
    %c0_46 = arith.constant 0 : index
    %c0_47 = arith.constant 0 : index
    %46 = vector.load %arg3[%c6, %c0_46, %c0_47] : memref<9x128x128xbf16, #tpu.memory_space<vmem>>, vector<1x128x128xbf16>
    %47 = vector.shape_cast %46 : vector<1x128x128xbf16> to vector<128x128xbf16>
    %cst_48 = arith.constant dense<0.000000e+00> : vector<64x128xf32>
    %48 = tpu.matmul %45, %47, %cst_48 {dimension_numbers = #tpu.dot_dimension_numbers<[1], [0], [0], [1], [0, 0, 1, 1], [], []>} : vector<64x128xbf16>, vector<128x128xbf16>, vector<64x128xf32> -> vector<64x128xf32>
    %49 = arith.addf %42, %48 : vector<64x128xf32>
    %c0_49 = arith.constant 0 : index
    %c2_50 = arith.constant 2 : index
    %c1_51 = arith.constant 1 : index
    %c0_52 = arith.constant 0 : index
    %50 = vector.load %arg2[%c0_49, %c2_50, %c1_51, %c0_52] : memref<1x10x10x128xbf16, #tpu.memory_space<vmem>>, vector<1x8x8x128xbf16>
    %51 = vector.shape_cast %50 : vector<1x8x8x128xbf16> to vector<8x8x128xbf16>
    %52 = vector.shape_cast %51 : vector<8x8x128xbf16> to vector<64x128xbf16>
    %c7 = arith.constant 7 : index
    %c0_53 = arith.constant 0 : index
    %c0_54 = arith.constant 0 : index
    %53 = vector.load %arg3[%c7, %c0_53, %c0_54] : memref<9x128x128xbf16, #tpu.memory_space<vmem>>, vector<1x128x128xbf16>
    %54 = vector.shape_cast %53 : vector<1x128x128xbf16> to vector<128x128xbf16>
    %cst_55 = arith.constant dense<0.000000e+00> : vector<64x128xf32>
    %55 = tpu.matmul %52, %54, %cst_55 {dimension_numbers = #tpu.dot_dimension_numbers<[1], [0], [0], [1], [0, 0, 1, 1], [], []>} : vector<64x128xbf16>, vector<128x128xbf16>, vector<64x128xf32> -> vector<64x128xf32>
    %56 = arith.addf %49, %55 : vector<64x128xf32>
    %c0_56 = arith.constant 0 : index
    %c2_57 = arith.constant 2 : index
    %c2_58 = arith.constant 2 : index
    %c0_59 = arith.constant 0 : index
    %57 = vector.load %arg2[%c0_56, %c2_57, %c2_58, %c0_59] : memref<1x10x10x128xbf16, #tpu.memory_space<vmem>>, vector<1x8x8x128xbf16>
    %58 = vector.shape_cast %57 : vector<1x8x8x128xbf16> to vector<8x8x128xbf16>
    %59 = vector.shape_cast %58 : vector<8x8x128xbf16> to vector<64x128xbf16>
    %c8 = arith.constant 8 : index
    %c0_60 = arith.constant 0 : index
    %c0_61 = arith.constant 0 : index
    %60 = vector.load %arg3[%c8, %c0_60, %c0_61] : memref<9x128x128xbf16, #tpu.memory_space<vmem>>, vector<1x128x128xbf16>
    %61 = vector.shape_cast %60 : vector<1x128x128xbf16> to vector<128x128xbf16>
    %cst_62 = arith.constant dense<0.000000e+00> : vector<64x128xf32>
    %62 = tpu.matmul %59, %61, %cst_62 {dimension_numbers = #tpu.dot_dimension_numbers<[1], [0], [0], [1], [0, 0, 1, 1], [], []>} : vector<64x128xbf16>, vector<128x128xbf16>, vector<64x128xf32> -> vector<64x128xf32>
    %63 = arith.addf %56, %62 : vector<64x128xf32>
    %c0_63 = arith.constant 0 : index
    %c0_64 = arith.constant 0 : index
    %64 = vector.load %arg4[%c0_63, %c0_64] : memref<1x128xf32, #tpu.memory_space<vmem>>, vector<1x128xf32>
    %65 = vector.broadcast %64 : vector<1x128xf32> to vector<64x128xf32>
    %66 = arith.addf %63, %65 : vector<64x128xf32>
    %c0_65 = arith.constant 0 : index
    %c0_66 = arith.constant 0 : index
    %c0_67 = arith.constant 0 : index
    %c0_68 = arith.constant 0 : index
    %67 = vector.load %arg5[%c0_65, %c0_66, %c0_67, %c0_68] : memref<1x8x8x128xbf16, #tpu.memory_space<vmem>>, vector<1x8x8x128xbf16>
    %68 = vector.shape_cast %67 : vector<1x8x8x128xbf16> to vector<8x8x128xbf16>
    %69 = vector.shape_cast %68 : vector<8x8x128xbf16> to vector<64x128xbf16>
    %c0_69 = arith.constant 0 : index
    %c0_70 = arith.constant 0 : index
    %70 = vector.load %arg6[%c0_69, %c0_70] : memref<128x128xbf16, #tpu.memory_space<vmem>>, vector<128x128xbf16>
    %cst_71 = arith.constant dense<0.000000e+00> : vector<64x128xf32>
    %71 = tpu.matmul %69, %70, %cst_71 {dimension_numbers = #tpu.dot_dimension_numbers<[1], [0], [0], [1], [0, 0, 1, 1], [], []>} : vector<64x128xbf16>, vector<128x128xbf16>, vector<64x128xf32> -> vector<64x128xf32>
    %72 = arith.addf %66, %71 : vector<64x128xf32>
    %cst_72 = arith.constant 0.000000e+00 : f32
    %73 = vector.broadcast %cst_72 : f32 to vector<64x128xf32>
    %74 = arith.maximumf %72, %73 : vector<64x128xf32>
    %75 = vector.shape_cast %74 : vector<64x128xf32> to vector<1x8x8x128xf32>
    %c0_73 = arith.constant 0 : index
    %c0_74 = arith.constant 0 : index
    %c0_75 = arith.constant 0 : index
    %c0_76 = arith.constant 0 : index
    %76 = vector.load %arg7[%c0_73, %c0_74, %c0_75, %c0_76] : memref<1x8x8x128xf32, #tpu.memory_space<vmem>>, vector<1x8x8x128xf32>
    tpu.vector_store %arg7[%c0_73, %c0_74, %c0_75, %c0_76], %75 {strides = array<i32>} : memref<1x8x8x128xf32, #tpu.memory_space<vmem>>, vector<1x8x8x128xf32>,
    return
  }
  func.func @transform_0(%arg0: i32, %arg1: i32) -> (i32, i32, i32, i32) {
    %c0_i32 = arith.constant 0 : i32
    %c0_i32_0 = arith.constant 0 : i32
    %c0_i32_1 = arith.constant 0 : i32
    %c0_i32_2 = arith.constant 0 : i32
    return %arg1, %c0_i32, %c0_i32_0, %c0_i32_1 : i32, i32, i32, i32
  }
  func.func @transform_1(%arg0: i32, %arg1: i32) -> (i32, i32, i32) {
    %c0_i32 = arith.constant 0 : i32
    %c0_i32_0 = arith.constant 0 : i32
    %c0_i32_1 = arith.constant 0 : i32
    return %c0_i32, %c0_i32_0, %arg0 : i32, i32, i32
  }
  func.func @transform_2(%arg0: i32, %arg1: i32) -> (i32, i32) {
    %c0_i32 = arith.constant 0 : i32
    %c0_i32_0 = arith.constant 0 : i32
    return %c0_i32, %arg0 : i32, i32
  }
  func.func @transform_3(%arg0: i32, %arg1: i32) -> (i32, i32, i32, i32) {
    %c0_i32 = arith.constant 0 : i32
    %c0_i32_0 = arith.constant 0 : i32
    %c0_i32_1 = arith.constant 0 : i32
    %c0_i32_2 = arith.constant 0 : i32
    return %arg1, %c0_i32, %c0_i32_0, %c0_i32_1 : i32, i32, i32, i32
  }
  func.func @transform_4(%arg0: i32, %arg1: i32) -> (i32, i32) {
    %c0_i32 = arith.constant 0 : i32
    %c0_i32_0 = arith.constant 0 : i32
    return %c0_i32, %arg0 : i32, i32
  }
  func.func @transform_5(%arg0: i32, %arg1: i32) -> (i32, i32, i32, i32) {
    %c0_i32 = arith.constant 0 : i32
    %c0_i32_0 = arith.constant 0 : i32
    %c0_i32_1 = arith.constant 0 : i32
    return %arg1, %c0_i32, %c0_i32_0, %arg0 : i32, i32, i32, i32
  }
}

</mosaic_0001>

<llo_original>
// kernel: basic_block_forward.3
$region0: #{basic_block_forward.3}
  #allocation0 [shape = 'u32[]', space=smem, size = 0x4, offset = 0x4, fixed_abs, tag = 'smem constant byte address 0x4 - core index']
  #allocation1 [shape = 'u32[144,128]{1,0:T(1,128)}', space=vmem, size = 0x12000, scoped, tag = 'internal scratch']
  %s0 = inlined_call_operand.vmem [shape: bf16[2,10,10,128], index: 0, kind: input, shape index: {}]
  %s1 = inlined_call_operand.vmem [shape: bf16[9,128,128], index: 1, kind: input, shape index: {}]
  %s2 = inlined_call_operand.vmem [shape: f32[1,128], index: 2, kind: input, shape index: {}]
  %s3 = inlined_call_operand.vmem [shape: bf16[2,8,8,128], index: 3, kind: input, shape index: {}]
  %s4 = inlined_call_operand.vmem [shape: bf16[128,128], index: 4, kind: input, shape index: {}]
  %s5 = inlined_call_operand.vmem [shape: f32[2,8,8,128], index: 5, kind: output, shape index: {}]
  %s6 = sld [smem:[#allocation0]]
  $region53: #{basic_block_forward.3} parent=0
    _
  %s8 = ssub.s32 1, %s6
  %s9 = scalar_select 0, %s8, %s6
  loop: start=0, step=1, limit=4
  $region2: #{basic_block_forward.3} parent=0 // loop_pre_header
    _
  $region3: #{basic_block_forward.3} parent=0 // loop_header
    %s11 = sphi 0, %s15
    %p12 = scmp.ge.s32.totalorder %s11, 4
    %s18 = sphi 0, %s30
    %s19 = sphi 0, %s26
    %s20 = sphi 0, %s18
    %s21 = sphi 0, %s19
    %s22 = sphi 0, %s20
    %s23 = sphi 0, %s21
    %s33 = sphi 0, %s35
    %s36 = sphi 0, %s33
    %s37 = sphi 0, %s36
    %s53 = sphi 0, %s37
    %s59 = sphi 0, %s61
    %s62 = sphi 0, %s59
    %s63 = sphi 0, %s62
    %s79 = sphi 0, %s63
    %s85 = sphi 0, %s87
    %s88 = sphi 0, %s85
    %s89 = sphi 0, %s88
    %s105 = sphi 0, %s89
    %s111 = sphi 0, %s113
    %s114 = sphi 0, %s111
    %s115 = sphi 0, %s114
    %s131 = sphi 0, %s115
    %s137 = sphi 0, %s139
    %s140 = sphi 0, %s137
    %s141 = sphi 0, %s140
    %s157 = sphi 0, %s141
    %s165 = sphi 0, %s167
    %s168 = sphi 0, %s165
    %s169 = sphi 0, %s168
    %s185 = sphi 0, %s169
  $region4: #{basic_block_forward.3} parent=0 // loop_header_branch
    %14 = sbr.rel (%p12) target = $region8
  $region5: #{basic_block_forward.3} parent=0 // loop_body
    %s16 = ssub.s32 %s11, 1
    %s17 = ssub.s32 %s11, 2
    %s24 = sadd.s32 1, %s19
    %p25 = scmp.ge.s32.totalorder %s24, 2
    %s26 = scalar_select %p25, 0, %s24
    %s27 = sadd.s32 1, %s18
    %s28 = scalar_select %p25, %s27, %s18
    %p29 = scmp.ge.s32.totalorder %s28, 1
    %s30 = scalar_select %p29, 0, %s28
    %s31 = ssub.s32 %s19, %s26
    %p32 = scmp.eq.s32.totalorder %s31, 0
    %s34 = sadd.s32 %s33, 1
    %s35 = scalar_select %p32, %s33, %s34
    %p38 = pneg %p32
    %p39 = scmp.eq.s32.totalorder %s11, 1
    %p40 = por %p38, %p39
    %p41 = scmp.ne.s32.totalorder %s33, %s36
    %p42 = scmp.eq.s32.totalorder %s11, 0
    %p43 = por %p41, %p42
    %p44 = scmp.ne.s32.totalorder %s33, %s36
    %p45 = scmp.eq.s32.totalorder %s16, 1
    %p46 = por %p44, %p45
    %p47 = scmp.ne.s32.totalorder %s36, %s37
    %p48 = scmp.eq.s32.totalorder %s16, 0
    %p49 = por %p47, %p48
    %p50 = scmp.ne.s32.totalorder %s36, %s37
    %p51 = scmp.eq.s32.totalorder %s17, 1
    %p52 = por %p50, %p51
    %p54 = scmp.ne.s32.totalorder %s37, %s53
    %p55 = scmp.eq.s32.totalorder %s17, 0
    %p56 = por %p54, %p55
    %s57 = ssub.s32 %s18, %s30
    %p58 = scmp.eq.s32.totalorder %s57, 0
    %s60 = sadd.s32 %s59, 1
    %s61 = scalar_select %p58, %s59, %s60
    %p64 = pneg %p58
    %p65 = scmp.eq.s32.totalorder %s11, 1
    %p66 = por %p64, %p65
    %p67 = scmp.ne.s32.totalorder %s59, %s62
    %p68 = scmp.eq.s32.totalorder %s11, 0
    %p69 = por %p67, %p68
    %p70 = scmp.ne.s32.totalorder %s59, %s62
    %p71 = scmp.eq.s32.totalorder %s16, 1
    %p72 = por %p70, %p71
    %p73 = scmp.ne.s32.totalorder %s62, %s63
    %p74 = scmp.eq.s32.totalorder %s16, 0
    %p75 = por %p73, %p74
    %p76 = scmp.ne.s32.totalorder %s62, %s63
    %p77 = scmp.eq.s32.totalorder %s17, 1
    %p78 = por %p76, %p77
    %p80 = scmp.ne.s32.totalorder %s63, %s79
    %p81 = scmp.eq.s32.totalorder %s17, 0
    %p82 = por %p80, %p81
    %s83 = ssub.s32 %s18, %s30
    %p84 = scmp.eq.s32.totalorder %s83, 0
    %s86 = sadd.s32 %s85, 1
    %s87 = scalar_select %p84, %s85, %s86
    %p90 = pneg %p84
    %p91 = scmp.eq.s32.totalorder %s11, 1
    %p92 = por %p90, %p91
    %p93 = scmp.ne.s32.totalorder %s85, %s88
    %p94 = scmp.eq.s32.totalorder %s11, 0
    %p95 = por %p93, %p94
    %p96 = scmp.ne.s32.totalorder %s85, %s88
    %p97 = scmp.eq.s32.totalorder %s16, 1
    %p98 = por %p96, %p97
    %p99 = scmp.ne.s32.totalorder %s88, %s89
    %p100 = scmp.eq.s32.totalorder %s16, 0
    %p101 = por %p99, %p100
    %p102 = scmp.ne.s32.totalorder %s88, %s89
    %p103 = scmp.eq.s32.totalorder %s17, 1
    %p104 = por %p102, %p103
    %p106 = scmp.ne.s32.totalorder %s89, %s105
    %p107 = scmp.eq.s32.totalorder %s17, 0
    %p108 = por %p106, %p107
    %s109 = ssub.s32 %s19, %s26
    %p110 = scmp.eq.s32.totalorder %s109, 0
    %s112 = sadd.s32 %s111, 1
    %s113 = scalar_select %p110, %s111, %s112
    %p116 = pneg %p110
    %p117 = scmp.eq.s32.totalorder %s11, 1
    %p118 = por %p116, %p117
    %p119 = scmp.ne.s32.totalorder %s111, %s114
    %p120 = scmp.eq.s32.totalorder %s11, 0
    %p121 = por %p119, %p120
    %p122 = scmp.ne.s32.totalorder %s111, %s114
    %p123 = scmp.eq.s32.totalorder %s16, 1
    %p124 = por %p122, %p123
    %p125 = scmp.ne.s32.totalorder %s114, %s115
    %p126 = scmp.eq.s32.totalorder %s16, 0
    %p127 = por %p125, %p126
    %p128 = scmp.ne.s32.totalorder %s114, %s115
    %p129 = scmp.eq.s32.totalorder %s17, 1
    %p130 = por %p128, %p129
    %p132 = scmp.ne.s32.totalorder %s115, %s131
    %p133 = scmp.eq.s32.totalorder %s17, 0
    %p134 = por %p132, %p133
    %s135 = ssub.s32 %s18, %s30
    %p136 = scmp.eq.s32.totalorder %s135, 0
    %s138 = sadd.s32 %s137, 1
    %s139 = scalar_select %p136, %s137, %s138
    %p142 = pneg %p136
    %p143 = scmp.eq.s32.totalorder %s11, 1
    %p144 = por %p142, %p143
    %p145 = scmp.ne.s32.totalorder %s137, %s140
    %p146 = scmp.eq.s32.totalorder %s11, 0
    %p147 = por %p145, %p146
    %p148 = scmp.ne.s32.totalorder %s137, %s140
    %p149 = scmp.eq.s32.totalorder %s16, 1
    %p150 = por %p148, %p149
    %p151 = scmp.ne.s32.totalorder %s140, %s141
    %p152 = scmp.eq.s32.totalorder %s16, 0
    %p153 = por %p151, %p152
    %p154 = scmp.ne.s32.totalorder %s140, %s141
    %p155 = scmp.eq.s32.totalorder %s17, 1
    %p156 = por %p154, %p155
    %p158 = scmp.ne.s32.totalorder %s141, %s157
    %p159 = scmp.eq.s32.totalorder %s17, 0
    %p160 = por %p158, %p159
    %s161 = ssub.s32 %s19, %s26
    %s162 = ssub.s32 %s18, %s30
    %s163 = sor.u32 %s161, %s162
    %p164 = scmp.eq.s32.totalorder %s163, 0
    %s166 = sadd.s32 %s165, 1
    %s167 = scalar_select %p164, %s165, %s166
    %p170 = pneg %p164
    %p171 = scmp.eq.s32.totalorder %s11, 1
    %p172 = por %p170, %p171
    %p173 = scmp.ne.s32.totalorder %s165, %s168
    %p174 = scmp.eq.s32.totalorder %s11, 0
    %p175 = por %p173, %p174
    %p176 = scmp.ne.s32.totalorder %s165, %s168
    %p177 = scmp.eq.s32.totalorder %s16, 1
    %p178 = por %p176, %p177
    %p179 = scmp.ne.s32.totalorder %s168, %s169
    %p180 = scmp.eq.s32.totalorder %s16, 0
    %p181 = por %p179, %p180
    %p182 = scmp.ne.s32.totalorder %s168, %s169
    %p183 = scmp.eq.s32.totalorder %s17, 1
    %p184 = por %p182, %p183
    %p186 = scmp.ne.s32.totalorder %s169, %s185
    %p187 = scmp.eq.s32.totalorder %s17, 0
    %p188 = por %p186, %p187
    %p189 = scmp.le.s32.totalorder 1, %s11
    %p190 = scmp.lt.s32.totalorder %s11, 3
    %p191 = pnand %p189, %p190
    %p192 = pneg %p191
    // Predicated region
    $region9: #{basic_block_forward.3} parent=5 // pred_check
      _
    $region10: #{basic_block_forward.3} parent=5 // pred_check_branch
      %194 = sbr.rel (%p191) target = $region12
    $region11: #{basic_block_forward.3} parent=5 // pred_region
      %s195 = ssub.s32 %s11, 1
      // Predicated region
      $region13: #{basic_block_forward.3} parent=11 // pred_check
        %p196 = pneg %p75
      $region14: #{basic_block_forward.3} parent=11 // pred_check_branch
        %198 = sbr.rel (%p196) target = $region16
      $region15: #{basic_block_forward.3} parent=11 // pred_region
        %p199 = scmp.lt.s32.totalorder %s20, 0
        %s200 = scalar_select %p199, %s20, 0
        %s201 = smul.addr %s200, 4
        %s202 = scalar_lea.vmem %s1, %s201
      $region16: #{basic_block_forward.3} parent=11 // pred_fallthru
        _
      // Predicated region
      $region17: #{basic_block_forward.3} parent=11 // pred_check
        %p203 = pneg %p101
      $region18: #{basic_block_forward.3} parent=11 // pred_check_branch
        %205 = sbr.rel (%p203) target = $region20
      $region19: #{basic_block_forward.3} parent=11 // pred_region
        %p206 = scmp.lt.s32.totalorder %s20, 0
        %s207 = scalar_select %p206, %s20, 0
        %s208 = scalar_lea.vmem %s2, %s207
      $region20: #{basic_block_forward.3} parent=11 // pred_fallthru
        _
      // Predicated region
      $region21: #{basic_block_forward.3} parent=11 // pred_check
        %p209 = pneg %p153
      $region22: #{basic_block_forward.3} parent=11 // pred_check_branch
        %211 = sbr.rel (%p209) target = $region24
      $region23: #{basic_block_forward.3} parent=11 // pred_region
        %p212 = scmp.lt.s32.totalorder %s20, 0
        %s213 = scalar_select %p212, %s20, 0
        %s214 = smul.addr %s213, 4
        %s215 = scalar_lea.vmem %s4, %s214
      $region24: #{basic_block_forward.3} parent=11 // pred_fallthru
        _
    $region12: #{basic_block_forward.3} parent=5 // pred_fallthru
      _
    %p216 = scmp.lt.s32.totalorder %s11, 2
    // Predicated region
    $region25: #{basic_block_forward.3} parent=5 // pred_check
      %p217 = pneg %p216
    $region26: #{basic_block_forward.3} parent=5 // pred_check_branch
      %219 = sbr.rel (%p217) target = $region28
    $region27: #{basic_block_forward.3} parent=5 // pred_region
      // Predicated region
      $region29: #{basic_block_forward.3} parent=27 // pred_check
        %p220 = pneg %p43
      $region30: #{basic_block_forward.3} parent=27 // pred_check_branch
        %222 = sbr.rel (%p220) target = $region32
      $region31: #{basic_block_forward.3} parent=27 // pred_region
        %p223 = scmp.lt.s32.totalorder %s19, 1
        %s224 = scalar_select %p223, %s19, 1
        %s225 = smul.addr %s224, 20
        %s226 = smul.addr %s225, 4
        %s227 = scalar_lea.vmem %s0, %s226
      $region32: #{basic_block_forward.3} parent=27 // pred_fallthru
        _
      // Predicated region
      $region33: #{basic_block_forward.3} parent=27 // pred_check
        %p228 = pneg %p121
      $region34: #{basic_block_forward.3} parent=27 // pred_check_branch
        %230 = sbr.rel (%p228) target = $region36
      $region35: #{basic_block_forward.3} parent=27 // pred_region
        %p231 = scmp.lt.s32.totalorder %s19, 1
        %s232 = scalar_select %p231, %s19, 1
        %s233 = smul.addr %s232, 8
        %s234 = smul.addr %s233, 4
        %s235 = scalar_lea.vmem %s3, %s234
      $region36: #{basic_block_forward.3} parent=27 // pred_fallthru
        _
    $region28: #{basic_block_forward.3} parent=5 // pred_fallthru
      _
    %p236 = scmp.le.s32.totalorder 1, %s11
    %p237 = scmp.lt.s32.totalorder %s11, 3
    %p238 = pnand %p236, %p237
    %p239 = pneg %p238
    // Predicated region
    $region37: #{basic_block_forward.3} parent=5 // pred_check
      _
    $region38: #{basic_block_forward.3} parent=5 // pred_check_branch
      %241 = sbr.rel (%p238) target = $region40
    $region39: #{basic_block_forward.3} parent=5 // pred_region
      %s242 = ssub.s32 %s11, 1
      %p243 = scmp.lt.s32.totalorder %s21, 1
      %s244 = scalar_select %p243, %s21, 1
      %s245 = smul.addr %s244, 20
      %s246 = smul.addr %s245, 4
      %s247 = scalar_lea.vmem %s0, %s246
      %p248 = pneg %p49
      %p249 = pneg %p46
      %p250 = scmp.lt.s32.totalorder %s20, 0
      %s251 = scalar_select %p250, %s20, 0
      %s252 = smul.addr %s251, 4
      %s253 = scalar_lea.vmem %s1, %s252
      %p254 = pneg %p75
      %p255 = pneg %p72
      %p256 = scmp.lt.s32.totalorder %s20, 0
      %s257 = scalar_select %p256, %s20, 0
      %s258 = scalar_lea.vmem %s2, %s257
      %p259 = pneg %p101
      %p260 = pneg %p98
      %p261 = scmp.lt.s32.totalorder %s21, 1
      %s262 = scalar_select %p261, %s21, 1
      %s263 = smul.addr %s262, 8
      %s264 = smul.addr %s263, 4
      %s265 = scalar_lea.vmem %s3, %s264
      %p266 = pneg %p127
      %p267 = pneg %p124
      %p268 = scmp.lt.s32.totalorder %s20, 0
      %s269 = scalar_select %p268, %s20, 0
      %s270 = smul.addr %s269, 4
      %s271 = scalar_lea.vmem %s4, %s270
      %p272 = pneg %p153
      %p273 = pneg %p150
      %p274 = pneg %p181
      %p275 = pneg %p178
      %p276 = scmp.lt.s32.totalorder %s21, 1
      %s277 = scalar_select %p276, %s21, 1
      %p278 = scmp.lt.s32.totalorder %s20, 0
      %s279 = scalar_select %p278, %s20, 0
      %s280 = smul.addr %s277, 8
      %s281 = sadd.s32 %s279, %s280
      %s282 = smul.addr %s281, 8
      %s283 = scalar_lea.vmem %s5, %s282
      %p284 = scmp.lt.s32.totalorder %s21, 1
      %s285 = scalar_select %p284, %s21, 1
      %s286 = smul.addr %s285, 20
      %s287 = smul.addr %s286, 4
      %s288 = scalar_lea.vmem %s0, %s287
      %p289 = scmp.lt.s32.totalorder %s20, 0
      %s290 = scalar_select %p289, %s20, 0
      %s291 = smul.addr %s290, 4
      %s292 = scalar_lea.vmem %s1, %s291
      %p293 = scmp.lt.s32.totalorder %s20, 0
      %s294 = scalar_select %p293, %s20, 0
      %s295 = scalar_lea.vmem %s2, %s294
      %p296 = scmp.lt.s32.totalorder %s21, 1
      %s297 = scalar_select %p296, %s21, 1
      %s298 = smul.addr %s297, 8
      %s299 = smul.addr %s298, 4
      %s300 = scalar_lea.vmem %s3, %s299
      %p301 = scmp.lt.s32.totalorder %s20, 0
      %s302 = scalar_select %p301, %s20, 0
      %s303 = smul.addr %s302, 4
      %s304 = scalar_lea.vmem %s4, %s303
      %p305 = scmp.lt.s32.totalorder %s21, 1
      %s306 = scalar_select %p305, %s21, 1
      %p307 = scmp.lt.s32.totalorder %s20, 0
      %s308 = scalar_select %p307, %s20, 0
      %s309 = smul.addr %s306, 8
      %s310 = sadd.s32 %s308, %s309
      %s311 = smul.addr %s310, 8
      %s312 = scalar_lea.vmem %s5, %s311
      %v314 = vld [vmem:[%s288] sm:$0xf]
      %v315 = vld [vmem:[%s288 + $0x8] sm:$0xf]
      %v316 = vld [vmem:[%s288 + $0x10] sm:$0xf]
      %v317 = vld [vmem:[%s288 + $0x18] sm:$0xf]
      %v318 = vld [vmem:[%s288 + $0x20] sm:$0xf]
      %v319 = vld [vmem:[%s288 + $0x28] sm:$0xf]
      %v320 = vld [vmem:[%s288 + $0x30] sm:$0xf]
      %v321 = vld [vmem:[%s288 + $0x38] sm:$0xf]
      %v322 = vld [vmem:[%s292] sm:$0xf]
      %v323 = vld [vmem:[%s292 + $0x4] sm:$0xf]
      %v324 = vld [vmem:[%s292 + $0x8] sm:$0xf]
      %v325 = vld [vmem:[%s292 + $0xc] sm:$0xf]
      %v326 = vld [vmem:[%s292 + $0x10] sm:$0xf]
      %v327 = vld [vmem:[%s292 + $0x14] sm:$0xf]
      %v328 = vld [vmem:[%s292 + $0x18] sm:$0xf]
      %v329 = vld [vmem:[%s292 + $0x1c] sm:$0xf]
      %v330 = vld [vmem:[%s292 + $0x20] sm:$0xf]
      %v331 = vld [vmem:[%s292 + $0x24] sm:$0xf]
      %v332 = vld [vmem:[%s292 + $0x28] sm:$0xf]
      %v333 = vld [vmem:[%s292 + $0x2c] sm:$0xf]
      %v334 = vld [vmem:[%s292 + $0x30] sm:$0xf]
      %v335 = vld [vmem:[%s292 + $0x34] sm:$0xf]
      %v336 = vld [vmem:[%s292 + $0x38] sm:$0xf]
      %v337 = vld [vmem:[%s292 + $0x3c] sm:$0xf]
      %v338 = vld [vmem:[%s288 + $0x4] sm:$0x1]
      %v339 = vld [vmem:[%s288 + $0xc] sm:$0x1]
      %v340 = vld [vmem:[%s288 + $0x14] sm:$0x1]
      %v341 = vld [vmem:[%s288 + $0x1c] sm:$0x1]
      %v342 = vld [vmem:[%s288 + $0x24] sm:$0x1]
      %v343 = vld [vmem:[%s288 + $0x2c] sm:$0x1]
      %v344 = vld [vmem:[%s288 + $0x34] sm:$0x1]
      %v345 = vld [vmem:[%s288 + $0x3c] sm:$0x1]
      %vm346 = vsmask.f32 3328
      %vm347 = vsmask.f32 7440
      %vm348 = vmor %vm346, %vm347
      %v350 = vshrl.u32 %v314, 16
      %v352 = vrot.slane %v350, 4
      %v353 = vshll.u32 %v314, 16
      %v355 = vrot.slane %v353, 5
      %v356 = vor.u32 %v352, %v355
      %v357 = vrot.slane %v356, 4
      %v359 = vshll.u32 %v338, 16
      %v361 = vrot.slane %v359, 5
      %v362 = vsel %vm348, %v357, %v361
      %v364 = vshrl.u32 %v315, 16
      %v366 = vrot.slane %v364, 4
      %v367 = vshll.u32 %v315, 16
      %v369 = vrot.slane %v367, 5
      %v370 = vor.u32 %v366, %v369
      %v371 = vrot.slane %v370, 4
      %v373 = vshll.u32 %v339, 16
      %v375 = vrot.slane %v373, 5
      %v376 = vsel %vm348, %v371, %v375
      %v378 = vshrl.u32 %v316, 16
      %v380 = vrot.slane %v378, 4
      %v381 = vshll.u32 %v316, 16
      %v383 = vrot.slane %v381, 5
      %v384 = vor.u32 %v380, %v383
      %v385 = vrot.slane %v384, 4
      %v387 = vshll.u32 %v340, 16
      %v389 = vrot.slane %v387, 5
      %v390 = vsel %vm348, %v385, %v389
      %v392 = vshrl.u32 %v317, 16
      %v394 = vrot.slane %v392, 4
      %v395 = vshll.u32 %v317, 16
      %v397 = vrot.slane %v395, 5
      %v398 = vor.u32 %v394, %v397
      %v399 = vrot.slane %v398, 4
      %v401 = vshll.u32 %v341, 16
      %v403 = vrot.slane %v401, 5
      %v404 = vsel %vm348, %v399, %v403
      %v406 = vshrl.u32 %v318, 16
      %v408 = vrot.slane %v406, 4
      %v409 = vshll.u32 %v318, 16
      %v411 = vrot.slane %v409, 5
      %v412 = vor.u32 %v408, %v411
      %v413 = vrot.slane %v412, 4
      %v415 = vshll.u32 %v342, 16
      %v417 = vrot.slane %v415, 5
      %v418 = vsel %vm348, %v413, %v417
      %v420 = vshrl.u32 %v319, 16
      %v422 = vrot.slane %v420, 4
      %v423 = vshll.u32 %v319, 16
      %v425 = vrot.slane %v423, 5
      %v426 = vor.u32 %v422, %v425
      %v427 = vrot.slane %v426, 4
      %v429 = vshll.u32 %v343, 16
      %v431 = vrot.slane %v429, 5
      %v432 = vsel %vm348, %v427, %v431
      %v434 = vshrl.u32 %v320, 16
      %v436 = vrot.slane %v434, 4
      %v437 = vshll.u32 %v320, 16
      %v439 = vrot.slane %v437, 5
      %v440 = vor.u32 %v436, %v439
      %v441 = vrot.slane %v440, 4
      %v443 = vshll.u32 %v344, 16
      %v445 = vrot.slane %v443, 5
      %v446 = vsel %vm348, %v441, %v445
      %v448 = vshrl.u32 %v321, 16
      %v450 = vrot.slane %v448, 4
      %v451 = vshll.u32 %v321, 16
      %v453 = vrot.slane %v451, 5
      %v454 = vor.u32 %v450, %v453
      %v455 = vrot.slane %v454, 4
      %v457 = vshll.u32 %v345, 16
      %v459 = vrot.slane %v457, 5
      %v460 = vsel %vm348, %v455, %v459
      %s461 = scalar_lea.vmem %s292, 64
      %v462 = vld [vmem:[%s461] sm:$0xf]
      %v463 = vld [vmem:[%s461 + $0x4] sm:$0xf]
      %v464 = vld [vmem:[%s461 + $0x8] sm:$0xf]
      %v465 = vld [vmem:[%s461 + $0xc] sm:$0xf]
      %v466 = vld [vmem:[%s461 + $0x10] sm:$0xf]
      %v467 = vld [vmem:[%s461 + $0x14] sm:$0xf]
      %v468 = vld [vmem:[%s461 + $0x18] sm:$0xf]
      %v469 = vld [vmem:[%s461 + $0x1c] sm:$0xf]
      %v470 = vld [vmem:[%s461 + $0x20] sm:$0xf]
      %v471 = vld [vmem:[%s461 + $0x24] sm:$0xf]
      %v472 = vld [vmem:[%s461 + $0x28] sm:$0xf]
      %v473 = vld [vmem:[%s461 + $0x2c] sm:$0xf]
      %v474 = vld [vmem:[%s461 + $0x30] sm:$0xf]
      %v475 = vld [vmem:[%s461 + $0x34] sm:$0xf]
      %v476 = vld [vmem:[%s461 + $0x38] sm:$0xf]
      %v477 = vld [vmem:[%s461 + $0x3c] sm:$0xf]
      %v478 = vunpack.c.l.b16 %v362
      %v479 = vunpack.c.l.b16 %v376
      %v480 = vunpack.c.l.b16 %v390
      %v481 = vunpack.c.l.b16 %v404
      %v482 = vunpack.c.l.b16 %v418
      %v483 = vunpack.c.l.b16 %v432
      %v484 = vunpack.c.l.b16 %v446
      %v485 = vunpack.c.l.b16 %v460
      %v486 = vpack.c.b16 %v479, %v478
      %v487 = vpack.c.b16 %v481, %v480
      %v488 = vpack.c.b16 %v483, %v482
      %v489 = vpack.c.b16 %v485, %v484
      %v510 = vunpack.c.l.b16 %v462
      %v511 = vunpack.c.l.b16 %v463
      %v512 = vunpack.c.l.b16 %v464
      %v513 = vunpack.c.l.b16 %v465
      %v514 = vunpack.c.l.b16 %v466
      %v515 = vunpack.c.l.b16 %v467
      %v516 = vunpack.c.l.b16 %v468
      %v517 = vunpack.c.l.b16 %v469
      %v518 = vunpack.c.l.b16 %v470
      %v519 = vunpack.c.l.b16 %v471
      %v520 = vunpack.c.l.b16 %v472
      %v521 = vunpack.c.l.b16 %v473
      %v522 = vunpack.c.l.b16 %v474
      %v523 = vunpack.c.l.b16 %v475
      %v524 = vunpack.c.l.b16 %v476
      %v525 = vunpack.c.l.b16 %v477
      %v526 = vpack.c.b16 %v511, %v510
      %v527 = vpack.c.b16 %v513, %v512
      %v528 = vpack.c.b16 %v515, %v514
      %v529 = vpack.c.b16 %v517, %v516
      %v530 = vpack.c.b16 %v519, %v518
      %v531 = vpack.c.b16 %v521, %v520
      %v532 = vpack.c.b16 %v523, %v522
      %v533 = vpack.c.b16 %v525, %v524
      %542 = vmatprep.subr.bf16.mxu0 0
      %543 = vmatpush1.bf16.msra.mxu0 %v526
      %544 = vmatprep.subr.bf16.mxu0 0
      %545 = vmatpush1.bf16.msra.mxu0 %v527
      %546 = vmatprep.subr.bf16.mxu0 0
      %547 = vmatpush1.bf16.msra.mxu0 %v528
      %548 = vmatprep.subr.bf16.mxu0 0
      %549 = vmatpush1.bf16.msra.mxu0 %v529
      %550 = vmatprep.subr.bf16.mxu0 0
      %551 = vmatpush1.bf16.msra.mxu0 %v530
      %552 = vmatprep.subr.bf16.mxu0 0
      %553 = vmatpush1.bf16.msra.mxu0 %v531
      %554 = vmatprep.subr.bf16.mxu0 0
      %555 = vmatpush1.bf16.msra.mxu0 %v532
      %556 = vmatprep.subr.bf16.mxu0 0
      %557 = vmatpush1.bf16.msra.mxu0 %v533
      %558 = vmatprep.subr.bf16.mxu0 0
      %559 = vmatpush1.bf16.msra.mxu0 0
      %560 = vmatprep.subr.bf16.mxu0 0
      %561 = vmatpush1.bf16.msra.mxu0 0
      %562 = vmatprep.subr.bf16.mxu0 0
      %563 = vmatpush1.bf16.msra.mxu0 0
      %564 = vmatprep.subr.bf16.mxu0 0
      %565 = vmatpush1.bf16.msra.mxu0 0
      %566 = vmatprep.subr.bf16.mxu0 0
      %567 = vmatpush1.bf16.msra.mxu0 0
      %568 = vmatprep.subr.bf16.mxu0 0
      %569 = vmatpush1.bf16.msra.mxu0 0
      %570 = vmatprep.subr.bf16.mxu0 0
      %571 = vmatpush1.bf16.msra.mxu0 0
      %572 = vmatprep.subr.bf16.mxu0 0
      %573 = vmatpush1.bf16.msra.mxu0 0
      %574 = vmatprep.mubr.bf16.mxu0 0
      %575 = vmatmul.mubr.bf16.gmra.mrb[0].mxu0 %v486
      %v576 = vpop.f32.mrb[0].mxu0
      %v577 = vadd.f32 0.0, %v576
      %v578 = vpop.f32.mrb[0].mxu0
      %v579 = vpop.f32.mrb[0].mxu0
      %v580 = vadd.f32 0.0, %v579
      %v581 = vpop.f32.mrb[0].mxu0
      %582 = vmatprep.mubr.bf16.mxu0 0
      %583 = vmatmul.mubr.bf16.gmra.mrb[0].mxu0 %v487
      %v584 = vpop.f32.mrb[0].mxu0
      %v585 = vadd.f32 0.0, %v584
      %v586 = vpop.f32.mrb[0].mxu0
      %v587 = vpop.f32.mrb[0].mxu0
      %v588 = vadd.f32 0.0, %v587
      %v589 = vpop.f32.mrb[0].mxu0
      %590 = vmatprep.mubr.bf16.mxu0 0
      %591 = vmatmul.mubr.bf16.gmra.mrb[0].mxu0 %v488
      %v592 = vpop.f32.mrb[0].mxu0
      %v593 = vadd.f32 0.0, %v592
      %v594 = vpop.f32.mrb[0].mxu0
      %v595 = vpop.f32.mrb[0].mxu0
      %v596 = vadd.f32 0.0, %v595
      %v597 = vpop.f32.mrb[0].mxu0
      %598 = vmatprep.mubr.bf16.mxu0 0
      %599 = vmatmul.mubr.bf16.gmra.mrb[0].mxu0 %v489
      %v600 = vpop.f32.mrb[0].mxu0
      %v601 = vadd.f32 0.0, %v600
      %v602 = vpop.f32.mrb[0].mxu0
      %v603 = vpop.f32.mrb[0].mxu0
      %v604 = vadd.f32 0.0, %v603
      %v605 = vpop.f32.mrb[0].mxu0
      %606 = vdwg.mxu0
      %v615 = vunpack.c.l.b16 %v314
      %v616 = vunpack.c.l.b16 %v315
      %v617 = vunpack.c.l.b16 %v316
      %v618 = vunpack.c.l.b16 %v317
      %v619 = vunpack.c.l.b16 %v318
      %v620 = vunpack.c.l.b16 %v319
      %v621 = vunpack.c.l.b16 %v320
      %v622 = vunpack.c.l.b16 %v321
      %v623 = vpack.c.b16 %v616, %v615
      %v624 = vpack.c.b16 %v618, %v617
      %v625 = vpack.c.b16 %v620, %v619
      %v626 = vpack.c.b16 %v622, %v621
      %v647 = vunpack.c.l.b16 %v322
      %v648 = vunpack.c.l.b16 %v323
      %v649 = vunpack.c.l.b16 %v324
      %v650 = vunpack.c.l.b16 %v325
      %v651 = vunpack.c.l.b16 %v326
      %v652 = vunpack.c.l.b16 %v327
      %v653 = vunpack.c.l.b16 %v328
      %v654 = vunpack.c.l.b16 %v329
      %v655 = vunpack.c.l.b16 %v330
      %v656 = vunpack.c.l.b16 %v331
      %v657 = vunpack.c.l.b16 %v332
      %v658 = vunpack.c.l.b16 %v333
      %v659 = vunpack.c.l.b16 %v334
      %v660 = vunpack.c.l.b16 %v335
      %v661 = vunpack.c.l.b16 %v336
      %v662 = vunpack.c.l.b16 %v337
      %v663 = vpack.c.b16 %v648, %v647
      %v664 = vpack.c.b16 %v650, %v649
      %v665 = vpack.c.b16 %v652, %v651
      %v666 = vpack.c.b16 %v654, %v653
      %v667 = vpack.c.b16 %v656, %v655
      %v668 = vpack.c.b16 %v658, %v657
      %v669 = vpack.c.b16 %v660, %v659
      %v670 = vpack.c.b16 %v662, %v661
      %679 = vmatprep.subr.bf16.mxu0 0
      %680 = vmatpush1.bf16.msra.mxu0 %v663
      %681 = vmatprep.subr.bf16.mxu0 0
      %682 = vmatpush1.bf16.msra.mxu0 %v664
      %683 = vmatprep.subr.bf16.mxu0 0
      %684 = vmatpush1.bf16.msra.mxu0 %v665
      %685 = vmatprep.subr.bf16.mxu0 0
      %686 = vmatpush1.bf16.msra.mxu0 %v666
      %687 = vmatprep.subr.bf16.mxu0 0
      %688 = vmatpush1.bf16.msra.mxu0 %v667
      %689 = vmatprep.subr.bf16.mxu0 0
      %690 = vmatpush1.bf16.msra.mxu0 %v668
      %691 = vmatprep.subr.bf16.mxu0 0
      %692 = vmatpush1.bf16.msra.mxu0 %v669
      %693 = vmatprep.subr.bf16.mxu0 0
      %694 = vmatpush1.bf16.msra.mxu0 %v670
      %695 = vmatprep.subr.bf16.mxu0 0
      %696 = vmatpush1.bf16.msra.mxu0 0
      %697 = vmatprep.subr.bf16.mxu0 0
      %698 = vmatpush1.bf16.msra.mxu0 0
      %699 = vmatprep.subr.bf16.mxu0 0
      %700 = vmatpush1.bf16.msra.mxu0 0
      %701 = vmatprep.subr.bf16.mxu0 0
      %702 = vmatpush1.bf16.msra.mxu0 0
      %703 = vmatprep.subr.bf16.mxu0 0
      %704 = vmatpush1.bf16.msra.mxu0 0
      %705 = vmatprep.subr.bf16.mxu0 0
      %706 = vmatpush1.bf16.msra.mxu0 0
      %707 = vmatprep.subr.bf16.mxu0 0
      %708 = vmatpush1.bf16.msra.mxu0 0
      %709 = vmatprep.subr.bf16.mxu0 0
      %710 = vmatpush1.bf16.msra.mxu0 0
      %711 = vmatprep.mubr.bf16.mxu0 0
      %712 = vmatmul.mubr.bf16.gmra.mrb[0].mxu0 %v623
      %v713 = vpop.f32.mrb[0].mxu0
      %v714 = vadd.f32 %v577, %v713
      %v715 = vpop.f32.mrb[0].mxu0
      %v716 = vpop.f32.mrb[0].mxu0
      %v717 = vadd.f32 %v580, %v716
      %v718 = vpop.f32.mrb[0].mxu0
      %719 = vmatprep.mubr.bf16.mxu0 0
      %720 = vmatmul.mubr.bf16.gmra.mrb[0].mxu0 %v624
      %v721 = vpop.f32.mrb[0].mxu0
      %v722 = vadd.f32 %v585, %v721
      %v723 = vpop.f32.mrb[0].mxu0
      %v724 = vpop.f32.mrb[0].mxu0
      %v725 = vadd.f32 %v588, %v724
      %v726 = vpop.f32.mrb[0].mxu0
      %727 = vmatprep.mubr.bf16.mxu0 0
      %728 = vmatmul.mubr.bf16.gmra.mrb[0].mxu0 %v625
      %v729 = vpop.f32.mrb[0].mxu0
      %v730 = vadd.f32 %v593, %v729
      %v731 = vpop.f32.mrb[0].mxu0
      %v732 = vpop.f32.mrb[0].mxu0
      %v733 = vadd.f32 %v596, %v732
      %v734 = vpop.f32.mrb[0].mxu0
      %735 = vmatprep.mubr.bf16.mxu0 0
      %736 = vmatmul.mubr.bf16.gmra.mrb[0].mxu0 %v626
      %v737 = vpop.f32.mrb[0].mxu0
      %v738 = vadd.f32 %v601, %v737
      %v739 = vpop.f32.mrb[0].mxu0
      %v740 = vpop.f32.mrb[0].mxu0
      %v741 = vadd.f32 %v604, %v740
      %v742 = vpop.f32.mrb[0].mxu0
      %743 = vdwg.mxu0
      %v744 = vld [vmem:[%s288] sm:$0xe]
      %v745 = vld [vmem:[%s288 + $0x8] sm:$0xe]
      %v746 = vld [vmem:[%s288 + $0x10] sm:$0xe]
      %v747 = vld [vmem:[%s288 + $0x18] sm:$0xe]
      %v748 = vld [vmem:[%s288 + $0x20] sm:$0xe]
      %v749 = vld [vmem:[%s288 + $0x28] sm:$0xe]
      %v750 = vld [vmem:[%s288 + $0x30] sm:$0xe]
      %v751 = vld [vmem:[%s288 + $0x38] sm:$0xe]
      %vm768 = vcmask 1042432
      %vm769 = vcmask 1046532
      %vm770 = vmor %vm768, %vm769
      %v771 = vrot.slane %v744, 5
      %v772 = vrot.slane %v771, 4
      %v773 = vrot.slane %v338, 5
      %v774 = vsel %vm770, %v772, %v773
      %v775 = vrot.slane %v745, 5
      %v776 = vrot.slane %v775, 4
      %v777 = vrot.slane %v339, 5
      %v778 = vsel %vm770, %v776, %v777
      %v779 = vrot.slane %v746, 5
      %v780 = vrot.slane %v779, 4
      %v781 = vrot.slane %v340, 5
      %v782 = vsel %vm770, %v780, %v781
      %v783 = vrot.slane %v747, 5
      %v784 = vrot.slane %v783, 4
      %v785 = vrot.slane %v341, 5
      %v786 = vsel %vm770, %v784, %v785
      %v787 = vrot.slane %v748, 5
      %v788 = vrot.slane %v787, 4
      %v789 = vrot.slane %v342, 5
      %v790 = vsel %vm770, %v788, %v789
      %v791 = vrot.slane %v749, 5
      %v792 = vrot.slane %v791, 4
      %v793 = vrot.slane %v343, 5
      %v794 = vsel %vm770, %v792, %v793
      %v795 = vrot.slane %v750, 5
      %v796 = vrot.slane %v795, 4
      %v797 = vrot.slane %v344, 5
      %v798 = vsel %vm770, %v796, %v797
      %v799 = vrot.slane %v751, 5
      %v800 = vrot.slane %v799, 4
      %v801 = vrot.slane %v345, 5
      %v802 = vsel %vm770, %v800, %v801
      %s803 = scalar_lea.vmem %s292, 128
      %v804 = vld [vmem:[%s803] sm:$0xf]
      %v805 = vld [vmem:[%s803 + $0x4] sm:$0xf]
      %v806 = vld [vmem:[%s803 + $0x8] sm:$0xf]
      %v807 = vld [vmem:[%s803 + $0xc] sm:$0xf]
      %v808 = vld [vmem:[%s803 + $0x10] sm:$0xf]
      %v809 = vld [vmem:[%s803 + $0x14] sm:$0xf]
      %v810 = vld [vmem:[%s803 + $0x18] sm:$0xf]
      %v811 = vld [vmem:[%s803 + $0x1c] sm:$0xf]
      %v812 = vld [vmem:[%s803 + $0x20] sm:$0xf]
      %v813 = vld [vmem:[%s803 + $0x24] sm:$0xf]
      %v814 = vld [vmem:[%s803 + $0x28] sm:$0xf]
      %v815 = vld [vmem:[%s803 + $0x2c] sm:$0xf]
      %v816 = vld [vmem:[%s803 + $0x30] sm:$0xf]
      %v817 = vld [vmem:[%s803 + $0x34] sm:$0xf]
      %v818 = vld [vmem:[%s803 + $0x38] sm:$0xf]
      %v819 = vld [vmem:[%s803 + $0x3c] sm:$0xf]
      %v820 = vunpack.c.l.b16 %v774
      %v821 = vunpack.c.l.b16 %v778
      %v822 = vunpack.c.l.b16 %v782
      %v823 = vunpack.c.l.b16 %v786
      %v824 = vunpack.c.l.b16 %v790
      %v825 = vunpack.c.l.b16 %v794
      %v826 = vunpack.c.l.b16 %v798
      %v827 = vunpack.c.l.b16 %v802
      %v828 = vpack.c.b16 %v821, %v820
      %v829 = vpack.c.b16 %v823, %v822
      %v830 = vpack.c.b16 %v825, %v824
      %v831 = vpack.c.b16 %v827, %v826
      %v852 = vunpack.c.l.b16 %v804
      %v853 = vunpack.c.l.b16 %v805
      %v854 = vunpack.c.l.b16 %v806
      %v855 = vunpack.c.l.b16 %v807
      %v856 = vunpack.c.l.b16 %v808
      %v857 = vunpack.c.l.b16 %v809
      %v858 = vunpack.c.l.b16 %v810
      %v859 = vunpack.c.l.b16 %v811
      %v860 = vunpack.c.l.b16 %v812
      %v861 = vunpack.c.l.b16 %v813
      %v862 = vunpack.c.l.b16 %v814
      %v863 = vunpack.c.l.b16 %v815
      %v864 = vunpack.c.l.b16 %v816
      %v865 = vunpack.c.l.b16 %v817
      %v866 = vunpack.c.l.b16 %v818
      %v867 = vunpack.c.l.b16 %v819
      %v868 = vpack.c.b16 %v853, %v852
      %v869 = vpack.c.b16 %v855, %v854
      %v870 = vpack.c.b16 %v857, %v856
      %v871 = vpack.c.b16 %v859, %v858
      %v872 = vpack.c.b16 %v861, %v860
      %v873 = vpack.c.b16 %v863, %v862
      %v874 = vpack.c.b16 %v865, %v864
      %v875 = vpack.c.b16 %v867, %v866
      %884 = vmatprep.subr.bf16.mxu0 0
      %885 = vmatpush1.bf16.msra.mxu0 %v868
      %886 = vmatprep.subr.bf16.mxu0 0
      %887 = vmatpush1.bf16.msra.mxu0 %v869
      %888 = vmatprep.subr.bf16.mxu0 0
      %889 = vmatpush1.bf16.msra.mxu0 %v870
      %890 = vmatprep.subr.bf16.mxu0 0
      %891 = vmatpush1.bf16.msra.mxu0 %v871
      %892 = vmatprep.subr.bf16.mxu0 0
      %893 = vmatpush1.bf16.msra.mxu0 %v872
      %894 = vmatprep.subr.bf16.mxu0 0
      %895 = vmatpush1.bf16.msra.mxu0 %v873
      %896 = vmatprep.subr.bf16.mxu0 0
      %897 = vmatpush1.bf16.msra.mxu0 %v874
      %898 = vmatprep.subr.bf16.mxu0 0
      %899 = vmatpush1.bf16.msra.mxu0 %v875
      %900 = vmatprep.subr.bf16.mxu0 0
      %901 = vmatpush1.bf16.msra.mxu0 0
      %902 = vmatprep.subr.bf16.mxu0 0
      %903 = vmatpush1.bf16.msra.mxu0 0
      %904 = vmatprep.subr.bf16.mxu0 0
      %905 = vmatpush1.bf16.msra.mxu0 0
      %906 = vmatprep.subr.bf16.mxu0 0
      %907 = vmatpush1.bf16.msra.mxu0 0
      %908 = vmatprep.subr.bf16.mxu0 0
      %909 = vmatpush1.bf16.msra.mxu0 0
      %910 = vmatprep.subr.bf16.mxu0 0
      %911 = vmatpush1.bf16.msra.mxu0 0
      %912 = vmatprep.subr.bf16.mxu0 0
      %913 = vmatpush1.bf16.msra.mxu0 0
      %914 = vmatprep.subr.bf16.mxu0 0
      %915 = vmatpush1.bf16.msra.mxu0 0
      %916 = vmatprep.mubr.bf16.mxu0 0
      %917 = vmatmul.mubr.bf16.gmra.mrb[0].mxu0 %v828
      %v918 = vpop.f32.mrb[0].mxu0
      %v919 = vadd.f32 0.0, %v918
      %v920 = vpop.f32.mrb[0].mxu0
      %v921 = vpop.f32.mrb[0].mxu0
      %v922 = vadd.f32 0.0, %v921
      %v923 = vpop.f32.mrb[0].mxu0
      %924 = vmatprep.mubr.bf16.mxu0 0
      %925 = vmatmul.mubr.bf16.gmra.mrb[0].mxu0 %v829
      %v926 = vpop.f32.mrb[0].mxu0
      %v927 = vadd.f32 0.0, %v926
      %v928 = vpop.f32.mrb[0].mxu0
      %v929 = vpop.f32.mrb[0].mxu0
      %v930 = vadd.f32 0.0, %v929
      %v931 = vpop.f32.mrb[0].mxu0
      %932 = vmatprep.mubr.bf16.mxu0 0
      %933 = vmatmul.mubr.bf16.gmra.mrb[0].mxu0 %v830
      %v934 = vpop.f32.mrb[0].mxu0
      %v935 = vadd.f32 0.0, %v934
      %v936 = vpop.f32.mrb[0].mxu0
      %v937 = vpop.f32.mrb[0].mxu0
      %v938 = vadd.f32 0.0, %v937
      %v939 = vpop.f32.mrb[0].mxu0
      %940 = vmatprep.mubr.bf16.mxu0 0
      %941 = vmatmul.mubr.bf16.gmra.mrb[0].mxu0 %v831
      %v942 = vpop.f32.mrb[0].mxu0
      %v943 = vadd.f32 0.0, %v942
      %v944 = vpop.f32.mrb[0].mxu0
      %v945 = vpop.f32.mrb[0].mxu0
      %v946 = vadd.f32 0.0, %v945
      %v947 = vpop.f32.mrb[0].mxu0
      %948 = vdwg.mxu0
      %v949 = vadd.f32 %v714, %v919
      %v950 = vadd.f32 %v717, %v922
      %v951 = vadd.f32 %v722, %v927
      %v952 = vadd.f32 %v725, %v930
      %v953 = vadd.f32 %v730, %v935
      %v954 = vadd.f32 %v733, %v938
      %v955 = vadd.f32 %v738, %v943
      %v956 = vadd.f32 %v741, %v946
      %s957 = scalar_lea.vmem %s288, 8
      %v958 = vld [vmem:[%s957] sm:$0xf]
      %v959 = vld [vmem:[%s957 + $0x8] sm:$0xf]
      %v960 = vld [vmem:[%s957 + $0x10] sm:$0xf]
      %v961 = vld [vmem:[%s957 + $0x18] sm:$0xf]
      %v962 = vld [vmem:[%s957 + $0x20] sm:$0xf]
      %v963 = vld [vmem:[%s957 + $0x28] sm:$0xf]
      %v964 = vld [vmem:[%s957 + $0x30] sm:$0xf]
      %v965 = vld [vmem:[%s957 + $0x38] sm:$0xf]
      %s966 = scalar_lea.vmem %s292, 192
      %v967 = vld [vmem:[%s966] sm:$0xf]
      %v968 = vld [vmem:[%s966 + $0x4] sm:$0xf]
      %v969 = vld [vmem:[%s966 + $0x8] sm:$0xf]
      %v970 = vld [vmem:[%s966 + $0xc] sm:$0xf]
      %v971 = vld [vmem:[%s966 + $0x10] sm:$0xf]
      %v972 = vld [vmem:[%s966 + $0x14] sm:$0xf]
      %v973 = vld [vmem:[%s966 + $0x18] sm:$0xf]
      %v974 = vld [vmem:[%s966 + $0x1c] sm:$0xf]
      %v975 = vld [vmem:[%s966 + $0x20] sm:$0xf]
      %v976 = vld [vmem:[%s966 + $0x24] sm:$0xf]
      %v977 = vld [vmem:[%s966 + $0x28] sm:$0xf]
      %v978 = vld [vmem:[%s966 + $0x2c] sm:$0xf]
      %v979 = vld [vmem:[%s966 + $0x30] sm:$0xf]
      %v980 = vld [vmem:[%s966 + $0x34] sm:$0xf]
      %v981 = vld [vmem:[%s966 + $0x38] sm:$0xf]
      %v982 = vld [vmem:[%s966 + $0x3c] sm:$0xf]
      %v991 = vunpack.c.l.b16 %v958
      %v992 = vunpack.c.l.b16 %v959
      %v993 = vunpack.c.l.b16 %v960
      %v994 = vunpack.c.l.b16 %v961
      %v995 = vunpack.c.l.b16 %v962
      %v996 = vunpack.c.l.b16 %v963
      %v997 = vunpack.c.l.b16 %v964
      %v998 = vunpack.c.l.b16 %v965
      %v999 = vpack.c.b16 %v992, %v991
      %v1000 = vpack.c.b16 %v994, %v993
      %v1001 = vpack.c.b16 %v996, %v995
      %v1002 = vpack.c.b16 %v998, %v997
      %v1023 = vunpack.c.l.b16 %v967
      %v1024 = vunpack.c.l.b16 %v968
      %v1025 = vunpack.c.l.b16 %v969
      %v1026 = vunpack.c.l.b16 %v970
      %v1027 = vunpack.c.l.b16 %v971
      %v1028 = vunpack.c.l.b16 %v972
      %v1029 = vunpack.c.l.b16 %v973
      %v1030 = vunpack.c.l.b16 %v974
      %v1031 = vunpack.c.l.b16 %v975
      %v1032 = vunpack.c.l.b16 %v976
      %v1033 = vunpack.c.l.b16 %v977
      %v1034 = vunpack.c.l.b16 %v978
      %v1035 = vunpack.c.l.b16 %v979
      %v1036 = vunpack.c.l.b16 %v980
      %v1037 = vunpack.c.l.b16 %v981
      %v1038 = vunpack.c.l.b16 %v982
      %v1039 = vpack.c.b16 %v1024, %v1023
      %v1040 = vpack.c.b16 %v1026, %v1025
      %v1041 = vpack.c.b16 %v1028, %v1027
      %v1042 = vpack.c.b16 %v1030, %v1029
      %v1043 = vpack.c.b16 %v1032, %v1031
      %v1044 = vpack.c.b16 %v1034, %v1033
      %v1045 = vpack.c.b16 %v1036, %v1035
      %v1046 = vpack.c.b16 %v1038, %v1037
      %1055 = vmatprep.subr.bf16.mxu0 0
      %1056 = vmatpush1.bf16.msra.mxu0 %v1039
      %1057 = vmatprep.subr.bf16.mxu0 0
      %1058 = vmatpush1.bf16.msra.mxu0 %v1040
      %1059 = vmatprep.subr.bf16.mxu0 0
      %1060 = vmatpush1.bf16.msra.mxu0 %v1041
      %1061 = vmatprep.subr.bf16.mxu0 0
      %1062 = vmatpush1.bf16.msra.mxu0 %v1042
      %1063 = vmatprep.subr.bf16.mxu0 0
      %1064 = vmatpush1.bf16.msra.mxu0 %v1043
      %1065 = vmatprep.subr.bf16.mxu0 0
      %1066 = vmatpush1.bf16.msra.mxu0 %v1044
      %1067 = vmatprep.subr.bf16.mxu0 0
      %1068 = vmatpush1.bf16.msra.mxu0 %v1045
      %1069 = vmatprep.subr.bf16.mxu0 0
      %1070 = vmatpush1.bf16.msra.mxu0 %v1046
      %1071 = vmatprep.subr.bf16.mxu0 0
      %1072 = vmatpush1.bf16.msra.mxu0 0
      %1073 = vmatprep.subr.bf16.mxu0 0
      %1074 = vmatpush1.bf16.msra.mxu0 0
      %1075 = vmatprep.subr.bf16.mxu0 0
      %1076 = vmatpush1.bf16.msra.mxu0 0
      %1077 = vmatprep.subr.bf16.mxu0 0
      %1078 = vmatpush1.bf16.msra.mxu0 0
      %1079 = vmatprep.subr.bf16.mxu0 0
      %1080 = vmatpush1.bf16.msra.mxu0 0
      %1081 = vmatprep.subr.bf16.mxu0 0
      %1082 = vmatpush1.bf16.msra.mxu0 0
      %1083 = vmatprep.subr.bf16.mxu0 0
      %1084 = vmatpush1.bf16.msra.mxu0 0
      %1085 = vmatprep.subr.bf16.mxu0 0
      %1086 = vmatpush1.bf16.msra.mxu0 0
      %1087 = vmatprep.mubr.bf16.mxu0 0
      %1088 = vmatmul.mubr.bf16.gmra.mrb[0].mxu0 %v999
      %v1089 = vpop.f32.mrb[0].mxu0
      %v1090 = vadd.f32 0.0, %v1089
      %v1091 = vpop.f32.mrb[0].mxu0
      %v1092 = vpop.f32.mrb[0].mxu0
      %v1093 = vadd.f32 0.0, %v1092
      %v1094 = vpop.f32.mrb[0].mxu0
      %1095 = vmatprep.mubr.bf16.mxu0 0
      %1096 = vmatmul.mubr.bf16.gmra.mrb[0].mxu0 %v1000
      %v1097 = vpop.f32.mrb[0].mxu0
      %v1098 = vadd.f32 0.0, %v1097
      %v1099 = vpop.f32.mrb[0].mxu0
      %v1100 = vpop.f32.mrb[0].mxu0
      %v1101 = vadd.f32 0.0, %v1100
      %v1102 = vpop.f32.mrb[0].mxu0
      %1103 = vmatprep.mubr.bf16.mxu0 0
      %1104 = vmatmul.mubr.bf16.gmra.mrb[0].mxu0 %v1001
      %v1105 = vpop.f32.mrb[0].mxu0
      %v1106 = vadd.f32 0.0, %v1105
      %v1107 = vpop.f32.mrb[0].mxu0
      %v1108 = vpop.f32.mrb[0].mxu0
      %v1109 = vadd.f32 0.0, %v1108
      %v1110 = vpop.f32.mrb[0].mxu0
      %1111 = vmatprep.mubr.bf16.mxu0 0
      %1112 = vmatmul.mubr.bf16.gmra.mrb[0].mxu0 %v1002
      %v1113 = vpop.f32.mrb[0].mxu0
      %v1114 = vadd.f32 0.0, %v1113
      %v1115 = vpop.f32.mrb[0].mxu0
      %v1116 = vpop.f32.mrb[0].mxu0
      %v1117 = vadd.f32 0.0, %v1116
      %v1118 = vpop.f32.mrb[0].mxu0
      %1119 = vdwg.mxu0
      %v1120 = vadd.f32 %v949, %v1090
      %v1121 = vadd.f32 %v950, %v1093
      %v1122 = vadd.f32 %v951, %v1098
      %v1123 = vadd.f32 %v952, %v1101
      %v1124 = vadd.f32 %v953, %v1106
      %v1125 = vadd.f32 %v954, %v1109
      %v1126 = vadd.f32 %v955, %v1114
      %v1127 = vadd.f32 %v956, %v1117
      %v1128 = vld [vmem:[%s957] sm:$0xf]
      %v1129 = vld [vmem:[%s957 + $0x4] sm:$0x1]
      %v1130 = vld [vmem:[%s957 + $0x8] sm:$0xf]
      %v1131 = vld [vmem:[%s957 + $0xc] sm:$0x1]
      %v1132 = vld [vmem:[%s957 + $0x10] sm:$0xf]
      %v1133 = vld [vmem:[%s957 + $0x14] sm:$0x1]
      %v1134 = vld [vmem:[%s957 + $0x18] sm:$0xf]
      %v1135 = vld [vmem:[%s957 + $0x1c] sm:$0x1]
      %v1136 = vld [vmem:[%s957 + $0x20] sm:$0xf]
      %v1137 = vld [vmem:[%s957 + $0x24] sm:$0x1]
      %v1138 = vld [vmem:[%s957 + $0x28] sm:$0xf]
      %v1139 = vld [vmem:[%s957 + $0x2c] sm:$0x1]
      %v1140 = vld [vmem:[%s957 + $0x30] sm:$0xf]
      %v1141 = vld [vmem:[%s957 + $0x34] sm:$0x1]
      %v1142 = vld [vmem:[%s957 + $0x38] sm:$0xf]
      %v1143 = vld [vmem:[%s957 + $0x3c] sm:$0x1]
      %v1145 = vshrl.u32 %v1128, 16
      %v1147 = vrot.slane %v1145, 4
      %v1148 = vshll.u32 %v1128, 16
      %v1150 = vrot.slane %v1148, 5
      %v1151 = vor.u32 %v1147, %v1150
      %v1152 = vrot.slane %v1151, 4
      %v1154 = vshll.u32 %v1129, 16
      %v1156 = vrot.slane %v1154, 5
      %v1157 = vsel %vm348, %v1152, %v1156
      %v1159 = vshrl.u32 %v1130, 16
      %v1161 = vrot.slane %v1159, 4
      %v1162 = vshll.u32 %v1130, 16
      %v1164 = vrot.slane %v1162, 5
      %v1165 = vor.u32 %v1161, %v1164
      %v1166 = vrot.slane %v1165, 4
      %v1168 = vshll.u32 %v1131, 16
      %v1170 = vrot.slane %v1168, 5
      %v1171 = vsel %vm348, %v1166, %v1170
      %v1173 = vshrl.u32 %v1132, 16
      %v1175 = vrot.slane %v1173, 4
      %v1176 = vshll.u32 %v1132, 16
      %v1178 = vrot.slane %v1176, 5
      %v1179 = vor.u32 %v1175, %v1178
      %v1180 = vrot.slane %v1179, 4
      %v1182 = vshll.u32 %v1133, 16
      %v1184 = vrot.slane %v1182, 5
      %v1185 = vsel %vm348, %v1180, %v1184
      %v1187 = vshrl.u32 %v1134, 16
      %v1189 = vrot.slane %v1187, 4
      %v1190 = vshll.u32 %v1134, 16
      %v1192 = vrot.slane %v1190, 5
      %v1193 = vor.u32 %v1189, %v1192
      %v1194 = vrot.slane %v1193, 4
      %v1196 = vshll.u32 %v1135, 16
      %v1198 = vrot.slane %v1196, 5
      %v1199 = vsel %vm348, %v1194, %v1198
      %v1201 = vshrl.u32 %v1136, 16
      %v1203 = vrot.slane %v1201, 4
      %v1204 = vshll.u32 %v1136, 16
      %v1206 = vrot.slane %v1204, 5
      %v1207 = vor.u32 %v1203, %v1206
      %v1208 = vrot.slane %v1207, 4
      %v1210 = vshll.u32 %v1137, 16
      %v1212 = vrot.slane %v1210, 5
      %v1213 = vsel %vm348, %v1208, %v1212
      %v1215 = vshrl.u32 %v1138, 16
      %v1217 = vrot.slane %v1215, 4
      %v1218 = vshll.u32 %v1138, 16
      %v1220 = vrot.slane %v1218, 5
      %v1221 = vor.u32 %v1217, %v1220
      %v1222 = vrot.slane %v1221, 4
      %v1224 = vshll.u32 %v1139, 16
      %v1226 = vrot.slane %v1224, 5
      %v1227 = vsel %vm348, %v1222, %v1226
      %v1229 = vshrl.u32 %v1140, 16
      %v1231 = vrot.slane %v1229, 4
      %v1232 = vshll.u32 %v1140, 16
      %v1234 = vrot.slane %v1232, 5
      %v1235 = vor.u32 %v1231, %v1234
      %v1236 = vrot.slane %v1235, 4
      %v1238 = vshll.u32 %v1141, 16
      %v1240 = vrot.slane %v1238, 5
      %v1241 = vsel %vm348, %v1236, %v1240
      %v1243 = vshrl.u32 %v1142, 16
      %v1245 = vrot.slane %v1243, 4
      %v1246 = vshll.u32 %v1142, 16
      %v1248 = vrot.slane %v1246, 5
      %v1249 = vor.u32 %v1245, %v1248
      %v1250 = vrot.slane %v1249, 4
      %v1252 = vshll.u32 %v1143, 16
      %v1254 = vrot.slane %v1252, 5
      %v1255 = vsel %vm348, %v1250, %v1254
      %s1256 = scalar_lea.vmem %s292, 256
      %v1257 = vld [vmem:[%s1256] sm:$0xf]
      %v1258 = vld [vmem:[%s1256 + $0x4] sm:$0xf]
      %v1259 = vld [vmem:[%s1256 + $0x8] sm:$0xf]
      %v1260 = vld [vmem:[%s1256 + $0xc] sm:$0xf]
      %v1261 = vld [vmem:[%s1256 + $0x10] sm:$0xf]
      %v1262 = vld [vmem:[%s1256 + $0x14] sm:$0xf]
      %v1263 = vld [vmem:[%s1256 + $0x18] sm:$0xf]
      %v1264 = vld [vmem:[%s1256 + $0x1c] sm:$0xf]
      %v1265 = vld [vmem:[%s1256 + $0x20] sm:$0xf]
      %v1266 = vld [vmem:[%s1256 + $0x24] sm:$0xf]
      %v1267 = vld [vmem:[%s1256 + $0x28] sm:$0xf]
      %v1268 = vld [vmem:[%s1256 + $0x2c] sm:$0xf]
      %v1269 = vld [vmem:[%s1256 + $0x30] sm:$0xf]
      %v1270 = vld [vmem:[%s1256 + $0x34] sm:$0xf]
      %v1271 = vld [vmem:[%s1256 + $0x38] sm:$0xf]
      %v1272 = vld [vmem:[%s1256 + $0x3c] sm:$0xf]
      %v1273 = vunpack.c.l.b16 %v1157
      %v1274 = vunpack.c.l.b16 %v1171
      %v1275 = vunpack.c.l.b16 %v1185
      %v1276 = vunpack.c.l.b16 %v1199
      %v1277 = vunpack.c.l.b16 %v1213
      %v1278 = vunpack.c.l.b16 %v1227
      %v1279 = vunpack.c.l.b16 %v1241
      %v1280 = vunpack.c.l.b16 %v1255
      %v1281 = vpack.c.b16 %v1274, %v1273
      %v1282 = vpack.c.b16 %v1276, %v1275
      %v1283 = vpack.c.b16 %v1278, %v1277
      %v1284 = vpack.c.b16 %v1280, %v1279
      %v1305 = vunpack.c.l.b16 %v1257
      %v1306 = vunpack.c.l.b16 %v1258
      %v1307 = vunpack.c.l.b16 %v1259
      %v1308 = vunpack.c.l.b16 %v1260
      %v1309 = vunpack.c.l.b16 %v1261
      %v1310 = vunpack.c.l.b16 %v1262
      %v1311 = vunpack.c.l.b16 %v1263
      %v1312 = vunpack.c.l.b16 %v1264
      %v1313 = vunpack.c.l.b16 %v1265
      %v1314 = vunpack.c.l.b16 %v1266
      %v1315 = vunpack.c.l.b16 %v1267
      %v1316 = vunpack.c.l.b16 %v1268
      %v1317 = vunpack.c.l.b16 %v1269
      %v1318 = vunpack.c.l.b16 %v1270
      %v1319 = vunpack.c.l.b16 %v1271
      %v1320 = vunpack.c.l.b16 %v1272
      %v1321 = vpack.c.b16 %v1306, %v1305
      %v1322 = vpack.c.b16 %v1308, %v1307
      %v1323 = vpack.c.b16 %v1310, %v1309
      %v1324 = vpack.c.b16 %v1312, %v1311
      %v1325 = vpack.c.b16 %v1314, %v1313
      %v1326 = vpack.c.b16 %v1316, %v1315
      %v1327 = vpack.c.b16 %v1318, %v1317
      %v1328 = vpack.c.b16 %v1320, %v1319
      %1337 = vmatprep.subr.bf16.mxu0 0
      %1338 = vmatpush1.bf16.msra.mxu0 %v1321
      %1339 = vmatprep.subr.bf16.mxu0 0
      %1340 = vmatpush1.bf16.msra.mxu0 %v1322
      %1341 = vmatprep.subr.bf16.mxu0 0
      %1342 = vmatpush1.bf16.msra.mxu0 %v1323
      %1343 = vmatprep.subr.bf16.mxu0 0
      %1344 = vmatpush1.bf16.msra.mxu0 %v1324
      %1345 = vmatprep.subr.bf16.mxu0 0
      %1346 = vmatpush1.bf16.msra.mxu0 %v1325
      %1347 = vmatprep.subr.bf16.mxu0 0
      %1348 = vmatpush1.bf16.msra.mxu0 %v1326
      %1349 = vmatprep.subr.bf16.mxu0 0
      %1350 = vmatpush1.bf16.msra.mxu0 %v1327
      %1351 = vmatprep.subr.bf16.mxu0 0
      %1352 = vmatpush1.bf16.msra.mxu0 %v1328
      %1353 = vmatprep.subr.bf16.mxu0 0
      %1354 = vmatpush1.bf16.msra.mxu0 0
      %1355 = vmatprep.subr.bf16.mxu0 0
      %1356 = vmatpush1.bf16.msra.mxu0 0
      %1357 = vmatprep.subr.bf16.mxu0 0
      %1358 = vmatpush1.bf16.msra.mxu0 0
      %1359 = vmatprep.subr.bf16.mxu0 0
      %1360 = vmatpush1.bf16.msra.mxu0 0
      %1361 = vmatprep.subr.bf16.mxu0 0
      %1362 = vmatpush1.bf16.msra.mxu0 0
      %1363 = vmatprep.subr.bf16.mxu0 0
      %1364 = vmatpush1.bf16.msra.mxu0 0
      %1365 = vmatprep.subr.bf16.mxu0 0
      %1366 = vmatpush1.bf16.msra.mxu0 0
      %1367 = vmatprep.subr.bf16.mxu0 0
      %1368 = vmatpush1.bf16.msra.mxu0 0
      %1369 = vmatprep.mubr.bf16.mxu0 0
      %1370 = vmatmul.mubr.bf16.gmra.mrb[0].mxu0 %v1281
      %v1371 = vpop.f32.mrb[0].mxu0
      %v1372 = vadd.f32 0.0, %v1371
      %v1373 = vpop.f32.mrb[0].mxu0
      %v1374 = vpop.f32.mrb[0].mxu0
      %v1375 = vadd.f32 0.0, %v1374
      %v1376 = vpop.f32.mrb[0].mxu0
      %1377 = vmatprep.mubr.bf16.mxu0 0
      %1378 = vmatmul.mubr.bf16.gmra.mrb[0].mxu0 %v1282
      %v1379 = vpop.f32.mrb[0].mxu0
      %v1380 = vadd.f32 0.0, %v1379
      %v1381 = vpop.f32.mrb[0].mxu0
      %v1382 = vpop.f32.mrb[0].mxu0
      %v1383 = vadd.f32 0.0, %v1382
      %v1384 = vpop.f32.mrb[0].mxu0
      %1385 = vmatprep.mubr.bf16.mxu0 0
      %1386 = vmatmul.mubr.bf16.gmra.mrb[0].mxu0 %v1283
      %v1387 = vpop.f32.mrb[0].mxu0
      %v1388 = vadd.f32 0.0, %v1387
      %v1389 = vpop.f32.mrb[0].mxu0
      %v1390 = vpop.f32.mrb[0].mxu0
      %v1391 = vadd.f32 0.0, %v1390
      %v1392 = vpop.f32.mrb[0].mxu0
      %1393 = vmatprep.mubr.bf16.mxu0 0
      %1394 = vmatmul.mubr.bf16.gmra.mrb[0].mxu0 %v1284
      %v1395 = vpop.f32.mrb[0].mxu0
      %v1396 = vadd.f32 0.0, %v1395
      %v1397 = vpop.f32.mrb[0].mxu0
      %v1398 = vpop.f32.mrb[0].mxu0
      %v1399 = vadd.f32 0.0, %v1398
      %v1400 = vpop.f32.mrb[0].mxu0
      %1401 = vdwg.mxu0
      %v1402 = vadd.f32 %v1120, %v1372
      %v1403 = vadd.f32 %v1121, %v1375
      %v1404 = vadd.f32 %v1122, %v1380
      %v1405 = vadd.f32 %v1123, %v1383
      %v1406 = vadd.f32 %v1124, %v1388
      %v1407 = vadd.f32 %v1125, %v1391
      %v1408 = vadd.f32 %v1126, %v1396
      %v1409 = vadd.f32 %v1127, %v1399
      %v1410 = vld [vmem:[%s957] sm:$0xe]
      %v1411 = vld [vmem:[%s957 + $0x8] sm:$0xe]
      %v1412 = vld [vmem:[%s957 + $0x10] sm:$0xe]
      %v1413 = vld [vmem:[%s957 + $0x18] sm:$0xe]
      %v1414 = vld [vmem:[%s957 + $0x20] sm:$0xe]
      %v1415 = vld [vmem:[%s957 + $0x28] sm:$0xe]
      %v1416 = vld [vmem:[%s957 + $0x30] sm:$0xe]
      %v1417 = vld [vmem:[%s957 + $0x38] sm:$0xe]
      %v1434 = vrot.slane %v1410, 5
      %v1435 = vrot.slane %v1434, 4
      %v1436 = vrot.slane %v1129, 5
      %v1437 = vsel %vm770, %v1435, %v1436
      %v1438 = vrot.slane %v1411, 5
      %v1439 = vrot.slane %v1438, 4
      %v1440 = vrot.slane %v1131, 5
      %v1441 = vsel %vm770, %v1439, %v1440
      %v1442 = vrot.slane %v1412, 5
      %v1443 = vrot.slane %v1442, 4
      %v1444 = vrot.slane %v1133, 5
      %v1445 = vsel %vm770, %v1443, %v1444
      %v1446 = vrot.slane %v1413, 5
      %v1447 = vrot.slane %v1446, 4
      %v1448 = vrot.slane %v1135, 5
      %v1449 = vsel %vm770, %v1447, %v1448
      %v1450 = vrot.slane %v1414, 5
      %v1451 = vrot.slane %v1450, 4
      %v1452 = vrot.slane %v1137, 5
      %v1453 = vsel %vm770, %v1451, %v1452
      %v1454 = vrot.slane %v1415, 5
      %v1455 = vrot.slane %v1454, 4
      %v1456 = vrot.slane %v1139, 5
      %v1457 = vsel %vm770, %v1455, %v1456
      %v1458 = vrot.slane %v1416, 5
      %v1459 = vrot.slane %v1458, 4
      %v1460 = vrot.slane %v1141, 5
      %v1461 = vsel %vm770, %v1459, %v1460
      %v1462 = vrot.slane %v1417, 5
      %v1463 = vrot.slane %v1462, 4
      %v1464 = vrot.slane %v1143, 5
      %v1465 = vsel %vm770, %v1463, %v1464
      %s1466 = scalar_lea.vmem %s292, 320
      %v1467 = vld [vmem:[%s1466] sm:$0xf]
      %v1468 = vld [vmem:[%s1466 + $0x4] sm:$0xf]
      %v1469 = vld [vmem:[%s1466 + $0x8] sm:$0xf]
      %v1470 = vld [vmem:[%s1466 + $0xc] sm:$0xf]
      %v1471 = vld [vmem:[%s1466 + $0x10] sm:$0xf]
      %v1472 = vld [vmem:[%s1466 + $0x14] sm:$0xf]
      %v1473 = vld [vmem:[%s1466 + $0x18] sm:$0xf]
      %v1474 = vld [vmem:[%s1466 + $0x1c] sm:$0xf]
      %v1475 = vld [vmem:[%s1466 + $0x20] sm:$0xf]
      %v1476 = vld [vmem:[%s1466 + $0x24] sm:$0xf]
      %v1477 = vld [vmem:[%s1466 + $0x28] sm:$0xf]
      %v1478 = vld [vmem:[%s1466 + $0x2c] sm:$0xf]
      %v1479 = vld [vmem:[%s1466 + $0x30] sm:$0xf]
      %v1480 = vld [vmem:[%s1466 + $0x34] sm:$0xf]
      %v1481 = vld [vmem:[%s1466 + $0x38] sm:$0xf]
      %v1482 = vld [vmem:[%s1466 + $0x3c] sm:$0xf]
      %v1483 = vunpack.c.l.b16 %v1437
      %v1484 = vunpack.c.l.b16 %v1441
      %v1485 = vunpack.c.l.b16 %v1445
      %v1486 = vunpack.c.l.b16 %v1449
      %v1487 = vunpack.c.l.b16 %v1453
      %v1488 = vunpack.c.l.b16 %v1457
      %v1489 = vunpack.c.l.b16 %v1461
      %v1490 = vunpack.c.l.b16 %v1465
      %v1491 = vpack.c.b16 %v1484, %v1483
      %v1492 = vpack.c.b16 %v1486, %v1485
      %v1493 = vpack.c.b16 %v1488, %v1487
      %v1494 = vpack.c.b16 %v1490, %v1489
      %v1515 = vunpack.c.l.b16 %v1467
      %v1516 = vunpack.c.l.b16 %v1468
      %v1517 = vunpack.c.l.b16 %v1469
      %v1518 = vunpack.c.l.b16 %v1470
      %v1519 = vunpack.c.l.b16 %v1471
      %v1520 = vunpack.c.l.b16 %v1472
      %v1521 = vunpack.c.l.b16 %v1473
      %v1522 = vunpack.c.l.b16 %v1474
      %v1523 = vunpack.c.l.b16 %v1475
      %v1524 = vunpack.c.l.b16 %v1476
      %v1525 = vunpack.c.l.b16 %v1477
      %v1526 = vunpack.c.l.b16 %v1478
      %v1527 = vunpack.c.l.b16 %v1479
      %v1528 = vunpack.c.l.b16 %v1480
      %v1529 = vunpack.c.l.b16 %v1481
      %v1530 = vunpack.c.l.b16 %v1482
      %v1531 = vpack.c.b16 %v1516, %v1515
      %v1532 = vpack.c.b16 %v1518, %v1517
      %v1533 = vpack.c.b16 %v1520, %v1519
      %v1534 = vpack.c.b16 %v1522, %v1521
      %v1535 = vpack.c.b16 %v1524, %v1523
      %v1536 = vpack.c.b16 %v1526, %v1525
      %v1537 = vpack.c.b16 %v1528, %v1527
      %v1538 = vpack.c.b16 %v1530, %v1529
      %1547 = vmatprep.subr.bf16.mxu0 0
      %1548 = vmatpush1.bf16.msra.mxu0 %v1531
      %1549 = vmatprep.subr.bf16.mxu0 0
      %1550 = vmatpush1.bf16.msra.mxu0 %v1532
      %1551 = vmatprep.subr.bf16.mxu0 0
      %1552 = vmatpush1.bf16.msra.mxu0 %v1533
      %1553 = vmatprep.subr.bf16.mxu0 0
      %1554 = vmatpush1.bf16.msra.mxu0 %v1534
      %1555 = vmatprep.subr.bf16.mxu0 0
      %1556 = vmatpush1.bf16.msra.mxu0 %v1535
      %1557 = vmatprep.subr.bf16.mxu0 0
      %1558 = vmatpush1.bf16.msra.mxu0 %v1536
      %1559 = vmatprep.subr.bf16.mxu0 0
      %1560 = vmatpush1.bf16.msra.mxu0 %v1537
      %1561 = vmatprep.subr.bf16.mxu0 0
      %1562 = vmatpush1.bf16.msra.mxu0 %v1538
      %1563 = vmatprep.subr.bf16.mxu0 0
      %1564 = vmatpush1.bf16.msra.mxu0 0
      %1565 = vmatprep.subr.bf16.mxu0 0
      %1566 = vmatpush1.bf16.msra.mxu0 0
      %1567 = vmatprep.subr.bf16.mxu0 0
      %1568 = vmatpush1.bf16.msra.mxu0 0
      %1569 = vmatprep.subr.bf16.mxu0 0
      %1570 = vmatpush1.bf16.msra.mxu0 0
      %1571 = vmatprep.subr.bf16.mxu0 0
      %1572 = vmatpush1.bf16.msra.mxu0 0
      %1573 = vmatprep.subr.bf16.mxu0 0
      %1574 = vmatpush1.bf16.msra.mxu0 0
      %1575 = vmatprep.subr.bf16.mxu0 0
      %1576 = vmatpush1.bf16.msra.mxu0 0
      %1577 = vmatprep.subr.bf16.mxu0 0
      %1578 = vmatpush1.bf16.msra.mxu0 0
      %1579 = vmatprep.mubr.bf16.mxu0 0
      %1580 = vmatmul.mubr.bf16.gmra.mrb[0].mxu0 %v1491
      %v1581 = vpop.f32.mrb[0].mxu0
      %v1582 = vadd.f32 0.0, %v1581
      %v1583 = vpop.f32.mrb[0].mxu0
      %v1584 = vpop.f32.mrb[0].mxu0
      %v1585 = vadd.f32 0.0, %v1584
      %v1586 = vpop.f32.mrb[0].mxu0
      %1587 = vmatprep.mubr.bf16.mxu0 0
      %1588 = vmatmul.mubr.bf16.gmra.mrb[0].mxu0 %v1492
      %v1589 = vpop.f32.mrb[0].mxu0
      %v1590 = vadd.f32 0.0, %v1589
      %v1591 = vpop.f32.mrb[0].mxu0
      %v1592 = vpop.f32.mrb[0].mxu0
      %v1593 = vadd.f32 0.0, %v1592
      %v1594 = vpop.f32.mrb[0].mxu0
      %1595 = vmatprep.mubr.bf16.mxu0 0
      %1596 = vmatmul.mubr.bf16.gmra.mrb[0].mxu0 %v1493
      %v1597 = vpop.f32.mrb[0].mxu0
      %v1598 = vadd.f32 0.0, %v1597
      %v1599 = vpop.f32.mrb[0].mxu0
      %v1600 = vpop.f32.mrb[0].mxu0
      %v1601 = vadd.f32 0.0, %v1600
      %v1602 = vpop.f32.mrb[0].mxu0
      %1603 = vmatprep.mubr.bf16.mxu0 0
      %1604 = vmatmul.mubr.bf16.gmra.mrb[0].mxu0 %v1494
      %v1605 = vpop.f32.mrb[0].mxu0
      %v1606 = vadd.f32 0.0, %v1605
      %v1607 = vpop.f32.mrb[0].mxu0
      %v1608 = vpop.f32.mrb[0].mxu0
      %v1609 = vadd.f32 0.0, %v1608
      %v1610 = vpop.f32.mrb[0].mxu0
      %1611 = vdwg.mxu0
      %v1612 = vadd.f32 %v1402, %v1582
      %v1613 = vadd.f32 %v1403, %v1585
      %v1614 = vadd.f32 %v1404, %v1590
      %v1615 = vadd.f32 %v1405, %v1593
      %v1616 = vadd.f32 %v1406, %v1598
      %v1617 = vadd.f32 %v1407, %v1601
      %v1618 = vadd.f32 %v1408, %v1606
      %v1619 = vadd.f32 %v1409, %v1609
      %s1620 = scalar_lea.vmem %s288, 16
      %v1621 = vld [vmem:[%s1620] sm:$0xf]
      %v1622 = vld [vmem:[%s1620 + $0x8] sm:$0xf]
      %v1623 = vld [vmem:[%s1620 + $0x10] sm:$0xf]
      %v1624 = vld [vmem:[%s1620 + $0x18] sm:$0xf]
      %v1625 = vld [vmem:[%s1620 + $0x20] sm:$0xf]
      %v1626 = vld [vmem:[%s1620 + $0x28] sm:$0xf]
      %v1627 = vld [vmem:[%s1620 + $0x30] sm:$0xf]
      %v1628 = vld [vmem:[%s1620 + $0x38] sm:$0xf]
      %s1629 = scalar_lea.vmem %s292, 384
      %v1630 = vld [vmem:[%s1629] sm:$0xf]
      %v1631 = vld [vmem:[%s1629 + $0x4] sm:$0xf]
      %v1632 = vld [vmem:[%s1629 + $0x8] sm:$0xf]
      %v1633 = vld [vmem:[%s1629 + $0xc] sm:$0xf]
      %v1634 = vld [vmem:[%s1629 + $0x10] sm:$0xf]
      %v1635 = vld [vmem:[%s1629 + $0x14] sm:$0xf]
      %v1636 = vld [vmem:[%s1629 + $0x18] sm:$0xf]
      %v1637 = vld [vmem:[%s1629 + $0x1c] sm:$0xf]
      %v1638 = vld [vmem:[%s1629 + $0x20] sm:$0xf]
      %v1639 = vld [vmem:[%s1629 + $0x24] sm:$0xf]
      %v1640 = vld [vmem:[%s1629 + $0x28] sm:$0xf]
      %v1641 = vld [vmem:[%s1629 + $0x2c] sm:$0xf]
      %v1642 = vld [vmem:[%s1629 + $0x30] sm:$0xf]
      %v1643 = vld [vmem:[%s1629 + $0x34] sm:$0xf]
      %v1644 = vld [vmem:[%s1629 + $0x38] sm:$0xf]
      %v1645 = vld [vmem:[%s1629 + $0x3c] sm:$0xf]
      %v1654 = vunpack.c.l.b16 %v1621
      %v1655 = vunpack.c.l.b16 %v1622
      %v1656 = vunpack.c.l.b16 %v1623
      %v1657 = vunpack.c.l.b16 %v1624
      %v1658 = vunpack.c.l.b16 %v1625
      %v1659 = vunpack.c.l.b16 %v1626
      %v1660 = vunpack.c.l.b16 %v1627
      %v1661 = vunpack.c.l.b16 %v1628
      %v1662 = vpack.c.b16 %v1655, %v1654
      %v1663 = vpack.c.b16 %v1657, %v1656
      %v1664 = vpack.c.b16 %v1659, %v1658
      %v1665 = vpack.c.b16 %v1661, %v1660
      %v1686 = vunpack.c.l.b16 %v1630
      %v1687 = vunpack.c.l.b16 %v1631
      %v1688 = vunpack.c.l.b16 %v1632
      %v1689 = vunpack.c.l.b16 %v1633
      %v1690 = vunpack.c.l.b16 %v1634
      %v1691 = vunpack.c.l.b16 %v1635
      %v1692 = vunpack.c.l.b16 %v1636
      %v1693 = vunpack.c.l.b16 %v1637
      %v1694 = vunpack.c.l.b16 %v1638
      %v1695 = vunpack.c.l.b16 %v1639
      %v1696 = vunpack.c.l.b16 %v1640
      %v1697 = vunpack.c.l.b16 %v1641
      %v1698 = vunpack.c.l.b16 %v1642
      %v1699 = vunpack.c.l.b16 %v1643
      %v1700 = vunpack.c.l.b16 %v1644
      %v1701 = vunpack.c.l.b16 %v1645
      %v1702 = vpack.c.b16 %v1687, %v1686
      %v1703 = vpack.c.b16 %v1689, %v1688
      %v1704 = vpack.c.b16 %v1691, %v1690
      %v1705 = vpack.c.b16 %v1693, %v1692
      %v1706 = vpack.c.b16 %v1695, %v1694
      %v1707 = vpack.c.b16 %v1697, %v1696
      %v1708 = vpack.c.b16 %v1699, %v1698
      %v1709 = vpack.c.b16 %v1701, %v1700
      %1718 = vmatprep.subr.bf16.mxu0 0
      %1719 = vmatpush1.bf16.msra.mxu0 %v1702
      %1720 = vmatprep.subr.bf16.mxu0 0
      %1721 = vmatpush1.bf16.msra.mxu0 %v1703
      %1722 = vmatprep.subr.bf16.mxu0 0
      %1723 = vmatpush1.bf16.msra.mxu0 %v1704
      %1724 = vmatprep.subr.bf16.mxu0 0
      %1725 = vmatpush1.bf16.msra.mxu0 %v1705
      %1726 = vmatprep.subr.bf16.mxu0 0
      %1727 = vmatpush1.bf16.msra.mxu0 %v1706
      %1728 = vmatprep.subr.bf16.mxu0 0
      %1729 = vmatpush1.bf16.msra.mxu0 %v1707
      %1730 = vmatprep.subr.bf16.mxu0 0
      %1731 = vmatpush1.bf16.msra.mxu0 %v1708
      %1732 = vmatprep.subr.bf16.mxu0 0
      %1733 = vmatpush1.bf16.msra.mxu0 %v1709
      %1734 = vmatprep.subr.bf16.mxu0 0
      %1735 = vmatpush1.bf16.msra.mxu0 0
      %1736 = vmatprep.subr.bf16.mxu0 0
      %1737 = vmatpush1.bf16.msra.mxu0 0
      %1738 = vmatprep.subr.bf16.mxu0 0
      %1739 = vmatpush1.bf16.msra.mxu0 0
      %1740 = vmatprep.subr.bf16.mxu0 0
      %1741 = vmatpush1.bf16.msra.mxu0 0
      %1742 = vmatprep.subr.bf16.mxu0 0
      %1743 = vmatpush1.bf16.msra.mxu0 0
      %1744 = vmatprep.subr.bf16.mxu0 0
      %1745 = vmatpush1.bf16.msra.mxu0 0
      %1746 = vmatprep.subr.bf16.mxu0 0
      %1747 = vmatpush1.bf16.msra.mxu0 0
      %1748 = vmatprep.subr.bf16.mxu0 0
      %1749 = vmatpush1.bf16.msra.mxu0 0
      %1750 = vmatprep.mubr.bf16.mxu0 0
      %1751 = vmatmul.mubr.bf16.gmra.mrb[0].mxu0 %v1662
      %v1752 = vpop.f32.mrb[0].mxu0
      %v1753 = vadd.f32 0.0, %v1752
      %v1754 = vpop.f32.mrb[0].mxu0
      %v1755 = vpop.f32.mrb[0].mxu0
      %v1756 = vadd.f32 0.0, %v1755
      %v1757 = vpop.f32.mrb[0].mxu0
      %1758 = vmatprep.mubr.bf16.mxu0 0
      %1759 = vmatmul.mubr.bf16.gmra.mrb[0].mxu0 %v1663
      %v1760 = vpop.f32.mrb[0].mxu0
      %v1761 = vadd.f32 0.0, %v1760
      %v1762 = vpop.f32.mrb[0].mxu0
      %v1763 = vpop.f32.mrb[0].mxu0
      %v1764 = vadd.f32 0.0, %v1763
      %v1765 = vpop.f32.mrb[0].mxu0
      %1766 = vmatprep.mubr.bf16.mxu0 0
      %1767 = vmatmul.mubr.bf16.gmra.mrb[0].mxu0 %v1664
      %v1768 = vpop.f32.mrb[0].mxu0
      %v1769 = vadd.f32 0.0, %v1768
      %v1770 = vpop.f32.mrb[0].mxu0
      %v1771 = vpop.f32.mrb[0].mxu0
      %v1772 = vadd.f32 0.0, %v1771
      %v1773 = vpop.f32.mrb[0].mxu0
      %1774 = vmatprep.mubr.bf16.mxu0 0
      %1775 = vmatmul.mubr.bf16.gmra.mrb[0].mxu0 %v1665
      %v1776 = vpop.f32.mrb[0].mxu0
      %v1777 = vadd.f32 0.0, %v1776
      %v1778 = vpop.f32.mrb[0].mxu0
      %v1779 = vpop.f32.mrb[0].mxu0
      %v1780 = vadd.f32 0.0, %v1779
      %v1781 = vpop.f32.mrb[0].mxu0
      %1782 = vdwg.mxu0
      %v1783 = vadd.f32 %v1612, %v1753
      %v1784 = vadd.f32 %v1613, %v1756
      %v1785 = vadd.f32 %v1614, %v1761
      %v1786 = vadd.f32 %v1615, %v1764
      %v1787 = vadd.f32 %v1616, %v1769
      %v1788 = vadd.f32 %v1617, %v1772
      %v1789 = vadd.f32 %v1618, %v1777
      %v1790 = vadd.f32 %v1619, %v1780
      %v1791 = vld [vmem:[%s1620] sm:$0xf]
      %v1792 = vld [vmem:[%s1620 + $0x4] sm:$0x1]
      %v1793 = vld [vmem:[%s1620 + $0x8] sm:$0xf]
      %v1794 = vld [vmem:[%s1620 + $0xc] sm:$0x1]
      %v1795 = vld [vmem:[%s1620 + $0x10] sm:$0xf]
      %v1796 = vld [vmem:[%s1620 + $0x14] sm:$0x1]
      %v1797 = vld [vmem:[%s1620 + $0x18] sm:$0xf]
      %v1798 = vld [vmem:[%s1620 + $0x1c] sm:$0x1]
      %v1799 = vld [vmem:[%s1620 + $0x20] sm:$0xf]
      %v1800 = vld [vmem:[%s1620 + $0x24] sm:$0x1]
      %v1801 = vld [vmem:[%s1620 + $0x28] sm:$0xf]
      %v1802 = vld [vmem:[%s1620 + $0x2c] sm:$0x1]
      %v1803 = vld [vmem:[%s1620 + $0x30] sm:$0xf]
      %v1804 = vld [vmem:[%s1620 + $0x34] sm:$0x1]
      %v1805 = vld [vmem:[%s1620 + $0x38] sm:$0xf]
      %v1806 = vld [vmem:[%s1620 + $0x3c] sm:$0x1]
      %v1808 = vshrl.u32 %v1791, 16
      %v1810 = vrot.slane %v1808, 4
      %v1811 = vshll.u32 %v1791, 16
      %v1813 = vrot.slane %v1811, 5
      %v1814 = vor.u32 %v1810, %v1813
      %v1815 = vrot.slane %v1814, 4
      %v1817 = vshll.u32 %v1792, 16
      %v1819 = vrot.slane %v1817, 5
      %v1820 = vsel %vm348, %v1815, %v1819
      %v1822 = vshrl.u32 %v1793, 16
      %v1824 = vrot.slane %v1822, 4
      %v1825 = vshll.u32 %v1793, 16
      %v1827 = vrot.slane %v1825, 5
      %v1828 = vor.u32 %v1824, %v1827
      %v1829 = vrot.slane %v1828, 4
      %v1831 = vshll.u32 %v1794, 16
      %v1833 = vrot.slane %v1831, 5
      %v1834 = vsel %vm348, %v1829, %v1833
      %v1836 = vshrl.u32 %v1795, 16
      %v1838 = vrot.slane %v1836, 4
      %v1839 = vshll.u32 %v1795, 16
      %v1841 = vrot.slane %v1839, 5
      %v1842 = vor.u32 %v1838, %v1841
      %v1843 = vrot.slane %v1842, 4
      %v1845 = vshll.u32 %v1796, 16
      %v1847 = vrot.slane %v1845, 5
      %v1848 = vsel %vm348, %v1843, %v1847
      %v1850 = vshrl.u32 %v1797, 16
      %v1852 = vrot.slane %v1850, 4
      %v1853 = vshll.u32 %v1797, 16
      %v1855 = vrot.slane %v1853, 5
      %v1856 = vor.u32 %v1852, %v1855
      %v1857 = vrot.slane %v1856, 4
      %v1859 = vshll.u32 %v1798, 16
      %v1861 = vrot.slane %v1859, 5
      %v1862 = vsel %vm348, %v1857, %v1861
      %v1864 = vshrl.u32 %v1799, 16
      %v1866 = vrot.slane %v1864, 4
      %v1867 = vshll.u32 %v1799, 16
      %v1869 = vrot.slane %v1867, 5
      %v1870 = vor.u32 %v1866, %v1869
      %v1871 = vrot.slane %v1870, 4
      %v1873 = vshll.u32 %v1800, 16
      %v1875 = vrot.slane %v1873, 5
      %v1876 = vsel %vm348, %v1871, %v1875
      %v1878 = vshrl.u32 %v1801, 16
      %v1880 = vrot.slane %v1878, 4
      %v1881 = vshll.u32 %v1801, 16
      %v1883 = vrot.slane %v1881, 5
      %v1884 = vor.u32 %v1880, %v1883
      %v1885 = vrot.slane %v1884, 4
      %v1887 = vshll.u32 %v1802, 16
      %v1889 = vrot.slane %v1887, 5
      %v1890 = vsel %vm348, %v1885, %v1889
      %v1892 = vshrl.u32 %v1803, 16
      %v1894 = vrot.slane %v1892, 4
      %v1895 = vshll.u32 %v1803, 16
      %v1897 = vrot.slane %v1895, 5
      %v1898 = vor.u32 %v1894, %v1897
      %v1899 = vrot.slane %v1898, 4
      %v1901 = vshll.u32 %v1804, 16
      %v1903 = vrot.slane %v1901, 5
      %v1904 = vsel %vm348, %v1899, %v1903
      %v1906 = vshrl.u32 %v1805, 16
      %v1908 = vrot.slane %v1906, 4
      %v1909 = vshll.u32 %v1805, 16
      %v1911 = vrot.slane %v1909, 5
      %v1912 = vor.u32 %v1908, %v1911
      %v1913 = vrot.slane %v1912, 4
      %v1915 = vshll.u32 %v1806, 16
      %v1917 = vrot.slane %v1915, 5
      %v1918 = vsel %vm348, %v1913, %v1917
      %s1919 = scalar_lea.vmem %s292, 448
      %v1920 = vld [vmem:[%s1919] sm:$0xf]
      %v1921 = vld [vmem:[%s1919 + $0x4] sm:$0xf]
      %v1922 = vld [vmem:[%s1919 + $0x8] sm:$0xf]
      %v1923 = vld [vmem:[%s1919 + $0xc] sm:$0xf]
      %v1924 = vld [vmem:[%s1919 + $0x10] sm:$0xf]
      %v1925 = vld [vmem:[%s1919 + $0x14] sm:$0xf]
      %v1926 = vld [vmem:[%s1919 + $0x18] sm:$0xf]
      %v1927 = vld [vmem:[%s1919 + $0x1c] sm:$0xf]
      %v1928 = vld [vmem:[%s1919 + $0x20] sm:$0xf]
      %v1929 = vld [vmem:[%s1919 + $0x24] sm:$0xf]
      %v1930 = vld [vmem:[%s1919 + $0x28] sm:$0xf]
      %v1931 = vld [vmem:[%s1919 + $0x2c] sm:$0xf]
      %v1932 = vld [vmem:[%s1919 + $0x30] sm:$0xf]
      %v1933 = vld [vmem:[%s1919 + $0x34] sm:$0xf]
      %v1934 = vld [vmem:[%s1919 + $0x38] sm:$0xf]
      %v1935 = vld [vmem:[%s1919 + $0x3c] sm:$0xf]
      %v1936 = vunpack.c.l.b16 %v1820
      %v1937 = vunpack.c.l.b16 %v1834
      %v1938 = vunpack.c.l.b16 %v1848
      %v1939 = vunpack.c.l.b16 %v1862
      %v1940 = vunpack.c.l.b16 %v1876
      %v1941 = vunpack.c.l.b16 %v1890
      %v1942 = vunpack.c.l.b16 %v1904
      %v1943 = vunpack.c.l.b16 %v1918
      %v1944 = vpack.c.b16 %v1937, %v1936
      %v1945 = vpack.c.b16 %v1939, %v1938
      %v1946 = vpack.c.b16 %v1941, %v1940
      %v1947 = vpack.c.b16 %v1943, %v1942
      %v1968 = vunpack.c.l.b16 %v1920
      %v1969 = vunpack.c.l.b16 %v1921
      %v1970 = vunpack.c.l.b16 %v1922
      %v1971 = vunpack.c.l.b16 %v1923
      %v1972 = vunpack.c.l.b16 %v1924
      %v1973 = vunpack.c.l.b16 %v1925
      %v1974 = vunpack.c.l.b16 %v1926
      %v1975 = vunpack.c.l.b16 %v1927
      %v1976 = vunpack.c.l.b16 %v1928
      %v1977 = vunpack.c.l.b16 %v1929
      %v1978 = vunpack.c.l.b16 %v1930
      %v1979 = vunpack.c.l.b16 %v1931
      %v1980 = vunpack.c.l.b16 %v1932
      %v1981 = vunpack.c.l.b16 %v1933
      %v1982 = vunpack.c.l.b16 %v1934
      %v1983 = vunpack.c.l.b16 %v1935
      %v1984 = vpack.c.b16 %v1969, %v1968
      %v1985 = vpack.c.b16 %v1971, %v1970
      %v1986 = vpack.c.b16 %v1973, %v1972
      %v1987 = vpack.c.b16 %v1975, %v1974
      %v1988 = vpack.c.b16 %v1977, %v1976
      %v1989 = vpack.c.b16 %v1979, %v1978
      %v1990 = vpack.c.b16 %v1981, %v1980
      %v1991 = vpack.c.b16 %v1983, %v1982
      %2000 = vmatprep.subr.bf16.mxu0 0
      %2001 = vmatpush1.bf16.msra.mxu0 %v1984
      %2002 = vmatprep.subr.bf16.mxu0 0
      %2003 = vmatpush1.bf16.msra.mxu0 %v1985
      %2004 = vmatprep.subr.bf16.mxu0 0
      %2005 = vmatpush1.bf16.msra.mxu0 %v1986
      %2006 = vmatprep.subr.bf16.mxu0 0
      %2007 = vmatpush1.bf16.msra.mxu0 %v1987
      %2008 = vmatprep.subr.bf16.mxu0 0
      %2009 = vmatpush1.bf16.msra.mxu0 %v1988
      %2010 = vmatprep.subr.bf16.mxu0 0
      %2011 = vmatpush1.bf16.msra.mxu0 %v1989
      %2012 = vmatprep.subr.bf16.mxu0 0
      %2013 = vmatpush1.bf16.msra.mxu0 %v1990
      %2014 = vmatprep.subr.bf16.mxu0 0
      %2015 = vmatpush1.bf16.msra.mxu0 %v1991
      %2016 = vmatprep.subr.bf16.mxu0 0
      %2017 = vmatpush1.bf16.msra.mxu0 0
      %2018 = vmatprep.subr.bf16.mxu0 0
      %2019 = vmatpush1.bf16.msra.mxu0 0
      %2020 = vmatprep.subr.bf16.mxu0 0
      %2021 = vmatpush1.bf16.msra.mxu0 0
      %2022 = vmatprep.subr.bf16.mxu0 0
      %2023 = vmatpush1.bf16.msra.mxu0 0
      %2024 = vmatprep.subr.bf16.mxu0 0
      %2025 = vmatpush1.bf16.msra.mxu0 0
      %2026 = vmatprep.subr.bf16.mxu0 0
      %2027 = vmatpush1.bf16.msra.mxu0 0
      %2028 = vmatprep.subr.bf16.mxu0 0
      %2029 = vmatpush1.bf16.msra.mxu0 0
      %2030 = vmatprep.subr.bf16.mxu0 0
      %2031 = vmatpush1.bf16.msra.mxu0 0
      %2032 = vmatprep.mubr.bf16.mxu0 0
      %2033 = vmatmul.mubr.bf16.gmra.mrb[0].mxu0 %v1944
      %v2034 = vpop.f32.mrb[0].mxu0
      %v2035 = vadd.f32 0.0, %v2034
      %v2036 = vpop.f32.mrb[0].mxu0
      %v2037 = vpop.f32.mrb[0].mxu0
      %v2038 = vadd.f32 0.0, %v2037
      %v2039 = vpop.f32.mrb[0].mxu0
      %2040 = vmatprep.mubr.bf16.mxu0 0
      %2041 = vmatmul.mubr.bf16.gmra.mrb[0].mxu0 %v1945
      %v2042 = vpop.f32.mrb[0].mxu0
      %v2043 = vadd.f32 0.0, %v2042
      %v2044 = vpop.f32.mrb[0].mxu0
      %v2045 = vpop.f32.mrb[0].mxu0
      %v2046 = vadd.f32 0.0, %v2045
      %v2047 = vpop.f32.mrb[0].mxu0
      %2048 = vmatprep.mubr.bf16.mxu0 0
      %2049 = vmatmul.mubr.bf16.gmra.mrb[0].mxu0 %v1946
      %v2050 = vpop.f32.mrb[0].mxu0
      %v2051 = vadd.f32 0.0, %v2050
      %v2052 = vpop.f32.mrb[0].mxu0
      %v2053 = vpop.f32.mrb[0].mxu0
      %v2054 = vadd.f32 0.0, %v2053
      %v2055 = vpop.f32.mrb[0].mxu0
      %2056 = vmatprep.mubr.bf16.mxu0 0
      %2057 = vmatmul.mubr.bf16.gmra.mrb[0].mxu0 %v1947
      %v2058 = vpop.f32.mrb[0].mxu0
      %v2059 = vadd.f32 0.0, %v2058
      %v2060 = vpop.f32.mrb[0].mxu0
      %v2061 = vpop.f32.mrb[0].mxu0
      %v2062 = vadd.f32 0.0, %v2061
      %v2063 = vpop.f32.mrb[0].mxu0
      %2064 = vdwg.mxu0
      %v2065 = vadd.f32 %v1783, %v2035
      %v2066 = vadd.f32 %v1784, %v2038
      %v2067 = vadd.f32 %v1785, %v2043
      %v2068 = vadd.f32 %v1786, %v2046
      %v2069 = vadd.f32 %v1787, %v2051
      %v2070 = vadd.f32 %v1788, %v2054
      %v2071 = vadd.f32 %v1789, %v2059
      %v2072 = vadd.f32 %v1790, %v2062
      %v2073 = vld [vmem:[%s1620] sm:$0xe]
      %v2074 = vld [vmem:[%s1620 + $0x8] sm:$0xe]
      %v2075 = vld [vmem:[%s1620 + $0x10] sm:$0xe]
      %v2076 = vld [vmem:[%s1620 + $0x18] sm:$0xe]
      %v2077 = vld [vmem:[%s1620 + $0x20] sm:$0xe]
      %v2078 = vld [vmem:[%s1620 + $0x28] sm:$0xe]
      %v2079 = vld [vmem:[%s1620 + $0x30] sm:$0xe]
      %v2080 = vld [vmem:[%s1620 + $0x38] sm:$0xe]
      %v2097 = vrot.slane %v2073, 5
      %v2098 = vrot.slane %v2097, 4
      %v2099 = vrot.slane %v1792, 5
      %v2100 = vsel %vm770, %v2098, %v2099
      %v2101 = vrot.slane %v2074, 5
      %v2102 = vrot.slane %v2101, 4
      %v2103 = vrot.slane %v1794, 5
      %v2104 = vsel %vm770, %v2102, %v2103
      %v2105 = vrot.slane %v2075, 5
      %v2106 = vrot.slane %v2105, 4
      %v2107 = vrot.slane %v1796, 5
      %v2108 = vsel %vm770, %v2106, %v2107
      %v2109 = vrot.slane %v2076, 5
      %v2110 = vrot.slane %v2109, 4
      %v2111 = vrot.slane %v1798, 5
      %v2112 = vsel %vm770, %v2110, %v2111
      %v2113 = vrot.slane %v2077, 5
      %v2114 = vrot.slane %v2113, 4
      %v2115 = vrot.slane %v1800, 5
      %v2116 = vsel %vm770, %v2114, %v2115
      %v2117 = vrot.slane %v2078, 5
      %v2118 = vrot.slane %v2117, 4
      %v2119 = vrot.slane %v1802, 5
      %v2120 = vsel %vm770, %v2118, %v2119
      %v2121 = vrot.slane %v2079, 5
      %v2122 = vrot.slane %v2121, 4
      %v2123 = vrot.slane %v1804, 5
      %v2124 = vsel %vm770, %v2122, %v2123
      %v2125 = vrot.slane %v2080, 5
      %v2126 = vrot.slane %v2125, 4
      %v2127 = vrot.slane %v1806, 5
      %v2128 = vsel %vm770, %v2126, %v2127
      %s2129 = scalar_lea.vmem %s292, 512
      %v2130 = vld [vmem:[%s2129] sm:$0xf]
      %v2131 = vld [vmem:[%s2129 + $0x4] sm:$0xf]
      %v2132 = vld [vmem:[%s2129 + $0x8] sm:$0xf]
      %v2133 = vld [vmem:[%s2129 + $0xc] sm:$0xf]
      %v2134 = vld [vmem:[%s2129 + $0x10] sm:$0xf]
      %v2135 = vld [vmem:[%s2129 + $0x14] sm:$0xf]
      %v2136 = vld [vmem:[%s2129 + $0x18] sm:$0xf]
      %v2137 = vld [vmem:[%s2129 + $0x1c] sm:$0xf]
      %v2138 = vld [vmem:[%s2129 + $0x20] sm:$0xf]
      %v2139 = vld [vmem:[%s2129 + $0x24] sm:$0xf]
      %v2140 = vld [vmem:[%s2129 + $0x28] sm:$0xf]
      %v2141 = vld [vmem:[%s2129 + $0x2c] sm:$0xf]
      %v2142 = vld [vmem:[%s2129 + $0x30] sm:$0xf]
      %v2143 = vld [vmem:[%s2129 + $0x34] sm:$0xf]
      %v2144 = vld [vmem:[%s2129 + $0x38] sm:$0xf]
      %v2145 = vld [vmem:[%s2129 + $0x3c] sm:$0xf]
      %v2146 = vunpack.c.l.b16 %v2100
      %v2147 = vunpack.c.l.b16 %v2104
      %v2148 = vunpack.c.l.b16 %v2108
      %v2149 = vunpack.c.l.b16 %v2112
      %v2150 = vunpack.c.l.b16 %v2116
      %v2151 = vunpack.c.l.b16 %v2120
      %v2152 = vunpack.c.l.b16 %v2124
      %v2153 = vunpack.c.l.b16 %v2128
      %v2154 = vpack.c.b16 %v2147, %v2146
      %v2155 = vpack.c.b16 %v2149, %v2148
      %v2156 = vpack.c.b16 %v2151, %v2150
      %v2157 = vpack.c.b16 %v2153, %v2152
      %v2178 = vunpack.c.l.b16 %v2130
      %v2179 = vunpack.c.l.b16 %v2131
      %v2180 = vunpack.c.l.b16 %v2132
      %v2181 = vunpack.c.l.b16 %v2133
      %v2182 = vunpack.c.l.b16 %v2134
      %v2183 = vunpack.c.l.b16 %v2135
      %v2184 = vunpack.c.l.b16 %v2136
      %v2185 = vunpack.c.l.b16 %v2137
      %v2186 = vunpack.c.l.b16 %v2138
      %v2187 = vunpack.c.l.b16 %v2139
      %v2188 = vunpack.c.l.b16 %v2140
      %v2189 = vunpack.c.l.b16 %v2141
      %v2190 = vunpack.c.l.b16 %v2142
      %v2191 = vunpack.c.l.b16 %v2143
      %v2192 = vunpack.c.l.b16 %v2144
      %v2193 = vunpack.c.l.b16 %v2145
      %v2194 = vpack.c.b16 %v2179, %v2178
      %v2195 = vpack.c.b16 %v2181, %v2180
      %v2196 = vpack.c.b16 %v2183, %v2182
      %v2197 = vpack.c.b16 %v2185, %v2184
      %v2198 = vpack.c.b16 %v2187, %v2186
      %v2199 = vpack.c.b16 %v2189, %v2188
      %v2200 = vpack.c.b16 %v2191, %v2190
      %v2201 = vpack.c.b16 %v2193, %v2192
      %2210 = vmatprep.subr.bf16.mxu0 0
      %2211 = vmatpush1.bf16.msra.mxu0 %v2194
      %2212 = vmatprep.subr.bf16.mxu0 0
      %2213 = vmatpush1.bf16.msra.mxu0 %v2195
      %2214 = vmatprep.subr.bf16.mxu0 0
      %2215 = vmatpush1.bf16.msra.mxu0 %v2196
      %2216 = vmatprep.subr.bf16.mxu0 0
      %2217 = vmatpush1.bf16.msra.mxu0 %v2197
      %2218 = vmatprep.subr.bf16.mxu0 0
      %2219 = vmatpush1.bf16.msra.mxu0 %v2198
      %2220 = vmatprep.subr.bf16.mxu0 0
      %2221 = vmatpush1.bf16.msra.mxu0 %v2199
      %2222 = vmatprep.subr.bf16.mxu0 0
      %2223 = vmatpush1.bf16.msra.mxu0 %v2200
      %2224 = vmatprep.subr.bf16.mxu0 0
      %2225 = vmatpush1.bf16.msra.mxu0 %v2201
      %2226 = vmatprep.subr.bf16.mxu0 0
      %2227 = vmatpush1.bf16.msra.mxu0 0
      %2228 = vmatprep.subr.bf16.mxu0 0
      %2229 = vmatpush1.bf16.msra.mxu0 0
      %2230 = vmatprep.subr.bf16.mxu0 0
      %2231 = vmatpush1.bf16.msra.mxu0 0
      %2232 = vmatprep.subr.bf16.mxu0 0
      %2233 = vmatpush1.bf16.msra.mxu0 0
      %2234 = vmatprep.subr.bf16.mxu0 0
      %2235 = vmatpush1.bf16.msra.mxu0 0
      %2236 = vmatprep.subr.bf16.mxu0 0
      %2237 = vmatpush1.bf16.msra.mxu0 0
      %2238 = vmatprep.subr.bf16.mxu0 0
      %2239 = vmatpush1.bf16.msra.mxu0 0
      %2240 = vmatprep.subr.bf16.mxu0 0
      %2241 = vmatpush1.bf16.msra.mxu0 0
      %2242 = vmatprep.mubr.bf16.mxu0 0
      %2243 = vmatmul.mubr.bf16.gmra.mrb[0].mxu0 %v2154
      %v2244 = vpop.f32.mrb[0].mxu0
      %v2245 = vadd.f32 0.0, %v2244
      %v2246 = vpop.f32.mrb[0].mxu0
      %v2247 = vpop.f32.mrb[0].mxu0
      %v2248 = vadd.f32 0.0, %v2247
      %v2249 = vpop.f32.mrb[0].mxu0
      %2250 = vmatprep.mubr.bf16.mxu0 0
      %2251 = vmatmul.mubr.bf16.gmra.mrb[0].mxu0 %v2155
      %v2252 = vpop.f32.mrb[0].mxu0
      %v2253 = vadd.f32 0.0, %v2252
      %v2254 = vpop.f32.mrb[0].mxu0
      %v2255 = vpop.f32.mrb[0].mxu0
      %v2256 = vadd.f32 0.0, %v2255
      %v2257 = vpop.f32.mrb[0].mxu0
      %2258 = vmatprep.mubr.bf16.mxu0 0
      %2259 = vmatmul.mubr.bf16.gmra.mrb[0].mxu0 %v2156
      %v2260 = vpop.f32.mrb[0].mxu0
      %v2261 = vadd.f32 0.0, %v2260
      %v2262 = vpop.f32.mrb[0].mxu0
      %v2263 = vpop.f32.mrb[0].mxu0
      %v2264 = vadd.f32 0.0, %v2263
      %v2265 = vpop.f32.mrb[0].mxu0
      %2266 = vmatprep.mubr.bf16.mxu0 0
      %2267 = vmatmul.mubr.bf16.gmra.mrb[0].mxu0 %v2157
      %v2268 = vpop.f32.mrb[0].mxu0
      %v2269 = vadd.f32 0.0, %v2268
      %v2270 = vpop.f32.mrb[0].mxu0
      %v2271 = vpop.f32.mrb[0].mxu0
      %v2272 = vadd.f32 0.0, %v2271
      %v2273 = vpop.f32.mrb[0].mxu0
      %2274 = vdwg.mxu0
      %v2275 = vadd.f32 %v2065, %v2245
      %v2276 = vadd.f32 %v2066, %v2248
      %v2277 = vadd.f32 %v2067, %v2253
      %v2278 = vadd.f32 %v2068, %v2256
      %v2279 = vadd.f32 %v2069, %v2261
      %v2280 = vadd.f32 %v2070, %v2264
      %v2281 = vadd.f32 %v2071, %v2269
      %v2282 = vadd.f32 %v2072, %v2272
      %v2283 = vld [vmem:[%s295] sm:$0x1]
      %v2285 = vlaneseq
      %v2286 = vshrl.u32 %v2285, 7
      %v2287 = vsub.s32 0, %v2286
      %v2288 = vrot.slane %v2283, %v2287
      %v2290 = vadd.f32 %v2275, %v2288
      %v2291 = vadd.f32 %v2276, %v2288
      %v2292 = vadd.f32 %v2277, %v2288
      %v2293 = vadd.f32 %v2278, %v2288
      %v2294 = vadd.f32 %v2279, %v2288
      %v2295 = vadd.f32 %v2280, %v2288
      %v2296 = vadd.f32 %v2281, %v2288
      %v2297 = vadd.f32 %v2282, %v2288
      %v2298 = vld [vmem:[%s300] sm:$0xf]
      %v2299 = vld [vmem:[%s300 + $0x4] sm:$0xf]
      %v2300 = vld [vmem:[%s300 + $0x8] sm:$0xf]
      %v2301 = vld [vmem:[%s300 + $0xc] sm:$0xf]
      %v2302 = vld [vmem:[%s300 + $0x10] sm:$0xf]
      %v2303 = vld [vmem:[%s300 + $0x14] sm:$0xf]
      %v2304 = vld [vmem:[%s300 + $0x18] sm:$0xf]
      %v2305 = vld [vmem:[%s300 + $0x1c] sm:$0xf]
      %v2306 = vld [vmem:[%s304] sm:$0xf]
      %v2307 = vld [vmem:[%s304 + $0x4] sm:$0xf]
      %v2308 = vld [vmem:[%s304 + $0x8] sm:$0xf]
      %v2309 = vld [vmem:[%s304 + $0xc] sm:$0xf]
      %v2310 = vld [vmem:[%s304 + $0x10] sm:$0xf]
      %v2311 = vld [vmem:[%s304 + $0x14] sm:$0xf]
      %v2312 = vld [vmem:[%s304 + $0x18] sm:$0xf]
      %v2313 = vld [vmem:[%s304 + $0x1c] sm:$0xf]
      %v2314 = vld [vmem:[%s304 + $0x20] sm:$0xf]
      %v2315 = vld [vmem:[%s304 + $0x24] sm:$0xf]
      %v2316 = vld [vmem:[%s304 + $0x28] sm:$0xf]
      %v2317 = vld [vmem:[%s304 + $0x2c] sm:$0xf]
      %v2318 = vld [vmem:[%s304 + $0x30] sm:$0xf]
      %v2319 = vld [vmem:[%s304 + $0x34] sm:$0xf]
      %v2320 = vld [vmem:[%s304 + $0x38] sm:$0xf]
      %v2321 = vld [vmem:[%s304 + $0x3c] sm:$0xf]
      %v2330 = vunpack.c.l.b16 %v2298
      %v2331 = vunpack.c.l.b16 %v2299
      %v2332 = vunpack.c.l.b16 %v2300
      %v2333 = vunpack.c.l.b16 %v2301
      %v2334 = vunpack.c.l.b16 %v2302
      %v2335 = vunpack.c.l.b16 %v2303
      %v2336 = vunpack.c.l.b16 %v2304
      %v2337 = vunpack.c.l.b16 %v2305
      %v2338 = vpack.c.b16 %v2331, %v2330
      %v2339 = vpack.c.b16 %v2333, %v2332
      %v2340 = vpack.c.b16 %v2335, %v2334
      %v2341 = vpack.c.b16 %v2337, %v2336
      %v2362 = vunpack.c.l.b16 %v2306
      %v2363 = vunpack.c.l.b16 %v2307
      %v2364 = vunpack.c.l.b16 %v2308
      %v2365 = vunpack.c.l.b16 %v2309
      %v2366 = vunpack.c.l.b16 %v2310
      %v2367 = vunpack.c.l.b16 %v2311
      %v2368 = vunpack.c.l.b16 %v2312
      %v2369 = vunpack.c.l.b16 %v2313
      %v2370 = vunpack.c.l.b16 %v2314
      %v2371 = vunpack.c.l.b16 %v2315
      %v2372 = vunpack.c.l.b16 %v2316
      %v2373 = vunpack.c.l.b16 %v2317
      %v2374 = vunpack.c.l.b16 %v2318
      %v2375 = vunpack.c.l.b16 %v2319
      %v2376 = vunpack.c.l.b16 %v2320
      %v2377 = vunpack.c.l.b16 %v2321
      %v2378 = vpack.c.b16 %v2363, %v2362
      %v2379 = vpack.c.b16 %v2365, %v2364
      %v2380 = vpack.c.b16 %v2367, %v2366
      %v2381 = vpack.c.b16 %v2369, %v2368
      %v2382 = vpack.c.b16 %v2371, %v2370
      %v2383 = vpack.c.b16 %v2373, %v2372
      %v2384 = vpack.c.b16 %v2375, %v2374
      %v2385 = vpack.c.b16 %v2377, %v2376
      %2394 = vmatprep.subr.bf16.mxu0 0
      %2395 = vmatpush1.bf16.msra.mxu0 %v2378
      %2396 = vmatprep.subr.bf16.mxu0 0
      %2397 = vmatpush1.bf16.msra.mxu0 %v2379
      %2398 = vmatprep.subr.bf16.mxu0 0
      %2399 = vmatpush1.bf16.msra.mxu0 %v2380
      %2400 = vmatprep.subr.bf16.mxu0 0
      %2401 = vmatpush1.bf16.msra.mxu0 %v2381
      %2402 = vmatprep.subr.bf16.mxu0 0
      %2403 = vmatpush1.bf16.msra.mxu0 %v2382
      %2404 = vmatprep.subr.bf16.mxu0 0
      %2405 = vmatpush1.bf16.msra.mxu0 %v2383
      %2406 = vmatprep.subr.bf16.mxu0 0
      %2407 = vmatpush1.bf16.msra.mxu0 %v2384
      %2408 = vmatprep.subr.bf16.mxu0 0
      %2409 = vmatpush1.bf16.msra.mxu0 %v2385
      %2410 = vmatprep.subr.bf16.mxu0 0
      %2411 = vmatpush1.bf16.msra.mxu0 0
      %2412 = vmatprep.subr.bf16.mxu0 0
      %2413 = vmatpush1.bf16.msra.mxu0 0
      %2414 = vmatprep.subr.bf16.mxu0 0
      %2415 = vmatpush1.bf16.msra.mxu0 0
      %2416 = vmatprep.subr.bf16.mxu0 0
      %2417 = vmatpush1.bf16.msra.mxu0 0
      %2418 = vmatprep.subr.bf16.mxu0 0
      %2419 = vmatpush1.bf16.msra.mxu0 0
      %2420 = vmatprep.subr.bf16.mxu0 0
      %2421 = vmatpush1.bf16.msra.mxu0 0
      %2422 = vmatprep.subr.bf16.mxu0 0
      %2423 = vmatpush1.bf16.msra.mxu0 0
      %2424 = vmatprep.subr.bf16.mxu0 0
      %2425 = vmatpush1.bf16.msra.mxu0 0
      %2426 = vmatprep.mubr.bf16.mxu0 0
      %2427 = vmatmul.mubr.bf16.gmra.mrb[0].mxu0 %v2338
      %v2428 = vpop.f32.mrb[0].mxu0
      %v2429 = vadd.f32 0.0, %v2428
      %v2430 = vpop.f32.mrb[0].mxu0
      %v2431 = vpop.f32.mrb[0].mxu0
      %v2432 = vadd.f32 0.0, %v2431
      %v2433 = vpop.f32.mrb[0].mxu0
      %2434 = vmatprep.mubr.bf16.mxu0 0
      %2435 = vmatmul.mubr.bf16.gmra.mrb[0].mxu0 %v2339
      %v2436 = vpop.f32.mrb[0].mxu0
      %v2437 = vadd.f32 0.0, %v2436
      %v2438 = vpop.f32.mrb[0].mxu0
      %v2439 = vpop.f32.mrb[0].mxu0
      %v2440 = vadd.f32 0.0, %v2439
      %v2441 = vpop.f32.mrb[0].mxu0
      %2442 = vmatprep.mubr.bf16.mxu0 0
      %2443 = vmatmul.mubr.bf16.gmra.mrb[0].mxu0 %v2340
      %v2444 = vpop.f32.mrb[0].mxu0
      %v2445 = vadd.f32 0.0, %v2444
      %v2446 = vpop.f32.mrb[0].mxu0
      %v2447 = vpop.f32.mrb[0].mxu0
      %v2448 = vadd.f32 0.0, %v2447
      %v2449 = vpop.f32.mrb[0].mxu0
      %2450 = vmatprep.mubr.bf16.mxu0 0
      %2451 = vmatmul.mubr.bf16.gmra.mrb[0].mxu0 %v2341
      %v2452 = vpop.f32.mrb[0].mxu0
      %v2453 = vadd.f32 0.0, %v2452
      %v2454 = vpop.f32.mrb[0].mxu0
      %v2455 = vpop.f32.mrb[0].mxu0
      %v2456 = vadd.f32 0.0, %v2455
      %v2457 = vpop.f32.mrb[0].mxu0
      %2458 = vdwg.mxu0
      %v2459 = vadd.f32 %v2290, %v2429
      %v2460 = vadd.f32 %v2291, %v2432
      %v2461 = vadd.f32 %v2292, %v2437
      %v2462 = vadd.f32 %v2293, %v2440
      %v2463 = vadd.f32 %v2294, %v2445
      %v2464 = vadd.f32 %v2295, %v2448
      %v2465 = vadd.f32 %v2296, %v2453
      %v2466 = vadd.f32 %v2297, %v2456
      %v2467 = vmax.f32 %v2459, 0.0
      %v2468 = vmax.f32 %v2460, 0.0
      %v2469 = vmax.f32 %v2461, 0.0
      %v2470 = vmax.f32 %v2462, 0.0
      %v2471 = vmax.f32 %v2463, 0.0
      %v2472 = vmax.f32 %v2464, 0.0
      %v2473 = vmax.f32 %v2465, 0.0
      %v2474 = vmax.f32 %v2466, 0.0
      %2475 = vst [vmem:[%s312] sm:$0xff] %v2467
      %2476 = vst [vmem:[%s312 + $0x8] sm:$0xff] %v2468
      %2477 = vst [vmem:[%s312 + $0x10] sm:$0xff] %v2469
      %2478 = vst [vmem:[%s312 + $0x18] sm:$0xff] %v2470
      %2479 = vst [vmem:[%s312 + $0x20] sm:$0xff] %v2471
      %2480 = vst [vmem:[%s312 + $0x28] sm:$0xff] %v2472
      %2481 = vst [vmem:[%s312 + $0x30] sm:$0xff] %v2473
      %2482 = vst [vmem:[%s312 + $0x38] sm:$0xff] %v2474
      %p2483 = scmp.lt.s32.totalorder %s21, 1
      %s2484 = scalar_select %p2483, %s21, 1
      %p2485 = scmp.lt.s32.totalorder %s20, 0
      %s2486 = scalar_select %p2485, %s20, 0
      %s2487 = smul.addr %s2484, 8
      %s2488 = sadd.s32 %s2486, %s2487
      %s2489 = smul.addr %s2488, 8
      %s2490 = scalar_lea.vmem %s5, %s2489
      // Predicated region
      $region41: #{basic_block_forward.3} parent=39 // pred_check
        %p2491 = pneg %p178
      $region42: #{basic_block_forward.3} parent=39 // pred_check_branch
        %2493 = sbr.rel (%p2491) target = $region44
      $region43: #{basic_block_forward.3} parent=39 // pred_region
        _
      $region44: #{basic_block_forward.3} parent=39 // pred_fallthru
        _
    $region40: #{basic_block_forward.3} parent=5 // pred_fallthru
      _
    %p2494 = scmp.le.s32.totalorder 2, %s11
    // Predicated region
    $region45: #{basic_block_forward.3} parent=5 // pred_check
      %p2495 = pneg %p2494
    $region46: #{basic_block_forward.3} parent=5 // pred_check_branch
      %2497 = sbr.rel (%p2495) target = $region48
    $region47: #{basic_block_forward.3} parent=5 // pred_region
      %s2498 = ssub.s32 %s11, 2
      // Predicated region
      $region49: #{basic_block_forward.3} parent=47 // pred_check
        %p2499 = pneg %p184
      $region50: #{basic_block_forward.3} parent=47 // pred_check_branch
        %2501 = sbr.rel (%p2499) target = $region52
      $region51: #{basic_block_forward.3} parent=47 // pred_region
        %p2502 = scmp.lt.s32.totalorder %s23, 1
        %s2503 = scalar_select %p2502, %s23, 1
        %p2504 = scmp.lt.s32.totalorder %s22, 0
        %s2505 = scalar_select %p2504, %s22, 0
        %s2506 = smul.addr %s2503, 8
        %s2507 = sadd.s32 %s2505, %s2506
        %s2508 = smul.addr %s2507, 8
        %s2509 = scalar_lea.vmem %s5, %s2508
      $region52: #{basic_block_forward.3} parent=47 // pred_fallthru
        _
    $region48: #{basic_block_forward.3} parent=5 // pred_fallthru
      _
  $region6: #{basic_block_forward.3} parent=0 // loop_footer
    %s15 = sadd.s32 1, %s11
  $region7: #{basic_block_forward.3} parent=0 // loop_footer_branch
    %10 = sbr.rel target = $region3
  $region8: #{basic_block_forward.3} parent=0 // loop_exit
    _

// kernel: basic_block_forward.2
$region0: #{basic_block_forward.2}
  #allocation0 [shape = 'u32[]', space=smem, size = 0x4, offset = 0x4, fixed_abs, tag = 'smem constant byte address 0x4 - core index']
  #allocation1 [shape = 'u32[144,128]{1,0:T(1,128)}', space=vmem, size = 0x12000, scoped, tag = 'internal scratch']
  %s0 = inlined_call_operand.vmem [shape: bf16[8,9,9,128], index: 0, kind: input, shape index: {}]
  %s1 = inlined_call_operand.vmem [shape: bf16[9,128,128], index: 1, kind: input, shape index: {}]
  %s2 = inlined_call_operand.vmem [shape: f32[1,128], index: 2, kind: input, shape index: {}]
  %s3 = inlined_call_operand.vmem [shape: bf16[2,8,8,128], index: 3, kind: output, shape index: {}]
  %s4 = sld [smem:[#allocation0]]
  $region45: #{basic_block_forward.2} parent=0
    _
  %s6 = ssub.s32 1, %s4
  %s7 = scalar_select 0, %s6, %s4
  loop: start=0, step=1, limit=4
  $region2: #{basic_block_forward.2} parent=0 // loop_pre_header
    _
  $region3: #{basic_block_forward.2} parent=0 // loop_header
    %s9 = sphi 0, %s13
    %p10 = scmp.ge.s32.totalorder %s9, 4
    %s16 = sphi 0, %s28
    %s17 = sphi 0, %s24
    %s18 = sphi 0, %s16
    %s19 = sphi 0, %s17
    %s20 = sphi 0, %s18
    %s21 = sphi 0, %s19
    %s31 = sphi 0, %s33
    %s34 = sphi 0, %s31
    %s35 = sphi 0, %s34
    %s51 = sphi 0, %s35
    %s57 = sphi 0, %s59
    %s60 = sphi 0, %s57
    %s61 = sphi 0, %s60
    %s77 = sphi 0, %s61
    %s83 = sphi 0, %s85
    %s86 = sphi 0, %s83
    %s87 = sphi 0, %s86
    %s103 = sphi 0, %s87
    %s111 = sphi 0, %s113
    %s114 = sphi 0, %s111
    %s115 = sphi 0, %s114
    %s131 = sphi 0, %s115
  $region4: #{basic_block_forward.2} parent=0 // loop_header_branch
    %12 = sbr.rel (%p10) target = $region8
  $region5: #{basic_block_forward.2} parent=0 // loop_body
    %s14 = ssub.s32 %s9, 1
    %s15 = ssub.s32 %s9, 2
    %s22 = sadd.s32 1, %s17
    %p23 = scmp.ge.s32.totalorder %s22, 2
    %s24 = scalar_select %p23, 0, %s22
    %s25 = sadd.s32 1, %s16
    %s26 = scalar_select %p23, %s25, %s16
    %p27 = scmp.ge.s32.totalorder %s26, 1
    %s28 = scalar_select %p27, 0, %s26
    %s29 = ssub.s32 %s17, %s24
    %p30 = scmp.eq.s32.totalorder %s29, 0
    %s32 = sadd.s32 %s31, 1
    %s33 = scalar_select %p30, %s31, %s32
    %p36 = pneg %p30
    %p37 = scmp.eq.s32.totalorder %s9, 1
    %p38 = por %p36, %p37
    %p39 = scmp.ne.s32.totalorder %s31, %s34
    %p40 = scmp.eq.s32.totalorder %s9, 0
    %p41 = por %p39, %p40
    %p42 = scmp.ne.s32.totalorder %s31, %s34
    %p43 = scmp.eq.s32.totalorder %s14, 1
    %p44 = por %p42, %p43
    %p45 = scmp.ne.s32.totalorder %s34, %s35
    %p46 = scmp.eq.s32.totalorder %s14, 0
    %p47 = por %p45, %p46
    %p48 = scmp.ne.s32.totalorder %s34, %s35
    %p49 = scmp.eq.s32.totalorder %s15, 1
    %p50 = por %p48, %p49
    %p52 = scmp.ne.s32.totalorder %s35, %s51
    %p53 = scmp.eq.s32.totalorder %s15, 0
    %p54 = por %p52, %p53
    %s55 = ssub.s32 %s16, %s28
    %p56 = scmp.eq.s32.totalorder %s55, 0
    %s58 = sadd.s32 %s57, 1
    %s59 = scalar_select %p56, %s57, %s58
    %p62 = pneg %p56
    %p63 = scmp.eq.s32.totalorder %s9, 1
    %p64 = por %p62, %p63
    %p65 = scmp.ne.s32.totalorder %s57, %s60
    %p66 = scmp.eq.s32.totalorder %s9, 0
    %p67 = por %p65, %p66
    %p68 = scmp.ne.s32.totalorder %s57, %s60
    %p69 = scmp.eq.s32.totalorder %s14, 1
    %p70 = por %p68, %p69
    %p71 = scmp.ne.s32.totalorder %s60, %s61
    %p72 = scmp.eq.s32.totalorder %s14, 0
    %p73 = por %p71, %p72
    %p74 = scmp.ne.s32.totalorder %s60, %s61
    %p75 = scmp.eq.s32.totalorder %s15, 1
    %p76 = por %p74, %p75
    %p78 = scmp.ne.s32.totalorder %s61, %s77
    %p79 = scmp.eq.s32.totalorder %s15, 0
    %p80 = por %p78, %p79
    %s81 = ssub.s32 %s16, %s28
    %p82 = scmp.eq.s32.totalorder %s81, 0
    %s84 = sadd.s32 %s83, 1
    %s85 = scalar_select %p82, %s83, %s84
    %p88 = pneg %p82
    %p89 = scmp.eq.s32.totalorder %s9, 1
    %p90 = por %p88, %p89
    %p91 = scmp.ne.s32.totalorder %s83, %s86
    %p92 = scmp.eq.s32.totalorder %s9, 0
    %p93 = por %p91, %p92
    %p94 = scmp.ne.s32.totalorder %s83, %s86
    %p95 = scmp.eq.s32.totalorder %s14, 1
    %p96 = por %p94, %p95
    %p97 = scmp.ne.s32.totalorder %s86, %s87
    %p98 = scmp.eq.s32.totalorder %s14, 0
    %p99 = por %p97, %p98
    %p100 = scmp.ne.s32.totalorder %s86, %s87
    %p101 = scmp.eq.s32.totalorder %s15, 1
    %p102 = por %p100, %p101
    %p104 = scmp.ne.s32.totalorder %s87, %s103
    %p105 = scmp.eq.s32.totalorder %s15, 0
    %p106 = por %p104, %p105
    %s107 = ssub.s32 %s17, %s24
    %s108 = ssub.s32 %s16, %s28
    %s109 = sor.u32 %s107, %s108
    %p110 = scmp.eq.s32.totalorder %s109, 0
    %s112 = sadd.s32 %s111, 1
    %s113 = scalar_select %p110, %s111, %s112
    %p116 = pneg %p110
    %p117 = scmp.eq.s32.totalorder %s9, 1
    %p118 = por %p116, %p117
    %p119 = scmp.ne.s32.totalorder %s111, %s114
    %p120 = scmp.eq.s32.totalorder %s9, 0
    %p121 = por %p119, %p120
    %p122 = scmp.ne.s32.totalorder %s111, %s114
    %p123 = scmp.eq.s32.totalorder %s14, 1
    %p124 = por %p122, %p123
    %p125 = scmp.ne.s32.totalorder %s114, %s115
    %p126 = scmp.eq.s32.totalorder %s14, 0
    %p127 = por %p125, %p126
    %p128 = scmp.ne.s32.totalorder %s114, %s115
    %p129 = scmp.eq.s32.totalorder %s15, 1
    %p130 = por %p128, %p129
    %p132 = scmp.ne.s32.totalorder %s115, %s131
    %p133 = scmp.eq.s32.totalorder %s15, 0
    %p134 = por %p132, %p133
    %p135 = scmp.le.s32.totalorder 1, %s9
    %p136 = scmp.lt.s32.totalorder %s9, 3
    %p137 = pnand %p135, %p136
    %p138 = pneg %p137
    // Predicated region
    $region9: #{basic_block_forward.2} parent=5 // pred_check
      _
    $region10: #{basic_block_forward.2} parent=5 // pred_check_branch
      %140 = sbr.rel (%p137) target = $region12
    $region11: #{basic_block_forward.2} parent=5 // pred_region
      %s141 = ssub.s32 %s9, 1
      // Predicated region
      $region13: #{basic_block_forward.2} parent=11 // pred_check
        %p142 = pneg %p73
      $region14: #{basic_block_forward.2} parent=11 // pred_check_branch
        %144 = sbr.rel (%p142) target = $region16
      $region15: #{basic_block_forward.2} parent=11 // pred_region
        %p145 = scmp.lt.s32.totalorder %s18, 0
        %s146 = scalar_select %p145, %s18, 0
        %s147 = smul.addr %s146, 4
        %s148 = scalar_lea.vmem %s1, %s147
      $region16: #{basic_block_forward.2} parent=11 // pred_fallthru
        _
      // Predicated region
      $region17: #{basic_block_forward.2} parent=11 // pred_check
        %p149 = pneg %p99
      $region18: #{basic_block_forward.2} parent=11 // pred_check_branch
        %151 = sbr.rel (%p149) target = $region20
      $region19: #{basic_block_forward.2} parent=11 // pred_region
        %p152 = scmp.lt.s32.totalorder %s18, 0
        %s153 = scalar_select %p152, %s18, 0
        %s154 = scalar_lea.vmem %s2, %s153
      $region20: #{basic_block_forward.2} parent=11 // pred_fallthru
        _
    $region12: #{basic_block_forward.2} parent=5 // pred_fallthru
      _
    %p155 = scmp.lt.s32.totalorder %s9, 2
    // Predicated region
    $region21: #{basic_block_forward.2} parent=5 // pred_check
      %p156 = pneg %p155
    $region22: #{basic_block_forward.2} parent=5 // pred_check_branch
      %158 = sbr.rel (%p156) target = $region24
    $region23: #{basic_block_forward.2} parent=5 // pred_region
      // Predicated region
      $region25: #{basic_block_forward.2} parent=23 // pred_check
        %p159 = pneg %p41
      $region26: #{basic_block_forward.2} parent=23 // pred_check_branch
        %161 = sbr.rel (%p159) target = $region28
      $region27: #{basic_block_forward.2} parent=23 // pred_region
        %s162 = smul.u32 4, %s17
        %p163 = scmp.lt.s32.totalorder %s162, 7
        %s164 = scalar_select %p163, %s162, 7
        %s165 = smul.addr %s164, 18
        %s166 = smul.addr %s165, 4
        %s167 = scalar_lea.vmem %s0, %s166
        %s168 = smul.u32 4, %s17
      $region28: #{basic_block_forward.2} parent=23 // pred_fallthru
        _
    $region24: #{basic_block_forward.2} parent=5 // pred_fallthru
      _
    %p169 = scmp.le.s32.totalorder 1, %s9
    %p170 = scmp.lt.s32.totalorder %s9, 3
    %p171 = pnand %p169, %p170
    %p172 = pneg %p171
    // Predicated region
    $region29: #{basic_block_forward.2} parent=5 // pred_check
      _
    $region30: #{basic_block_forward.2} parent=5 // pred_check_branch
      %174 = sbr.rel (%p171) target = $region32
    $region31: #{basic_block_forward.2} parent=5 // pred_region
      %s175 = ssub.s32 %s9, 1
      %s176 = smul.u32 4, %s19
      %p177 = scmp.lt.s32.totalorder %s176, 7
      %s178 = scalar_select %p177, %s176, 7
      %s179 = smul.addr %s178, 18
      %s180 = smul.addr %s179, 4
      %s181 = scalar_lea.vmem %s0, %s180
      %p182 = pneg %p47
      %p183 = pneg %p44
      %p184 = scmp.lt.s32.totalorder %s18, 0
      %s185 = scalar_select %p184, %s18, 0
      %s186 = smul.addr %s185, 4
      %s187 = scalar_lea.vmem %s1, %s186
      %p188 = pneg %p73
      %p189 = pneg %p70
      %p190 = scmp.lt.s32.totalorder %s18, 0
      %s191 = scalar_select %p190, %s18, 0
      %s192 = scalar_lea.vmem %s2, %s191
      %p193 = pneg %p99
      %p194 = pneg %p96
      %p195 = pneg %p127
      %p196 = pneg %p124
      %p197 = scmp.lt.s32.totalorder %s19, 1
      %s198 = scalar_select %p197, %s19, 1
      %p199 = scmp.lt.s32.totalorder %s18, 0
      %s200 = scalar_select %p199, %s18, 0
      %s201 = smul.addr %s198, 8
      %s202 = sadd.s32 %s200, %s201
      %s203 = smul.addr %s202, 4
      %s204 = scalar_lea.vmem %s3, %s203
      %s205 = smul.u32 4, %s19
      %p206 = scmp.lt.s32.totalorder %s205, 7
      %s207 = scalar_select %p206, %s205, 7
      %s208 = smul.addr %s207, 18
      %s209 = smul.addr %s208, 4
      %s210 = scalar_lea.vmem %s0, %s209
      %s211 = smul.u32 4, %s19
      %p212 = scmp.lt.s32.totalorder %s18, 0
      %s213 = scalar_select %p212, %s18, 0
      %s214 = smul.addr %s213, 4
      %s215 = scalar_lea.vmem %s1, %s214
      %p216 = scmp.lt.s32.totalorder %s18, 0
      %s217 = scalar_select %p216, %s18, 0
      %s218 = scalar_lea.vmem %s2, %s217
      %p219 = scmp.lt.s32.totalorder %s19, 1
      %s220 = scalar_select %p219, %s19, 1
      %p221 = scmp.lt.s32.totalorder %s18, 0
      %s222 = scalar_select %p221, %s18, 0
      %s223 = smul.addr %s220, 8
      %s224 = sadd.s32 %s222, %s223
      %s225 = smul.addr %s224, 4
      %s226 = scalar_lea.vmem %s3, %s225
      %v228 = vld [vmem:[%s210] sm:$0xf]
      %v229 = vld [vmem:[%s210 + $0x8] sm:$0xf]
      %v230 = vld [vmem:[%s210 + $0x10] sm:$0xf]
      %v231 = vld [vmem:[%s210 + $0x18] sm:$0xf]
      %v232 = vld [vmem:[%s210 + $0x20] sm:$0xf]
      %v233 = vld [vmem:[%s210 + $0x28] sm:$0xf]
      %v234 = vld [vmem:[%s210 + $0x30] sm:$0xf]
      %v235 = vld [vmem:[%s210 + $0x38] sm:$0xf]
      %v236 = vld [vmem:[%s215] sm:$0xf]
      %v237 = vld [vmem:[%s215 + $0x4] sm:$0xf]
      %v238 = vld [vmem:[%s215 + $0x8] sm:$0xf]
      %v239 = vld [vmem:[%s215 + $0xc] sm:$0xf]
      %v240 = vld [vmem:[%s215 + $0x10] sm:$0xf]
      %v241 = vld [vmem:[%s215 + $0x14] sm:$0xf]
      %v242 = vld [vmem:[%s215 + $0x18] sm:$0xf]
      %v243 = vld [vmem:[%s215 + $0x1c] sm:$0xf]
      %v244 = vld [vmem:[%s215 + $0x20] sm:$0xf]
      %v245 = vld [vmem:[%s215 + $0x24] sm:$0xf]
      %v246 = vld [vmem:[%s215 + $0x28] sm:$0xf]
      %v247 = vld [vmem:[%s215 + $0x2c] sm:$0xf]
      %v248 = vld [vmem:[%s215 + $0x30] sm:$0xf]
      %v249 = vld [vmem:[%s215 + $0x34] sm:$0xf]
      %v250 = vld [vmem:[%s215 + $0x38] sm:$0xf]
      %v251 = vld [vmem:[%s215 + $0x3c] sm:$0xf]
      %s252 = scalar_lea.vmem %s210, 72
      %v253 = vld [vmem:[%s252] sm:$0xf]
      %v254 = vld [vmem:[%s252 + $0x8] sm:$0xf]
      %v255 = vld [vmem:[%s252 + $0x10] sm:$0xf]
      %v256 = vld [vmem:[%s252 + $0x18] sm:$0xf]
      %v257 = vld [vmem:[%s252 + $0x20] sm:$0xf]
      %v258 = vld [vmem:[%s252 + $0x28] sm:$0xf]
      %v259 = vld [vmem:[%s252 + $0x30] sm:$0xf]
      %v260 = vld [vmem:[%s252 + $0x38] sm:$0xf]
      %s261 = scalar_lea.vmem %s215, 64
      %v262 = vld [vmem:[%s261] sm:$0xf]
      %v263 = vld [vmem:[%s261 + $0x4] sm:$0xf]
      %v264 = vld [vmem:[%s261 + $0x8] sm:$0xf]
      %v265 = vld [vmem:[%s261 + $0xc] sm:$0xf]
      %v266 = vld [vmem:[%s261 + $0x10] sm:$0xf]
      %v267 = vld [vmem:[%s261 + $0x14] sm:$0xf]
      %v268 = vld [vmem:[%s261 + $0x18] sm:$0xf]
      %v269 = vld [vmem:[%s261 + $0x1c] sm:$0xf]
      %v270 = vld [vmem:[%s261 + $0x20] sm:$0xf]
      %v271 = vld [vmem:[%s261 + $0x24] sm:$0xf]
      %v272 = vld [vmem:[%s261 + $0x28] sm:$0xf]
      %v273 = vld [vmem:[%s261 + $0x2c] sm:$0xf]
      %v274 = vld [vmem:[%s261 + $0x30] sm:$0xf]
      %v275 = vld [vmem:[%s261 + $0x34] sm:$0xf]
      %v276 = vld [vmem:[%s261 + $0x38] sm:$0xf]
      %v277 = vld [vmem:[%s261 + $0x3c] sm:$0xf]
      %v286 = vunpack.c.l.b16 %v253
      %v287 = vunpack.c.l.b16 %v254
      %v288 = vunpack.c.l.b16 %v255
      %v289 = vunpack.c.l.b16 %v256
      %v290 = vunpack.c.l.b16 %v257
      %v291 = vunpack.c.l.b16 %v258
      %v292 = vunpack.c.l.b16 %v259
      %v293 = vunpack.c.l.b16 %v260
      %v294 = vpack.c.b16 %v287, %v286
      %v295 = vpack.c.b16 %v289, %v288
      %v296 = vpack.c.b16 %v291, %v290
      %v297 = vpack.c.b16 %v293, %v292
      %v318 = vunpack.c.l.b16 %v262
      %v319 = vunpack.c.l.b16 %v263
      %v320 = vunpack.c.l.b16 %v264
      %v321 = vunpack.c.l.b16 %v265
      %v322 = vunpack.c.l.b16 %v266
      %v323 = vunpack.c.l.b16 %v267
      %v324 = vunpack.c.l.b16 %v268
      %v325 = vunpack.c.l.b16 %v269
      %v326 = vunpack.c.l.b16 %v270
      %v327 = vunpack.c.l.b16 %v271
      %v328 = vunpack.c.l.b16 %v272
      %v329 = vunpack.c.l.b16 %v273
      %v330 = vunpack.c.l.b16 %v274
      %v331 = vunpack.c.l.b16 %v275
      %v332 = vunpack.c.l.b16 %v276
      %v333 = vunpack.c.l.b16 %v277
      %v334 = vpack.c.b16 %v319, %v318
      %v335 = vpack.c.b16 %v321, %v320
      %v336 = vpack.c.b16 %v323, %v322
      %v337 = vpack.c.b16 %v325, %v324
      %v338 = vpack.c.b16 %v327, %v326
      %v339 = vpack.c.b16 %v329, %v328
      %v340 = vpack.c.b16 %v331, %v330
      %v341 = vpack.c.b16 %v333, %v332
      %350 = vmatprep.subr.bf16.mxu0 0
      %351 = vmatpush1.bf16.msra.mxu0 %v334
      %352 = vmatprep.subr.bf16.mxu0 0
      %353 = vmatpush1.bf16.msra.mxu0 %v335
      %354 = vmatprep.subr.bf16.mxu0 0
      %355 = vmatpush1.bf16.msra.mxu0 %v336
      %356 = vmatprep.subr.bf16.mxu0 0
      %357 = vmatpush1.bf16.msra.mxu0 %v337
      %358 = vmatprep.subr.bf16.mxu0 0
      %359 = vmatpush1.bf16.msra.mxu0 %v338
      %360 = vmatprep.subr.bf16.mxu0 0
      %361 = vmatpush1.bf16.msra.mxu0 %v339
      %362 = vmatprep.subr.bf16.mxu0 0
      %363 = vmatpush1.bf16.msra.mxu0 %v340
      %364 = vmatprep.subr.bf16.mxu0 0
      %365 = vmatpush1.bf16.msra.mxu0 %v341
      %366 = vmatprep.subr.bf16.mxu0 0
      %367 = vmatpush1.bf16.msra.mxu0 0
      %368 = vmatprep.subr.bf16.mxu0 0
      %369 = vmatpush1.bf16.msra.mxu0 0
      %370 = vmatprep.subr.bf16.mxu0 0
      %371 = vmatpush1.bf16.msra.mxu0 0
      %372 = vmatprep.subr.bf16.mxu0 0
      %373 = vmatpush1.bf16.msra.mxu0 0
      %374 = vmatprep.subr.bf16.mxu0 0
      %375 = vmatpush1.bf16.msra.mxu0 0
      %376 = vmatprep.subr.bf16.mxu0 0
      %377 = vmatpush1.bf16.msra.mxu0 0
      %378 = vmatprep.subr.bf16.mxu0 0
      %379 = vmatpush1.bf16.msra.mxu0 0
      %380 = vmatprep.subr.bf16.mxu0 0
      %381 = vmatpush1.bf16.msra.mxu0 0
      %382 = vmatprep.mubr.bf16.mxu0 0
      %383 = vmatmul.mubr.bf16.gmra.mrb[0].mxu0 %v294
      %v384 = vpop.f32.mrb[0].mxu0
      %v385 = vadd.f32 0.0, %v384
      %v386 = vpop.f32.mrb[0].mxu0
      %v387 = vpop.f32.mrb[0].mxu0
      %v388 = vadd.f32 0.0, %v387
      %v389 = vpop.f32.mrb[0].mxu0
      %390 = vmatprep.mubr.bf16.mxu0 0
      %391 = vmatmul.mubr.bf16.gmra.mrb[0].mxu0 %v295
      %v392 = vpop.f32.mrb[0].mxu0
      %v393 = vadd.f32 0.0, %v392
      %v394 = vpop.f32.mrb[0].mxu0
      %v395 = vpop.f32.mrb[0].mxu0
      %v396 = vadd.f32 0.0, %v395
      %v397 = vpop.f32.mrb[0].mxu0
      %398 = vmatprep.mubr.bf16.mxu0 0
      %399 = vmatmul.mubr.bf16.gmra.mrb[0].mxu0 %v296
      %v400 = vpop.f32.mrb[0].mxu0
      %v401 = vadd.f32 0.0, %v400
      %v402 = vpop.f32.mrb[0].mxu0
      %v403 = vpop.f32.mrb[0].mxu0
      %v404 = vadd.f32 0.0, %v403
      %v405 = vpop.f32.mrb[0].mxu0
      %406 = vmatprep.mubr.bf16.mxu0 0
      %407 = vmatmul.mubr.bf16.gmra.mrb[0].mxu0 %v297
      %v408 = vpop.f32.mrb[0].mxu0
      %v409 = vadd.f32 0.0, %v408
      %v410 = vpop.f32.mrb[0].mxu0
      %v411 = vpop.f32.mrb[0].mxu0
      %v412 = vadd.f32 0.0, %v411
      %v413 = vpop.f32.mrb[0].mxu0
      %414 = vdwg.mxu0
      %v423 = vunpack.c.l.b16 %v228
      %v424 = vunpack.c.l.b16 %v229
      %v425 = vunpack.c.l.b16 %v230
      %v426 = vunpack.c.l.b16 %v231
      %v427 = vunpack.c.l.b16 %v232
      %v428 = vunpack.c.l.b16 %v233
      %v429 = vunpack.c.l.b16 %v234
      %v430 = vunpack.c.l.b16 %v235
      %v431 = vpack.c.b16 %v424, %v423
      %v432 = vpack.c.b16 %v426, %v425
      %v433 = vpack.c.b16 %v428, %v427
      %v434 = vpack.c.b16 %v430, %v429
      %v455 = vunpack.c.l.b16 %v236
      %v456 = vunpack.c.l.b16 %v237
      %v457 = vunpack.c.l.b16 %v238
      %v458 = vunpack.c.l.b16 %v239
      %v459 = vunpack.c.l.b16 %v240
      %v460 = vunpack.c.l.b16 %v241
      %v461 = vunpack.c.l.b16 %v242
      %v462 = vunpack.c.l.b16 %v243
      %v463 = vunpack.c.l.b16 %v244
      %v464 = vunpack.c.l.b16 %v245
      %v465 = vunpack.c.l.b16 %v246
      %v466 = vunpack.c.l.b16 %v247
      %v467 = vunpack.c.l.b16 %v248
      %v468 = vunpack.c.l.b16 %v249
      %v469 = vunpack.c.l.b16 %v250
      %v470 = vunpack.c.l.b16 %v251
      %v471 = vpack.c.b16 %v456, %v455
      %v472 = vpack.c.b16 %v458, %v457
      %v473 = vpack.c.b16 %v460, %v459
      %v474 = vpack.c.b16 %v462, %v461
      %v475 = vpack.c.b16 %v464, %v463
      %v476 = vpack.c.b16 %v466, %v465
      %v477 = vpack.c.b16 %v468, %v467
      %v478 = vpack.c.b16 %v470, %v469
      %487 = vmatprep.subr.bf16.mxu0 0
      %488 = vmatpush1.bf16.msra.mxu0 %v471
      %489 = vmatprep.subr.bf16.mxu0 0
      %490 = vmatpush1.bf16.msra.mxu0 %v472
      %491 = vmatprep.subr.bf16.mxu0 0
      %492 = vmatpush1.bf16.msra.mxu0 %v473
      %493 = vmatprep.subr.bf16.mxu0 0
      %494 = vmatpush1.bf16.msra.mxu0 %v474
      %495 = vmatprep.subr.bf16.mxu0 0
      %496 = vmatpush1.bf16.msra.mxu0 %v475
      %497 = vmatprep.subr.bf16.mxu0 0
      %498 = vmatpush1.bf16.msra.mxu0 %v476
      %499 = vmatprep.subr.bf16.mxu0 0
      %500 = vmatpush1.bf16.msra.mxu0 %v477
      %501 = vmatprep.subr.bf16.mxu0 0
      %502 = vmatpush1.bf16.msra.mxu0 %v478
      %503 = vmatprep.subr.bf16.mxu0 0
      %504 = vmatpush1.bf16.msra.mxu0 0
      %505 = vmatprep.subr.bf16.mxu0 0
      %506 = vmatpush1.bf16.msra.mxu0 0
      %507 = vmatprep.subr.bf16.mxu0 0
      %508 = vmatpush1.bf16.msra.mxu0 0
      %509 = vmatprep.subr.bf16.mxu0 0
      %510 = vmatpush1.bf16.msra.mxu0 0
      %511 = vmatprep.subr.bf16.mxu0 0
      %512 = vmatpush1.bf16.msra.mxu0 0
      %513 = vmatprep.subr.bf16.mxu0 0
      %514 = vmatpush1.bf16.msra.mxu0 0
      %515 = vmatprep.subr.bf16.mxu0 0
      %516 = vmatpush1.bf16.msra.mxu0 0
      %517 = vmatprep.subr.bf16.mxu0 0
      %518 = vmatpush1.bf16.msra.mxu0 0
      %519 = vmatprep.mubr.bf16.mxu0 0
      %520 = vmatmul.mubr.bf16.gmra.mrb[0].mxu0 %v431
      %v521 = vpop.f32.mrb[0].mxu0
      %v522 = vadd.f32 %v385, %v521
      %v523 = vpop.f32.mrb[0].mxu0
      %v524 = vpop.f32.mrb[0].mxu0
      %v525 = vadd.f32 %v388, %v524
      %v526 = vpop.f32.mrb[0].mxu0
      %527 = vmatprep.mubr.bf16.mxu0 0
      %528 = vmatmul.mubr.bf16.gmra.mrb[0].mxu0 %v432
      %v529 = vpop.f32.mrb[0].mxu0
      %v530 = vadd.f32 %v393, %v529
      %v531 = vpop.f32.mrb[0].mxu0
      %v532 = vpop.f32.mrb[0].mxu0
      %v533 = vadd.f32 %v396, %v532
      %v534 = vpop.f32.mrb[0].mxu0
      %535 = vmatprep.mubr.bf16.mxu0 0
      %536 = vmatmul.mubr.bf16.gmra.mrb[0].mxu0 %v433
      %v537 = vpop.f32.mrb[0].mxu0
      %v538 = vadd.f32 %v401, %v537
      %v539 = vpop.f32.mrb[0].mxu0
      %v540 = vpop.f32.mrb[0].mxu0
      %v541 = vadd.f32 %v404, %v540
      %v542 = vpop.f32.mrb[0].mxu0
      %543 = vmatprep.mubr.bf16.mxu0 0
      %544 = vmatmul.mubr.bf16.gmra.mrb[0].mxu0 %v434
      %v545 = vpop.f32.mrb[0].mxu0
      %v546 = vadd.f32 %v409, %v545
      %v547 = vpop.f32.mrb[0].mxu0
      %v548 = vpop.f32.mrb[0].mxu0
      %v549 = vadd.f32 %v412, %v548
      %v550 = vpop.f32.mrb[0].mxu0
      %551 = vdwg.mxu0
      %v552 = vld [vmem:[%s210] sm:$0xf]
      %v553 = vld [vmem:[%s210 + $0x4] sm:$0x1]
      %v554 = vld [vmem:[%s210 + $0x8] sm:$0xf]
      %v555 = vld [vmem:[%s210 + $0xc] sm:$0x1]
      %v556 = vld [vmem:[%s210 + $0x10] sm:$0xf]
      %v557 = vld [vmem:[%s210 + $0x14] sm:$0x1]
      %v558 = vld [vmem:[%s210 + $0x18] sm:$0xf]
      %v559 = vld [vmem:[%s210 + $0x1c] sm:$0x1]
      %v560 = vld [vmem:[%s210 + $0x20] sm:$0xf]
      %v561 = vld [vmem:[%s210 + $0x24] sm:$0x1]
      %v562 = vld [vmem:[%s210 + $0x28] sm:$0xf]
      %v563 = vld [vmem:[%s210 + $0x2c] sm:$0x1]
      %v564 = vld [vmem:[%s210 + $0x30] sm:$0xf]
      %v565 = vld [vmem:[%s210 + $0x34] sm:$0x1]
      %v566 = vld [vmem:[%s210 + $0x38] sm:$0xf]
      %v567 = vld [vmem:[%s210 + $0x3c] sm:$0x1]
      %vm568 = vsmask.f32 3328
      %vm569 = vsmask.f32 7440
      %vm570 = vmor %vm568, %vm569
      %v572 = vshrl.u32 %v552, 16
      %v574 = vrot.slane %v572, 4
      %v575 = vshll.u32 %v552, 16
      %v577 = vrot.slane %v575, 5
      %v578 = vor.u32 %v574, %v577
      %v579 = vrot.slane %v578, 4
      %v581 = vshll.u32 %v553, 16
      %v583 = vrot.slane %v581, 5
      %v584 = vsel %vm570, %v579, %v583
      %v586 = vshrl.u32 %v554, 16
      %v588 = vrot.slane %v586, 4
      %v589 = vshll.u32 %v554, 16
      %v591 = vrot.slane %v589, 5
      %v592 = vor.u32 %v588, %v591
      %v593 = vrot.slane %v592, 4
      %v595 = vshll.u32 %v555, 16
      %v597 = vrot.slane %v595, 5
      %v598 = vsel %vm570, %v593, %v597
      %v600 = vshrl.u32 %v556, 16
      %v602 = vrot.slane %v600, 4
      %v603 = vshll.u32 %v556, 16
      %v605 = vrot.slane %v603, 5
      %v606 = vor.u32 %v602, %v605
      %v607 = vrot.slane %v606, 4
      %v609 = vshll.u32 %v557, 16
      %v611 = vrot.slane %v609, 5
      %v612 = vsel %vm570, %v607, %v611
      %v614 = vshrl.u32 %v558, 16
      %v616 = vrot.slane %v614, 4
      %v617 = vshll.u32 %v558, 16
      %v619 = vrot.slane %v617, 5
      %v620 = vor.u32 %v616, %v619
      %v621 = vrot.slane %v620, 4
      %v623 = vshll.u32 %v559, 16
      %v625 = vrot.slane %v623, 5
      %v626 = vsel %vm570, %v621, %v625
      %v628 = vshrl.u32 %v560, 16
      %v630 = vrot.slane %v628, 4
      %v631 = vshll.u32 %v560, 16
      %v633 = vrot.slane %v631, 5
      %v634 = vor.u32 %v630, %v633
      %v635 = vrot.slane %v634, 4
      %v637 = vshll.u32 %v561, 16
      %v639 = vrot.slane %v637, 5
      %v640 = vsel %vm570, %v635, %v639
      %v642 = vshrl.u32 %v562, 16
      %v644 = vrot.slane %v642, 4
      %v645 = vshll.u32 %v562, 16
      %v647 = vrot.slane %v645, 5
      %v648 = vor.u32 %v644, %v647
      %v649 = vrot.slane %v648, 4
      %v651 = vshll.u32 %v563, 16
      %v653 = vrot.slane %v651, 5
      %v654 = vsel %vm570, %v649, %v653
      %v656 = vshrl.u32 %v564, 16
      %v658 = vrot.slane %v656, 4
      %v659 = vshll.u32 %v564, 16
      %v661 = vrot.slane %v659, 5
      %v662 = vor.u32 %v658, %v661
      %v663 = vrot.slane %v662, 4
      %v665 = vshll.u32 %v565, 16
      %v667 = vrot.slane %v665, 5
      %v668 = vsel %vm570, %v663, %v667
      %v670 = vshrl.u32 %v566, 16
      %v672 = vrot.slane %v670, 4
      %v673 = vshll.u32 %v566, 16
      %v675 = vrot.slane %v673, 5
      %v676 = vor.u32 %v672, %v675
      %v677 = vrot.slane %v676, 4
      %v679 = vshll.u32 %v567, 16
      %v681 = vrot.slane %v679, 5
      %v682 = vsel %vm570, %v677, %v681
      %s683 = scalar_lea.vmem %s215, 128
      %v684 = vld [vmem:[%s683] sm:$0xf]
      %v685 = vld [vmem:[%s683 + $0x4] sm:$0xf]
      %v686 = vld [vmem:[%s683 + $0x8] sm:$0xf]
      %v687 = vld [vmem:[%s683 + $0xc] sm:$0xf]
      %v688 = vld [vmem:[%s683 + $0x10] sm:$0xf]
      %v689 = vld [vmem:[%s683 + $0x14] sm:$0xf]
      %v690 = vld [vmem:[%s683 + $0x18] sm:$0xf]
      %v691 = vld [vmem:[%s683 + $0x1c] sm:$0xf]
      %v692 = vld [vmem:[%s683 + $0x20] sm:$0xf]
      %v693 = vld [vmem:[%s683 + $0x24] sm:$0xf]
      %v694 = vld [vmem:[%s683 + $0x28] sm:$0xf]
      %v695 = vld [vmem:[%s683 + $0x2c] sm:$0xf]
      %v696 = vld [vmem:[%s683 + $0x30] sm:$0xf]
      %v697 = vld [vmem:[%s683 + $0x34] sm:$0xf]
      %v698 = vld [vmem:[%s683 + $0x38] sm:$0xf]
      %v699 = vld [vmem:[%s683 + $0x3c] sm:$0xf]
      %v700 = vunpack.c.l.b16 %v584
      %v701 = vunpack.c.l.b16 %v598
      %v702 = vunpack.c.l.b16 %v612
      %v703 = vunpack.c.l.b16 %v626
      %v704 = vunpack.c.l.b16 %v640
      %v705 = vunpack.c.l.b16 %v654
      %v706 = vunpack.c.l.b16 %v668
      %v707 = vunpack.c.l.b16 %v682
      %v708 = vpack.c.b16 %v701, %v700
      %v709 = vpack.c.b16 %v703, %v702
      %v710 = vpack.c.b16 %v705, %v704
      %v711 = vpack.c.b16 %v707, %v706
      %v732 = vunpack.c.l.b16 %v684
      %v733 = vunpack.c.l.b16 %v685
      %v734 = vunpack.c.l.b16 %v686
      %v735 = vunpack.c.l.b16 %v687
      %v736 = vunpack.c.l.b16 %v688
      %v737 = vunpack.c.l.b16 %v689
      %v738 = vunpack.c.l.b16 %v690
      %v739 = vunpack.c.l.b16 %v691
      %v740 = vunpack.c.l.b16 %v692
      %v741 = vunpack.c.l.b16 %v693
      %v742 = vunpack.c.l.b16 %v694
      %v743 = vunpack.c.l.b16 %v695
      %v744 = vunpack.c.l.b16 %v696
      %v745 = vunpack.c.l.b16 %v697
      %v746 = vunpack.c.l.b16 %v698
      %v747 = vunpack.c.l.b16 %v699
      %v748 = vpack.c.b16 %v733, %v732
      %v749 = vpack.c.b16 %v735, %v734
      %v750 = vpack.c.b16 %v737, %v736
      %v751 = vpack.c.b16 %v739, %v738
      %v752 = vpack.c.b16 %v741, %v740
      %v753 = vpack.c.b16 %v743, %v742
      %v754 = vpack.c.b16 %v745, %v744
      %v755 = vpack.c.b16 %v747, %v746
      %764 = vmatprep.subr.bf16.mxu0 0
      %765 = vmatpush1.bf16.msra.mxu0 %v748
      %766 = vmatprep.subr.bf16.mxu0 0
      %767 = vmatpush1.bf16.msra.mxu0 %v749
      %768 = vmatprep.subr.bf16.mxu0 0
      %769 = vmatpush1.bf16.msra.mxu0 %v750
      %770 = vmatprep.subr.bf16.mxu0 0
      %771 = vmatpush1.bf16.msra.mxu0 %v751
      %772 = vmatprep.subr.bf16.mxu0 0
      %773 = vmatpush1.bf16.msra.mxu0 %v752
      %774 = vmatprep.subr.bf16.mxu0 0
      %775 = vmatpush1.bf16.msra.mxu0 %v753
      %776 = vmatprep.subr.bf16.mxu0 0
      %777 = vmatpush1.bf16.msra.mxu0 %v754
      %778 = vmatprep.subr.bf16.mxu0 0
      %779 = vmatpush1.bf16.msra.mxu0 %v755
      %780 = vmatprep.subr.bf16.mxu0 0
      %781 = vmatpush1.bf16.msra.mxu0 0
      %782 = vmatprep.subr.bf16.mxu0 0
      %783 = vmatpush1.bf16.msra.mxu0 0
      %784 = vmatprep.subr.bf16.mxu0 0
      %785 = vmatpush1.bf16.msra.mxu0 0
      %786 = vmatprep.subr.bf16.mxu0 0
      %787 = vmatpush1.bf16.msra.mxu0 0
      %788 = vmatprep.subr.bf16.mxu0 0
      %789 = vmatpush1.bf16.msra.mxu0 0
      %790 = vmatprep.subr.bf16.mxu0 0
      %791 = vmatpush1.bf16.msra.mxu0 0
      %792 = vmatprep.subr.bf16.mxu0 0
      %793 = vmatpush1.bf16.msra.mxu0 0
      %794 = vmatprep.subr.bf16.mxu0 0
      %795 = vmatpush1.bf16.msra.mxu0 0
      %796 = vmatprep.mubr.bf16.mxu0 0
      %797 = vmatmul.mubr.bf16.gmra.mrb[0].mxu0 %v708
      %v798 = vpop.f32.mrb[0].mxu0
      %v799 = vadd.f32 0.0, %v798
      %v800 = vpop.f32.mrb[0].mxu0
      %v801 = vpop.f32.mrb[0].mxu0
      %v802 = vadd.f32 0.0, %v801
      %v803 = vpop.f32.mrb[0].mxu0
      %804 = vmatprep.mubr.bf16.mxu0 0
      %805 = vmatmul.mubr.bf16.gmra.mrb[0].mxu0 %v709
      %v806 = vpop.f32.mrb[0].mxu0
      %v807 = vadd.f32 0.0, %v806
      %v808 = vpop.f32.mrb[0].mxu0
      %v809 = vpop.f32.mrb[0].mxu0
      %v810 = vadd.f32 0.0, %v809
      %v811 = vpop.f32.mrb[0].mxu0
      %812 = vmatprep.mubr.bf16.mxu0 0
      %813 = vmatmul.mubr.bf16.gmra.mrb[0].mxu0 %v710
      %v814 = vpop.f32.mrb[0].mxu0
      %v815 = vadd.f32 0.0, %v814
      %v816 = vpop.f32.mrb[0].mxu0
      %v817 = vpop.f32.mrb[0].mxu0
      %v818 = vadd.f32 0.0, %v817
      %v819 = vpop.f32.mrb[0].mxu0
      %820 = vmatprep.mubr.bf16.mxu0 0
      %821 = vmatmul.mubr.bf16.gmra.mrb[0].mxu0 %v711
      %v822 = vpop.f32.mrb[0].mxu0
      %v823 = vadd.f32 0.0, %v822
      %v824 = vpop.f32.mrb[0].mxu0
      %v825 = vpop.f32.mrb[0].mxu0
      %v826 = vadd.f32 0.0, %v825
      %v827 = vpop.f32.mrb[0].mxu0
      %828 = vdwg.mxu0
      %v829 = vadd.f32 %v522, %v799
      %v830 = vadd.f32 %v525, %v802
      %v831 = vadd.f32 %v530, %v807
      %v832 = vadd.f32 %v533, %v810
      %v833 = vadd.f32 %v538, %v815
      %v834 = vadd.f32 %v541, %v818
      %v835 = vadd.f32 %v546, %v823
      %v836 = vadd.f32 %v549, %v826
      %s837 = scalar_lea.vmem %s210, 144
      %v838 = vld [vmem:[%s837] sm:$0xf]
      %v839 = vld [vmem:[%s837 + $0x8] sm:$0xf]
      %v840 = vld [vmem:[%s837 + $0x10] sm:$0xf]
      %v841 = vld [vmem:[%s837 + $0x18] sm:$0xf]
      %v842 = vld [vmem:[%s837 + $0x20] sm:$0xf]
      %v843 = vld [vmem:[%s837 + $0x28] sm:$0xf]
      %v844 = vld [vmem:[%s837 + $0x30] sm:$0xf]
      %v845 = vld [vmem:[%s837 + $0x38] sm:$0xf]
      %s846 = scalar_lea.vmem %s215, 192
      %v847 = vld [vmem:[%s846] sm:$0xf]
      %v848 = vld [vmem:[%s846 + $0x4] sm:$0xf]
      %v849 = vld [vmem:[%s846 + $0x8] sm:$0xf]
      %v850 = vld [vmem:[%s846 + $0xc] sm:$0xf]
      %v851 = vld [vmem:[%s846 + $0x10] sm:$0xf]
      %v852 = vld [vmem:[%s846 + $0x14] sm:$0xf]
      %v853 = vld [vmem:[%s846 + $0x18] sm:$0xf]
      %v854 = vld [vmem:[%s846 + $0x1c] sm:$0xf]
      %v855 = vld [vmem:[%s846 + $0x20] sm:$0xf]
      %v856 = vld [vmem:[%s846 + $0x24] sm:$0xf]
      %v857 = vld [vmem:[%s846 + $0x28] sm:$0xf]
      %v858 = vld [vmem:[%s846 + $0x2c] sm:$0xf]
      %v859 = vld [vmem:[%s846 + $0x30] sm:$0xf]
      %v860 = vld [vmem:[%s846 + $0x34] sm:$0xf]
      %v861 = vld [vmem:[%s846 + $0x38] sm:$0xf]
      %v862 = vld [vmem:[%s846 + $0x3c] sm:$0xf]
      %v871 = vunpack.c.l.b16 %v838
      %v872 = vunpack.c.l.b16 %v839
      %v873 = vunpack.c.l.b16 %v840
      %v874 = vunpack.c.l.b16 %v841
      %v875 = vunpack.c.l.b16 %v842
      %v876 = vunpack.c.l.b16 %v843
      %v877 = vunpack.c.l.b16 %v844
      %v878 = vunpack.c.l.b16 %v845
      %v879 = vpack.c.b16 %v872, %v871
      %v880 = vpack.c.b16 %v874, %v873
      %v881 = vpack.c.b16 %v876, %v875
      %v882 = vpack.c.b16 %v878, %v877
      %v903 = vunpack.c.l.b16 %v847
      %v904 = vunpack.c.l.b16 %v848
      %v905 = vunpack.c.l.b16 %v849
      %v906 = vunpack.c.l.b16 %v850
      %v907 = vunpack.c.l.b16 %v851
      %v908 = vunpack.c.l.b16 %v852
      %v909 = vunpack.c.l.b16 %v853
      %v910 = vunpack.c.l.b16 %v854
      %v911 = vunpack.c.l.b16 %v855
      %v912 = vunpack.c.l.b16 %v856
      %v913 = vunpack.c.l.b16 %v857
      %v914 = vunpack.c.l.b16 %v858
      %v915 = vunpack.c.l.b16 %v859
      %v916 = vunpack.c.l.b16 %v860
      %v917 = vunpack.c.l.b16 %v861
      %v918 = vunpack.c.l.b16 %v862
      %v919 = vpack.c.b16 %v904, %v903
      %v920 = vpack.c.b16 %v906, %v905
      %v921 = vpack.c.b16 %v908, %v907
      %v922 = vpack.c.b16 %v910, %v909
      %v923 = vpack.c.b16 %v912, %v911
      %v924 = vpack.c.b16 %v914, %v913
      %v925 = vpack.c.b16 %v916, %v915
      %v926 = vpack.c.b16 %v918, %v917
      %935 = vmatprep.subr.bf16.mxu0 0
      %936 = vmatpush1.bf16.msra.mxu0 %v919
      %937 = vmatprep.subr.bf16.mxu0 0
      %938 = vmatpush1.bf16.msra.mxu0 %v920
      %939 = vmatprep.subr.bf16.mxu0 0
      %940 = vmatpush1.bf16.msra.mxu0 %v921
      %941 = vmatprep.subr.bf16.mxu0 0
      %942 = vmatpush1.bf16.msra.mxu0 %v922
      %943 = vmatprep.subr.bf16.mxu0 0
      %944 = vmatpush1.bf16.msra.mxu0 %v923
      %945 = vmatprep.subr.bf16.mxu0 0
      %946 = vmatpush1.bf16.msra.mxu0 %v924
      %947 = vmatprep.subr.bf16.mxu0 0
      %948 = vmatpush1.bf16.msra.mxu0 %v925
      %949 = vmatprep.subr.bf16.mxu0 0
      %950 = vmatpush1.bf16.msra.mxu0 %v926
      %951 = vmatprep.subr.bf16.mxu0 0
      %952 = vmatpush1.bf16.msra.mxu0 0
      %953 = vmatprep.subr.bf16.mxu0 0
      %954 = vmatpush1.bf16.msra.mxu0 0
      %955 = vmatprep.subr.bf16.mxu0 0
      %956 = vmatpush1.bf16.msra.mxu0 0
      %957 = vmatprep.subr.bf16.mxu0 0
      %958 = vmatpush1.bf16.msra.mxu0 0
      %959 = vmatprep.subr.bf16.mxu0 0
      %960 = vmatpush1.bf16.msra.mxu0 0
      %961 = vmatprep.subr.bf16.mxu0 0
      %962 = vmatpush1.bf16.msra.mxu0 0
      %963 = vmatprep.subr.bf16.mxu0 0
      %964 = vmatpush1.bf16.msra.mxu0 0
      %965 = vmatprep.subr.bf16.mxu0 0
      %966 = vmatpush1.bf16.msra.mxu0 0
      %967 = vmatprep.mubr.bf16.mxu0 0
      %968 = vmatmul.mubr.bf16.gmra.mrb[0].mxu0 %v879
      %v969 = vpop.f32.mrb[0].mxu0
      %v970 = vadd.f32 0.0, %v969
      %v971 = vpop.f32.mrb[0].mxu0
      %v972 = vpop.f32.mrb[0].mxu0
      %v973 = vadd.f32 0.0, %v972
      %v974 = vpop.f32.mrb[0].mxu0
      %975 = vmatprep.mubr.bf16.mxu0 0
      %976 = vmatmul.mubr.bf16.gmra.mrb[0].mxu0 %v880
      %v977 = vpop.f32.mrb[0].mxu0
      %v978 = vadd.f32 0.0, %v977
      %v979 = vpop.f32.mrb[0].mxu0
      %v980 = vpop.f32.mrb[0].mxu0
      %v981 = vadd.f32 0.0, %v980
      %v982 = vpop.f32.mrb[0].mxu0
      %983 = vmatprep.mubr.bf16.mxu0 0
      %984 = vmatmul.mubr.bf16.gmra.mrb[0].mxu0 %v881
      %v985 = vpop.f32.mrb[0].mxu0
      %v986 = vadd.f32 0.0, %v985
      %v987 = vpop.f32.mrb[0].mxu0
      %v988 = vpop.f32.mrb[0].mxu0
      %v989 = vadd.f32 0.0, %v988
      %v990 = vpop.f32.mrb[0].mxu0
      %991 = vmatprep.mubr.bf16.mxu0 0
      %992 = vmatmul.mubr.bf16.gmra.mrb[0].mxu0 %v882
      %v993 = vpop.f32.mrb[0].mxu0
      %v994 = vadd.f32 0.0, %v993
      %v995 = vpop.f32.mrb[0].mxu0
      %v996 = vpop.f32.mrb[0].mxu0
      %v997 = vadd.f32 0.0, %v996
      %v998 = vpop.f32.mrb[0].mxu0
      %999 = vdwg.mxu0
      %v1000 = vadd.f32 %v829, %v970
      %v1001 = vadd.f32 %v830, %v973
      %v1002 = vadd.f32 %v831, %v978
      %v1003 = vadd.f32 %v832, %v981
      %v1004 = vadd.f32 %v833, %v986
      %v1005 = vadd.f32 %v834, %v989
      %v1006 = vadd.f32 %v835, %v994
      %v1007 = vadd.f32 %v836, %v997
      %s1008 = scalar_lea.vmem %s210, 216
      %v1009 = vld [vmem:[%s1008] sm:$0xf]
      %v1010 = vld [vmem:[%s1008 + $0x8] sm:$0xf]
      %v1011 = vld [vmem:[%s1008 + $0x10] sm:$0xf]
      %v1012 = vld [vmem:[%s1008 + $0x18] sm:$0xf]
      %v1013 = vld [vmem:[%s1008 + $0x20] sm:$0xf]
      %v1014 = vld [vmem:[%s1008 + $0x28] sm:$0xf]
      %v1015 = vld [vmem:[%s1008 + $0x30] sm:$0xf]
      %v1016 = vld [vmem:[%s1008 + $0x38] sm:$0xf]
      %s1017 = scalar_lea.vmem %s215, 256
      %v1018 = vld [vmem:[%s1017] sm:$0xf]
      %v1019 = vld [vmem:[%s1017 + $0x4] sm:$0xf]
      %v1020 = vld [vmem:[%s1017 + $0x8] sm:$0xf]
      %v1021 = vld [vmem:[%s1017 + $0xc] sm:$0xf]
      %v1022 = vld [vmem:[%s1017 + $0x10] sm:$0xf]
      %v1023 = vld [vmem:[%s1017 + $0x14] sm:$0xf]
      %v1024 = vld [vmem:[%s1017 + $0x18] sm:$0xf]
      %v1025 = vld [vmem:[%s1017 + $0x1c] sm:$0xf]
      %v1026 = vld [vmem:[%s1017 + $0x20] sm:$0xf]
      %v1027 = vld [vmem:[%s1017 + $0x24] sm:$0xf]
      %v1028 = vld [vmem:[%s1017 + $0x28] sm:$0xf]
      %v1029 = vld [vmem:[%s1017 + $0x2c] sm:$0xf]
      %v1030 = vld [vmem:[%s1017 + $0x30] sm:$0xf]
      %v1031 = vld [vmem:[%s1017 + $0x34] sm:$0xf]
      %v1032 = vld [vmem:[%s1017 + $0x38] sm:$0xf]
      %v1033 = vld [vmem:[%s1017 + $0x3c] sm:$0xf]
      %v1042 = vunpack.c.l.b16 %v1009
      %v1043 = vunpack.c.l.b16 %v1010
      %v1044 = vunpack.c.l.b16 %v1011
      %v1045 = vunpack.c.l.b16 %v1012
      %v1046 = vunpack.c.l.b16 %v1013
      %v1047 = vunpack.c.l.b16 %v1014
      %v1048 = vunpack.c.l.b16 %v1015
      %v1049 = vunpack.c.l.b16 %v1016
      %v1050 = vpack.c.b16 %v1043, %v1042
      %v1051 = vpack.c.b16 %v1045, %v1044
      %v1052 = vpack.c.b16 %v1047, %v1046
      %v1053 = vpack.c.b16 %v1049, %v1048
      %v1074 = vunpack.c.l.b16 %v1018
      %v1075 = vunpack.c.l.b16 %v1019
      %v1076 = vunpack.c.l.b16 %v1020
      %v1077 = vunpack.c.l.b16 %v1021
      %v1078 = vunpack.c.l.b16 %v1022
      %v1079 = vunpack.c.l.b16 %v1023
      %v1080 = vunpack.c.l.b16 %v1024
      %v1081 = vunpack.c.l.b16 %v1025
      %v1082 = vunpack.c.l.b16 %v1026
      %v1083 = vunpack.c.l.b16 %v1027
      %v1084 = vunpack.c.l.b16 %v1028
      %v1085 = vunpack.c.l.b16 %v1029
      %v1086 = vunpack.c.l.b16 %v1030
      %v1087 = vunpack.c.l.b16 %v1031
      %v1088 = vunpack.c.l.b16 %v1032
      %v1089 = vunpack.c.l.b16 %v1033
      %v1090 = vpack.c.b16 %v1075, %v1074
      %v1091 = vpack.c.b16 %v1077, %v1076
      %v1092 = vpack.c.b16 %v1079, %v1078
      %v1093 = vpack.c.b16 %v1081, %v1080
      %v1094 = vpack.c.b16 %v1083, %v1082
      %v1095 = vpack.c.b16 %v1085, %v1084
      %v1096 = vpack.c.b16 %v1087, %v1086
      %v1097 = vpack.c.b16 %v1089, %v1088
      %1106 = vmatprep.subr.bf16.mxu0 0
      %1107 = vmatpush1.bf16.msra.mxu0 %v1090
      %1108 = vmatprep.subr.bf16.mxu0 0
      %1109 = vmatpush1.bf16.msra.mxu0 %v1091
      %1110 = vmatprep.subr.bf16.mxu0 0
      %1111 = vmatpush1.bf16.msra.mxu0 %v1092
      %1112 = vmatprep.subr.bf16.mxu0 0
      %1113 = vmatpush1.bf16.msra.mxu0 %v1093
      %1114 = vmatprep.subr.bf16.mxu0 0
      %1115 = vmatpush1.bf16.msra.mxu0 %v1094
      %1116 = vmatprep.subr.bf16.mxu0 0
      %1117 = vmatpush1.bf16.msra.mxu0 %v1095
      %1118 = vmatprep.subr.bf16.mxu0 0
      %1119 = vmatpush1.bf16.msra.mxu0 %v1096
      %1120 = vmatprep.subr.bf16.mxu0 0
      %1121 = vmatpush1.bf16.msra.mxu0 %v1097
      %1122 = vmatprep.subr.bf16.mxu0 0
      %1123 = vmatpush1.bf16.msra.mxu0 0
      %1124 = vmatprep.subr.bf16.mxu0 0
      %1125 = vmatpush1.bf16.msra.mxu0 0
      %1126 = vmatprep.subr.bf16.mxu0 0
      %1127 = vmatpush1.bf16.msra.mxu0 0
      %1128 = vmatprep.subr.bf16.mxu0 0
      %1129 = vmatpush1.bf16.msra.mxu0 0
      %1130 = vmatprep.subr.bf16.mxu0 0
      %1131 = vmatpush1.bf16.msra.mxu0 0
      %1132 = vmatprep.subr.bf16.mxu0 0
      %1133 = vmatpush1.bf16.msra.mxu0 0
      %1134 = vmatprep.subr.bf16.mxu0 0
      %1135 = vmatpush1.bf16.msra.mxu0 0
      %1136 = vmatprep.subr.bf16.mxu0 0
      %1137 = vmatpush1.bf16.msra.mxu0 0
      %1138 = vmatprep.mubr.bf16.mxu0 0
      %1139 = vmatmul.mubr.bf16.gmra.mrb[0].mxu0 %v1050
      %v1140 = vpop.f32.mrb[0].mxu0
      %v1141 = vadd.f32 0.0, %v1140
      %v1142 = vpop.f32.mrb[0].mxu0
      %v1143 = vpop.f32.mrb[0].mxu0
      %v1144 = vadd.f32 0.0, %v1143
      %v1145 = vpop.f32.mrb[0].mxu0
      %1146 = vmatprep.mubr.bf16.mxu0 0
      %1147 = vmatmul.mubr.bf16.gmra.mrb[0].mxu0 %v1051
      %v1148 = vpop.f32.mrb[0].mxu0
      %v1149 = vadd.f32 0.0, %v1148
      %v1150 = vpop.f32.mrb[0].mxu0
      %v1151 = vpop.f32.mrb[0].mxu0
      %v1152 = vadd.f32 0.0, %v1151
      %v1153 = vpop.f32.mrb[0].mxu0
      %1154 = vmatprep.mubr.bf16.mxu0 0
      %1155 = vmatmul.mubr.bf16.gmra.mrb[0].mxu0 %v1052
      %v1156 = vpop.f32.mrb[0].mxu0
      %v1157 = vadd.f32 0.0, %v1156
      %v1158 = vpop.f32.mrb[0].mxu0
      %v1159 = vpop.f32.mrb[0].mxu0
      %v1160 = vadd.f32 0.0, %v1159
      %v1161 = vpop.f32.mrb[0].mxu0
      %1162 = vmatprep.mubr.bf16.mxu0 0
      %1163 = vmatmul.mubr.bf16.gmra.mrb[0].mxu0 %v1053
      %v1164 = vpop.f32.mrb[0].mxu0
      %v1165 = vadd.f32 0.0, %v1164
      %v1166 = vpop.f32.mrb[0].mxu0
      %v1167 = vpop.f32.mrb[0].mxu0
      %v1168 = vadd.f32 0.0, %v1167
      %v1169 = vpop.f32.mrb[0].mxu0
      %1170 = vdwg.mxu0
      %v1171 = vadd.f32 %v1000, %v1141
      %v1172 = vadd.f32 %v1001, %v1144
      %v1173 = vadd.f32 %v1002, %v1149
      %v1174 = vadd.f32 %v1003, %v1152
      %v1175 = vadd.f32 %v1004, %v1157
      %v1176 = vadd.f32 %v1005, %v1160
      %v1177 = vadd.f32 %v1006, %v1165
      %v1178 = vadd.f32 %v1007, %v1168
      %v1179 = vld [vmem:[%s837] sm:$0xf]
      %v1180 = vld [vmem:[%s837 + $0x4] sm:$0x1]
      %v1181 = vld [vmem:[%s837 + $0x8] sm:$0xf]
      %v1182 = vld [vmem:[%s837 + $0xc] sm:$0x1]
      %v1183 = vld [vmem:[%s837 + $0x10] sm:$0xf]
      %v1184 = vld [vmem:[%s837 + $0x14] sm:$0x1]
      %v1185 = vld [vmem:[%s837 + $0x18] sm:$0xf]
      %v1186 = vld [vmem:[%s837 + $0x1c] sm:$0x1]
      %v1187 = vld [vmem:[%s837 + $0x20] sm:$0xf]
      %v1188 = vld [vmem:[%s837 + $0x24] sm:$0x1]
      %v1189 = vld [vmem:[%s837 + $0x28] sm:$0xf]
      %v1190 = vld [vmem:[%s837 + $0x2c] sm:$0x1]
      %v1191 = vld [vmem:[%s837 + $0x30] sm:$0xf]
      %v1192 = vld [vmem:[%s837 + $0x34] sm:$0x1]
      %v1193 = vld [vmem:[%s837 + $0x38] sm:$0xf]
      %v1194 = vld [vmem:[%s837 + $0x3c] sm:$0x1]
      %v1196 = vshrl.u32 %v1179, 16
      %v1198 = vrot.slane %v1196, 4
      %v1199 = vshll.u32 %v1179, 16
      %v1201 = vrot.slane %v1199, 5
      %v1202 = vor.u32 %v1198, %v1201
      %v1203 = vrot.slane %v1202, 4
      %v1205 = vshll.u32 %v1180, 16
      %v1207 = vrot.slane %v1205, 5
      %v1208 = vsel %vm570, %v1203, %v1207
      %v1210 = vshrl.u32 %v1181, 16
      %v1212 = vrot.slane %v1210, 4
      %v1213 = vshll.u32 %v1181, 16
      %v1215 = vrot.slane %v1213, 5
      %v1216 = vor.u32 %v1212, %v1215
      %v1217 = vrot.slane %v1216, 4
      %v1219 = vshll.u32 %v1182, 16
      %v1221 = vrot.slane %v1219, 5
      %v1222 = vsel %vm570, %v1217, %v1221
      %v1224 = vshrl.u32 %v1183, 16
      %v1226 = vrot.slane %v1224, 4
      %v1227 = vshll.u32 %v1183, 16
      %v1229 = vrot.slane %v1227, 5
      %v1230 = vor.u32 %v1226, %v1229
      %v1231 = vrot.slane %v1230, 4
      %v1233 = vshll.u32 %v1184, 16
      %v1235 = vrot.slane %v1233, 5
      %v1236 = vsel %vm570, %v1231, %v1235
      %v1238 = vshrl.u32 %v1185, 16
      %v1240 = vrot.slane %v1238, 4
      %v1241 = vshll.u32 %v1185, 16
      %v1243 = vrot.slane %v1241, 5
      %v1244 = vor.u32 %v1240, %v1243
      %v1245 = vrot.slane %v1244, 4
      %v1247 = vshll.u32 %v1186, 16
      %v1249 = vrot.slane %v1247, 5
      %v1250 = vsel %vm570, %v1245, %v1249
      %v1252 = vshrl.u32 %v1187, 16
      %v1254 = vrot.slane %v1252, 4
      %v1255 = vshll.u32 %v1187, 16
      %v1257 = vrot.slane %v1255, 5
      %v1258 = vor.u32 %v1254, %v1257
      %v1259 = vrot.slane %v1258, 4
      %v1261 = vshll.u32 %v1188, 16
      %v1263 = vrot.slane %v1261, 5
      %v1264 = vsel %vm570, %v1259, %v1263
      %v1266 = vshrl.u32 %v1189, 16
      %v1268 = vrot.slane %v1266, 4
      %v1269 = vshll.u32 %v1189, 16
      %v1271 = vrot.slane %v1269, 5
      %v1272 = vor.u32 %v1268, %v1271
      %v1273 = vrot.slane %v1272, 4
      %v1275 = vshll.u32 %v1190, 16
      %v1277 = vrot.slane %v1275, 5
      %v1278 = vsel %vm570, %v1273, %v1277
      %v1280 = vshrl.u32 %v1191, 16
      %v1282 = vrot.slane %v1280, 4
      %v1283 = vshll.u32 %v1191, 16
      %v1285 = vrot.slane %v1283, 5
      %v1286 = vor.u32 %v1282, %v1285
      %v1287 = vrot.slane %v1286, 4
      %v1289 = vshll.u32 %v1192, 16
      %v1291 = vrot.slane %v1289, 5
      %v1292 = vsel %vm570, %v1287, %v1291
      %v1294 = vshrl.u32 %v1193, 16
      %v1296 = vrot.slane %v1294, 4
      %v1297 = vshll.u32 %v1193, 16
      %v1299 = vrot.slane %v1297, 5
      %v1300 = vor.u32 %v1296, %v1299
      %v1301 = vrot.slane %v1300, 4
      %v1303 = vshll.u32 %v1194, 16
      %v1305 = vrot.slane %v1303, 5
      %v1306 = vsel %vm570, %v1301, %v1305
      %s1307 = scalar_lea.vmem %s215, 320
      %v1308 = vld [vmem:[%s1307] sm:$0xf]
      %v1309 = vld [vmem:[%s1307 + $0x4] sm:$0xf]
      %v1310 = vld [vmem:[%s1307 + $0x8] sm:$0xf]
      %v1311 = vld [vmem:[%s1307 + $0xc] sm:$0xf]
      %v1312 = vld [vmem:[%s1307 + $0x10] sm:$0xf]
      %v1313 = vld [vmem:[%s1307 + $0x14] sm:$0xf]
      %v1314 = vld [vmem:[%s1307 + $0x18] sm:$0xf]
      %v1315 = vld [vmem:[%s1307 + $0x1c] sm:$0xf]
      %v1316 = vld [vmem:[%s1307 + $0x20] sm:$0xf]
      %v1317 = vld [vmem:[%s1307 + $0x24] sm:$0xf]
      %v1318 = vld [vmem:[%s1307 + $0x28] sm:$0xf]
      %v1319 = vld [vmem:[%s1307 + $0x2c] sm:$0xf]
      %v1320 = vld [vmem:[%s1307 + $0x30] sm:$0xf]
      %v1321 = vld [vmem:[%s1307 + $0x34] sm:$0xf]
      %v1322 = vld [vmem:[%s1307 + $0x38] sm:$0xf]
      %v1323 = vld [vmem:[%s1307 + $0x3c] sm:$0xf]
      %v1324 = vunpack.c.l.b16 %v1208
      %v1325 = vunpack.c.l.b16 %v1222
      %v1326 = vunpack.c.l.b16 %v1236
      %v1327 = vunpack.c.l.b16 %v1250
      %v1328 = vunpack.c.l.b16 %v1264
      %v1329 = vunpack.c.l.b16 %v1278
      %v1330 = vunpack.c.l.b16 %v1292
      %v1331 = vunpack.c.l.b16 %v1306
      %v1332 = vpack.c.b16 %v1325, %v1324
      %v1333 = vpack.c.b16 %v1327, %v1326
      %v1334 = vpack.c.b16 %v1329, %v1328
      %v1335 = vpack.c.b16 %v1331, %v1330
      %v1356 = vunpack.c.l.b16 %v1308
      %v1357 = vunpack.c.l.b16 %v1309
      %v1358 = vunpack.c.l.b16 %v1310
      %v1359 = vunpack.c.l.b16 %v1311
      %v1360 = vunpack.c.l.b16 %v1312
      %v1361 = vunpack.c.l.b16 %v1313
      %v1362 = vunpack.c.l.b16 %v1314
      %v1363 = vunpack.c.l.b16 %v1315
      %v1364 = vunpack.c.l.b16 %v1316
      %v1365 = vunpack.c.l.b16 %v1317
      %v1366 = vunpack.c.l.b16 %v1318
      %v1367 = vunpack.c.l.b16 %v1319
      %v1368 = vunpack.c.l.b16 %v1320
      %v1369 = vunpack.c.l.b16 %v1321
      %v1370 = vunpack.c.l.b16 %v1322
      %v1371 = vunpack.c.l.b16 %v1323
      %v1372 = vpack.c.b16 %v1357, %v1356
      %v1373 = vpack.c.b16 %v1359, %v1358
      %v1374 = vpack.c.b16 %v1361, %v1360
      %v1375 = vpack.c.b16 %v1363, %v1362
      %v1376 = vpack.c.b16 %v1365, %v1364
      %v1377 = vpack.c.b16 %v1367, %v1366
      %v1378 = vpack.c.b16 %v1369, %v1368
      %v1379 = vpack.c.b16 %v1371, %v1370
      %1388 = vmatprep.subr.bf16.mxu0 0
      %1389 = vmatpush1.bf16.msra.mxu0 %v1372
      %1390 = vmatprep.subr.bf16.mxu0 0
      %1391 = vmatpush1.bf16.msra.mxu0 %v1373
      %1392 = vmatprep.subr.bf16.mxu0 0
      %1393 = vmatpush1.bf16.msra.mxu0 %v1374
      %1394 = vmatprep.subr.bf16.mxu0 0
      %1395 = vmatpush1.bf16.msra.mxu0 %v1375
      %1396 = vmatprep.subr.bf16.mxu0 0
      %1397 = vmatpush1.bf16.msra.mxu0 %v1376
      %1398 = vmatprep.subr.bf16.mxu0 0
      %1399 = vmatpush1.bf16.msra.mxu0 %v1377
      %1400 = vmatprep.subr.bf16.mxu0 0
      %1401 = vmatpush1.bf16.msra.mxu0 %v1378
      %1402 = vmatprep.subr.bf16.mxu0 0
      %1403 = vmatpush1.bf16.msra.mxu0 %v1379
      %1404 = vmatprep.subr.bf16.mxu0 0
      %1405 = vmatpush1.bf16.msra.mxu0 0
      %1406 = vmatprep.subr.bf16.mxu0 0
      %1407 = vmatpush1.bf16.msra.mxu0 0
      %1408 = vmatprep.subr.bf16.mxu0 0
      %1409 = vmatpush1.bf16.msra.mxu0 0
      %1410 = vmatprep.subr.bf16.mxu0 0
      %1411 = vmatpush1.bf16.msra.mxu0 0
      %1412 = vmatprep.subr.bf16.mxu0 0
      %1413 = vmatpush1.bf16.msra.mxu0 0
      %1414 = vmatprep.subr.bf16.mxu0 0
      %1415 = vmatpush1.bf16.msra.mxu0 0
      %1416 = vmatprep.subr.bf16.mxu0 0
      %1417 = vmatpush1.bf16.msra.mxu0 0
      %1418 = vmatprep.subr.bf16.mxu0 0
      %1419 = vmatpush1.bf16.msra.mxu0 0
      %1420 = vmatprep.mubr.bf16.mxu0 0
      %1421 = vmatmul.mubr.bf16.gmra.mrb[0].mxu0 %v1332
      %v1422 = vpop.f32.mrb[0].mxu0
      %v1423 = vadd.f32 0.0, %v1422
      %v1424 = vpop.f32.mrb[0].mxu0
      %v1425 = vpop.f32.mrb[0].mxu0
      %v1426 = vadd.f32 0.0, %v1425
      %v1427 = vpop.f32.mrb[0].mxu0
      %1428 = vmatprep.mubr.bf16.mxu0 0
      %1429 = vmatmul.mubr.bf16.gmra.mrb[0].mxu0 %v1333
      %v1430 = vpop.f32.mrb[0].mxu0
      %v1431 = vadd.f32 0.0, %v1430
      %v1432 = vpop.f32.mrb[0].mxu0
      %v1433 = vpop.f32.mrb[0].mxu0
      %v1434 = vadd.f32 0.0, %v1433
      %v1435 = vpop.f32.mrb[0].mxu0
      %1436 = vmatprep.mubr.bf16.mxu0 0
      %1437 = vmatmul.mubr.bf16.gmra.mrb[0].mxu0 %v1334
      %v1438 = vpop.f32.mrb[0].mxu0
      %v1439 = vadd.f32 0.0, %v1438
      %v1440 = vpop.f32.mrb[0].mxu0
      %v1441 = vpop.f32.mrb[0].mxu0
      %v1442 = vadd.f32 0.0, %v1441
      %v1443 = vpop.f32.mrb[0].mxu0
      %1444 = vmatprep.mubr.bf16.mxu0 0
      %1445 = vmatmul.mubr.bf16.gmra.mrb[0].mxu0 %v1335
      %v1446 = vpop.f32.mrb[0].mxu0
      %v1447 = vadd.f32 0.0, %v1446
      %v1448 = vpop.f32.mrb[0].mxu0
      %v1449 = vpop.f32.mrb[0].mxu0
      %v1450 = vadd.f32 0.0, %v1449
      %v1451 = vpop.f32.mrb[0].mxu0
      %1452 = vdwg.mxu0
      %v1453 = vadd.f32 %v1171, %v1423
      %v1454 = vadd.f32 %v1172, %v1426
      %v1455 = vadd.f32 %v1173, %v1431
      %v1456 = vadd.f32 %v1174, %v1434
      %v1457 = vadd.f32 %v1175, %v1439
      %v1458 = vadd.f32 %v1176, %v1442
      %v1459 = vadd.f32 %v1177, %v1447
      %v1460 = vadd.f32 %v1178, %v1450
      %s1461 = scalar_lea.vmem %s210, 8
      %v1462 = vld [vmem:[%s1461] sm:$0xf]
      %v1463 = vld [vmem:[%s1461 + $0x8] sm:$0xf]
      %v1464 = vld [vmem:[%s1461 + $0x10] sm:$0xf]
      %v1465 = vld [vmem:[%s1461 + $0x18] sm:$0xf]
      %v1466 = vld [vmem:[%s1461 + $0x20] sm:$0xf]
      %v1467 = vld [vmem:[%s1461 + $0x28] sm:$0xf]
      %v1468 = vld [vmem:[%s1461 + $0x30] sm:$0xf]
      %v1469 = vld [vmem:[%s1461 + $0x38] sm:$0xf]
      %s1470 = scalar_lea.vmem %s215, 384
      %v1471 = vld [vmem:[%s1470] sm:$0xf]
      %v1472 = vld [vmem:[%s1470 + $0x4] sm:$0xf]
      %v1473 = vld [vmem:[%s1470 + $0x8] sm:$0xf]
      %v1474 = vld [vmem:[%s1470 + $0xc] sm:$0xf]
      %v1475 = vld [vmem:[%s1470 + $0x10] sm:$0xf]
      %v1476 = vld [vmem:[%s1470 + $0x14] sm:$0xf]
      %v1477 = vld [vmem:[%s1470 + $0x18] sm:$0xf]
      %v1478 = vld [vmem:[%s1470 + $0x1c] sm:$0xf]
      %v1479 = vld [vmem:[%s1470 + $0x20] sm:$0xf]
      %v1480 = vld [vmem:[%s1470 + $0x24] sm:$0xf]
      %v1481 = vld [vmem:[%s1470 + $0x28] sm:$0xf]
      %v1482 = vld [vmem:[%s1470 + $0x2c] sm:$0xf]
      %v1483 = vld [vmem:[%s1470 + $0x30] sm:$0xf]
      %v1484 = vld [vmem:[%s1470 + $0x34] sm:$0xf]
      %v1485 = vld [vmem:[%s1470 + $0x38] sm:$0xf]
      %v1486 = vld [vmem:[%s1470 + $0x3c] sm:$0xf]
      %v1495 = vunpack.c.l.b16 %v1462
      %v1496 = vunpack.c.l.b16 %v1463
      %v1497 = vunpack.c.l.b16 %v1464
      %v1498 = vunpack.c.l.b16 %v1465
      %v1499 = vunpack.c.l.b16 %v1466
      %v1500 = vunpack.c.l.b16 %v1467
      %v1501 = vunpack.c.l.b16 %v1468
      %v1502 = vunpack.c.l.b16 %v1469
      %v1503 = vpack.c.b16 %v1496, %v1495
      %v1504 = vpack.c.b16 %v1498, %v1497
      %v1505 = vpack.c.b16 %v1500, %v1499
      %v1506 = vpack.c.b16 %v1502, %v1501
      %v1527 = vunpack.c.l.b16 %v1471
      %v1528 = vunpack.c.l.b16 %v1472
      %v1529 = vunpack.c.l.b16 %v1473
      %v1530 = vunpack.c.l.b16 %v1474
      %v1531 = vunpack.c.l.b16 %v1475
      %v1532 = vunpack.c.l.b16 %v1476
      %v1533 = vunpack.c.l.b16 %v1477
      %v1534 = vunpack.c.l.b16 %v1478
      %v1535 = vunpack.c.l.b16 %v1479
      %v1536 = vunpack.c.l.b16 %v1480
      %v1537 = vunpack.c.l.b16 %v1481
      %v1538 = vunpack.c.l.b16 %v1482
      %v1539 = vunpack.c.l.b16 %v1483
      %v1540 = vunpack.c.l.b16 %v1484
      %v1541 = vunpack.c.l.b16 %v1485
      %v1542 = vunpack.c.l.b16 %v1486
      %v1543 = vpack.c.b16 %v1528, %v1527
      %v1544 = vpack.c.b16 %v1530, %v1529
      %v1545 = vpack.c.b16 %v1532, %v1531
      %v1546 = vpack.c.b16 %v1534, %v1533
      %v1547 = vpack.c.b16 %v1536, %v1535
      %v1548 = vpack.c.b16 %v1538, %v1537
      %v1549 = vpack.c.b16 %v1540, %v1539
      %v1550 = vpack.c.b16 %v1542, %v1541
      %1559 = vmatprep.subr.bf16.mxu0 0
      %1560 = vmatpush1.bf16.msra.mxu0 %v1543
      %1561 = vmatprep.subr.bf16.mxu0 0
      %1562 = vmatpush1.bf16.msra.mxu0 %v1544
      %1563 = vmatprep.subr.bf16.mxu0 0
      %1564 = vmatpush1.bf16.msra.mxu0 %v1545
      %1565 = vmatprep.subr.bf16.mxu0 0
      %1566 = vmatpush1.bf16.msra.mxu0 %v1546
      %1567 = vmatprep.subr.bf16.mxu0 0
      %1568 = vmatpush1.bf16.msra.mxu0 %v1547
      %1569 = vmatprep.subr.bf16.mxu0 0
      %1570 = vmatpush1.bf16.msra.mxu0 %v1548
      %1571 = vmatprep.subr.bf16.mxu0 0
      %1572 = vmatpush1.bf16.msra.mxu0 %v1549
      %1573 = vmatprep.subr.bf16.mxu0 0
      %1574 = vmatpush1.bf16.msra.mxu0 %v1550
      %1575 = vmatprep.subr.bf16.mxu0 0
      %1576 = vmatpush1.bf16.msra.mxu0 0
      %1577 = vmatprep.subr.bf16.mxu0 0
      %1578 = vmatpush1.bf16.msra.mxu0 0
      %1579 = vmatprep.subr.bf16.mxu0 0
      %1580 = vmatpush1.bf16.msra.mxu0 0
      %1581 = vmatprep.subr.bf16.mxu0 0
      %1582 = vmatpush1.bf16.msra.mxu0 0
      %1583 = vmatprep.subr.bf16.mxu0 0
      %1584 = vmatpush1.bf16.msra.mxu0 0
      %1585 = vmatprep.subr.bf16.mxu0 0
      %1586 = vmatpush1.bf16.msra.mxu0 0
      %1587 = vmatprep.subr.bf16.mxu0 0
      %1588 = vmatpush1.bf16.msra.mxu0 0
      %1589 = vmatprep.subr.bf16.mxu0 0
      %1590 = vmatpush1.bf16.msra.mxu0 0
      %1591 = vmatprep.mubr.bf16.mxu0 0
      %1592 = vmatmul.mubr.bf16.gmra.mrb[0].mxu0 %v1503
      %v1593 = vpop.f32.mrb[0].mxu0
      %v1594 = vadd.f32 0.0, %v1593
      %v1595 = vpop.f32.mrb[0].mxu0
      %v1596 = vpop.f32.mrb[0].mxu0
      %v1597 = vadd.f32 0.0, %v1596
      %v1598 = vpop.f32.mrb[0].mxu0
      %1599 = vmatprep.mubr.bf16.mxu0 0
      %1600 = vmatmul.mubr.bf16.gmra.mrb[0].mxu0 %v1504
      %v1601 = vpop.f32.mrb[0].mxu0
      %v1602 = vadd.f32 0.0, %v1601
      %v1603 = vpop.f32.mrb[0].mxu0
      %v1604 = vpop.f32.mrb[0].mxu0
      %v1605 = vadd.f32 0.0, %v1604
      %v1606 = vpop.f32.mrb[0].mxu0
      %1607 = vmatprep.mubr.bf16.mxu0 0
      %1608 = vmatmul.mubr.bf16.gmra.mrb[0].mxu0 %v1505
      %v1609 = vpop.f32.mrb[0].mxu0
      %v1610 = vadd.f32 0.0, %v1609
      %v1611 = vpop.f32.mrb[0].mxu0
      %v1612 = vpop.f32.mrb[0].mxu0
      %v1613 = vadd.f32 0.0, %v1612
      %v1614 = vpop.f32.mrb[0].mxu0
      %1615 = vmatprep.mubr.bf16.mxu0 0
      %1616 = vmatmul.mubr.bf16.gmra.mrb[0].mxu0 %v1506
      %v1617 = vpop.f32.mrb[0].mxu0
      %v1618 = vadd.f32 0.0, %v1617
      %v1619 = vpop.f32.mrb[0].mxu0
      %v1620 = vpop.f32.mrb[0].mxu0
      %v1621 = vadd.f32 0.0, %v1620
      %v1622 = vpop.f32.mrb[0].mxu0
      %1623 = vdwg.mxu0
      %v1624 = vadd.f32 %v1453, %v1594
      %v1625 = vadd.f32 %v1454, %v1597
      %v1626 = vadd.f32 %v1455, %v1602
      %v1627 = vadd.f32 %v1456, %v1605
      %v1628 = vadd.f32 %v1457, %v1610
      %v1629 = vadd.f32 %v1458, %v1613
      %v1630 = vadd.f32 %v1459, %v1618
      %v1631 = vadd.f32 %v1460, %v1621
      %s1632 = scalar_lea.vmem %s210, 80
      %v1633 = vld [vmem:[%s1632] sm:$0xf]
      %v1634 = vld [vmem:[%s1632 + $0x8] sm:$0xf]
      %v1635 = vld [vmem:[%s1632 + $0x10] sm:$0xf]
      %v1636 = vld [vmem:[%s1632 + $0x18] sm:$0xf]
      %v1637 = vld [vmem:[%s1632 + $0x20] sm:$0xf]
      %v1638 = vld [vmem:[%s1632 + $0x28] sm:$0xf]
      %v1639 = vld [vmem:[%s1632 + $0x30] sm:$0xf]
      %v1640 = vld [vmem:[%s1632 + $0x38] sm:$0xf]
      %s1641 = scalar_lea.vmem %s215, 448
      %v1642 = vld [vmem:[%s1641] sm:$0xf]
      %v1643 = vld [vmem:[%s1641 + $0x4] sm:$0xf]
      %v1644 = vld [vmem:[%s1641 + $0x8] sm:$0xf]
      %v1645 = vld [vmem:[%s1641 + $0xc] sm:$0xf]
      %v1646 = vld [vmem:[%s1641 + $0x10] sm:$0xf]
      %v1647 = vld [vmem:[%s1641 + $0x14] sm:$0xf]
      %v1648 = vld [vmem:[%s1641 + $0x18] sm:$0xf]
      %v1649 = vld [vmem:[%s1641 + $0x1c] sm:$0xf]
      %v1650 = vld [vmem:[%s1641 + $0x20] sm:$0xf]
      %v1651 = vld [vmem:[%s1641 + $0x24] sm:$0xf]
      %v1652 = vld [vmem:[%s1641 + $0x28] sm:$0xf]
      %v1653 = vld [vmem:[%s1641 + $0x2c] sm:$0xf]
      %v1654 = vld [vmem:[%s1641 + $0x30] sm:$0xf]
      %v1655 = vld [vmem:[%s1641 + $0x34] sm:$0xf]
      %v1656 = vld [vmem:[%s1641 + $0x38] sm:$0xf]
      %v1657 = vld [vmem:[%s1641 + $0x3c] sm:$0xf]
      %v1666 = vunpack.c.l.b16 %v1633
      %v1667 = vunpack.c.l.b16 %v1634
      %v1668 = vunpack.c.l.b16 %v1635
      %v1669 = vunpack.c.l.b16 %v1636
      %v1670 = vunpack.c.l.b16 %v1637
      %v1671 = vunpack.c.l.b16 %v1638
      %v1672 = vunpack.c.l.b16 %v1639
      %v1673 = vunpack.c.l.b16 %v1640
      %v1674 = vpack.c.b16 %v1667, %v1666
      %v1675 = vpack.c.b16 %v1669, %v1668
      %v1676 = vpack.c.b16 %v1671, %v1670
      %v1677 = vpack.c.b16 %v1673, %v1672
      %v1698 = vunpack.c.l.b16 %v1642
      %v1699 = vunpack.c.l.b16 %v1643
      %v1700 = vunpack.c.l.b16 %v1644
      %v1701 = vunpack.c.l.b16 %v1645
      %v1702 = vunpack.c.l.b16 %v1646
      %v1703 = vunpack.c.l.b16 %v1647
      %v1704 = vunpack.c.l.b16 %v1648
      %v1705 = vunpack.c.l.b16 %v1649
      %v1706 = vunpack.c.l.b16 %v1650
      %v1707 = vunpack.c.l.b16 %v1651
      %v1708 = vunpack.c.l.b16 %v1652
      %v1709 = vunpack.c.l.b16 %v1653
      %v1710 = vunpack.c.l.b16 %v1654
      %v1711 = vunpack.c.l.b16 %v1655
      %v1712 = vunpack.c.l.b16 %v1656
      %v1713 = vunpack.c.l.b16 %v1657
      %v1714 = vpack.c.b16 %v1699, %v1698
      %v1715 = vpack.c.b16 %v1701, %v1700
      %v1716 = vpack.c.b16 %v1703, %v1702
      %v1717 = vpack.c.b16 %v1705, %v1704
      %v1718 = vpack.c.b16 %v1707, %v1706
      %v1719 = vpack.c.b16 %v1709, %v1708
      %v1720 = vpack.c.b16 %v1711, %v1710
      %v1721 = vpack.c.b16 %v1713, %v1712
      %1730 = vmatprep.subr.bf16.mxu0 0
      %1731 = vmatpush1.bf16.msra.mxu0 %v1714
      %1732 = vmatprep.subr.bf16.mxu0 0
      %1733 = vmatpush1.bf16.msra.mxu0 %v1715
      %1734 = vmatprep.subr.bf16.mxu0 0
      %1735 = vmatpush1.bf16.msra.mxu0 %v1716
      %1736 = vmatprep.subr.bf16.mxu0 0
      %1737 = vmatpush1.bf16.msra.mxu0 %v1717
      %1738 = vmatprep.subr.bf16.mxu0 0
      %1739 = vmatpush1.bf16.msra.mxu0 %v1718
      %1740 = vmatprep.subr.bf16.mxu0 0
      %1741 = vmatpush1.bf16.msra.mxu0 %v1719
      %1742 = vmatprep.subr.bf16.mxu0 0
      %1743 = vmatpush1.bf16.msra.mxu0 %v1720
      %1744 = vmatprep.subr.bf16.mxu0 0
      %1745 = vmatpush1.bf16.msra.mxu0 %v1721
      %1746 = vmatprep.subr.bf16.mxu0 0
      %1747 = vmatpush1.bf16.msra.mxu0 0
      %1748 = vmatprep.subr.bf16.mxu0 0
      %1749 = vmatpush1.bf16.msra.mxu0 0
      %1750 = vmatprep.subr.bf16.mxu0 0
      %1751 = vmatpush1.bf16.msra.mxu0 0
      %1752 = vmatprep.subr.bf16.mxu0 0
      %1753 = vmatpush1.bf16.msra.mxu0 0
      %1754 = vmatprep.subr.bf16.mxu0 0
      %1755 = vmatpush1.bf16.msra.mxu0 0
      %1756 = vmatprep.subr.bf16.mxu0 0
      %1757 = vmatpush1.bf16.msra.mxu0 0
      %1758 = vmatprep.subr.bf16.mxu0 0
      %1759 = vmatpush1.bf16.msra.mxu0 0
      %1760 = vmatprep.subr.bf16.mxu0 0
      %1761 = vmatpush1.bf16.msra.mxu0 0
      %1762 = vmatprep.mubr.bf16.mxu0 0
      %1763 = vmatmul.mubr.bf16.gmra.mrb[0].mxu0 %v1674
      %v1764 = vpop.f32.mrb[0].mxu0
      %v1765 = vadd.f32 0.0, %v1764
      %v1766 = vpop.f32.mrb[0].mxu0
      %v1767 = vpop.f32.mrb[0].mxu0
      %v1768 = vadd.f32 0.0, %v1767
      %v1769 = vpop.f32.mrb[0].mxu0
      %1770 = vmatprep.mubr.bf16.mxu0 0
      %1771 = vmatmul.mubr.bf16.gmra.mrb[0].mxu0 %v1675
      %v1772 = vpop.f32.mrb[0].mxu0
      %v1773 = vadd.f32 0.0, %v1772
      %v1774 = vpop.f32.mrb[0].mxu0
      %v1775 = vpop.f32.mrb[0].mxu0
      %v1776 = vadd.f32 0.0, %v1775
      %v1777 = vpop.f32.mrb[0].mxu0
      %1778 = vmatprep.mubr.bf16.mxu0 0
      %1779 = vmatmul.mubr.bf16.gmra.mrb[0].mxu0 %v1676
      %v1780 = vpop.f32.mrb[0].mxu0
      %v1781 = vadd.f32 0.0, %v1780
      %v1782 = vpop.f32.mrb[0].mxu0
      %v1783 = vpop.f32.mrb[0].mxu0
      %v1784 = vadd.f32 0.0, %v1783
      %v1785 = vpop.f32.mrb[0].mxu0
      %1786 = vmatprep.mubr.bf16.mxu0 0
      %1787 = vmatmul.mubr.bf16.gmra.mrb[0].mxu0 %v1677
      %v1788 = vpop.f32.mrb[0].mxu0
      %v1789 = vadd.f32 0.0, %v1788
      %v1790 = vpop.f32.mrb[0].mxu0
      %v1791 = vpop.f32.mrb[0].mxu0
      %v1792 = vadd.f32 0.0, %v1791
      %v1793 = vpop.f32.mrb[0].mxu0
      %1794 = vdwg.mxu0
      %v1795 = vadd.f32 %v1624, %v1765
      %v1796 = vadd.f32 %v1625, %v1768
      %v1797 = vadd.f32 %v1626, %v1773
      %v1798 = vadd.f32 %v1627, %v1776
      %v1799 = vadd.f32 %v1628, %v1781
      %v1800 = vadd.f32 %v1629, %v1784
      %v1801 = vadd.f32 %v1630, %v1789
      %v1802 = vadd.f32 %v1631, %v1792
      %v1803 = vld [vmem:[%s1461] sm:$0xf]
      %v1804 = vld [vmem:[%s1461 + $0x4] sm:$0x1]
      %v1805 = vld [vmem:[%s1461 + $0x8] sm:$0xf]
      %v1806 = vld [vmem:[%s1461 + $0xc] sm:$0x1]
      %v1807 = vld [vmem:[%s1461 + $0x10] sm:$0xf]
      %v1808 = vld [vmem:[%s1461 + $0x14] sm:$0x1]
      %v1809 = vld [vmem:[%s1461 + $0x18] sm:$0xf]
      %v1810 = vld [vmem:[%s1461 + $0x1c] sm:$0x1]
      %v1811 = vld [vmem:[%s1461 + $0x20] sm:$0xf]
      %v1812 = vld [vmem:[%s1461 + $0x24] sm:$0x1]
      %v1813 = vld [vmem:[%s1461 + $0x28] sm:$0xf]
      %v1814 = vld [vmem:[%s1461 + $0x2c] sm:$0x1]
      %v1815 = vld [vmem:[%s1461 + $0x30] sm:$0xf]
      %v1816 = vld [vmem:[%s1461 + $0x34] sm:$0x1]
      %v1817 = vld [vmem:[%s1461 + $0x38] sm:$0xf]
      %v1818 = vld [vmem:[%s1461 + $0x3c] sm:$0x1]
      %v1820 = vshrl.u32 %v1803, 16
      %v1822 = vrot.slane %v1820, 4
      %v1823 = vshll.u32 %v1803, 16
      %v1825 = vrot.slane %v1823, 5
      %v1826 = vor.u32 %v1822, %v1825
      %v1827 = vrot.slane %v1826, 4
      %v1829 = vshll.u32 %v1804, 16
      %v1831 = vrot.slane %v1829, 5
      %v1832 = vsel %vm570, %v1827, %v1831
      %v1834 = vshrl.u32 %v1805, 16
      %v1836 = vrot.slane %v1834, 4
      %v1837 = vshll.u32 %v1805, 16
      %v1839 = vrot.slane %v1837, 5
      %v1840 = vor.u32 %v1836, %v1839
      %v1841 = vrot.slane %v1840, 4
      %v1843 = vshll.u32 %v1806, 16
      %v1845 = vrot.slane %v1843, 5
      %v1846 = vsel %vm570, %v1841, %v1845
      %v1848 = vshrl.u32 %v1807, 16
      %v1850 = vrot.slane %v1848, 4
      %v1851 = vshll.u32 %v1807, 16
      %v1853 = vrot.slane %v1851, 5
      %v1854 = vor.u32 %v1850, %v1853
      %v1855 = vrot.slane %v1854, 4
      %v1857 = vshll.u32 %v1808, 16
      %v1859 = vrot.slane %v1857, 5
      %v1860 = vsel %vm570, %v1855, %v1859
      %v1862 = vshrl.u32 %v1809, 16
      %v1864 = vrot.slane %v1862, 4
      %v1865 = vshll.u32 %v1809, 16
      %v1867 = vrot.slane %v1865, 5
      %v1868 = vor.u32 %v1864, %v1867
      %v1869 = vrot.slane %v1868, 4
      %v1871 = vshll.u32 %v1810, 16
      %v1873 = vrot.slane %v1871, 5
      %v1874 = vsel %vm570, %v1869, %v1873
      %v1876 = vshrl.u32 %v1811, 16
      %v1878 = vrot.slane %v1876, 4
      %v1879 = vshll.u32 %v1811, 16
      %v1881 = vrot.slane %v1879, 5
      %v1882 = vor.u32 %v1878, %v1881
      %v1883 = vrot.slane %v1882, 4
      %v1885 = vshll.u32 %v1812, 16
      %v1887 = vrot.slane %v1885, 5
      %v1888 = vsel %vm570, %v1883, %v1887
      %v1890 = vshrl.u32 %v1813, 16
      %v1892 = vrot.slane %v1890, 4
      %v1893 = vshll.u32 %v1813, 16
      %v1895 = vrot.slane %v1893, 5
      %v1896 = vor.u32 %v1892, %v1895
      %v1897 = vrot.slane %v1896, 4
      %v1899 = vshll.u32 %v1814, 16
      %v1901 = vrot.slane %v1899, 5
      %v1902 = vsel %vm570, %v1897, %v1901
      %v1904 = vshrl.u32 %v1815, 16
      %v1906 = vrot.slane %v1904, 4
      %v1907 = vshll.u32 %v1815, 16
      %v1909 = vrot.slane %v1907, 5
      %v1910 = vor.u32 %v1906, %v1909
      %v1911 = vrot.slane %v1910, 4
      %v1913 = vshll.u32 %v1816, 16
      %v1915 = vrot.slane %v1913, 5
      %v1916 = vsel %vm570, %v1911, %v1915
      %v1918 = vshrl.u32 %v1817, 16
      %v1920 = vrot.slane %v1918, 4
      %v1921 = vshll.u32 %v1817, 16
      %v1923 = vrot.slane %v1921, 5
      %v1924 = vor.u32 %v1920, %v1923
      %v1925 = vrot.slane %v1924, 4
      %v1927 = vshll.u32 %v1818, 16
      %v1929 = vrot.slane %v1927, 5
      %v1930 = vsel %vm570, %v1925, %v1929
      %s1931 = scalar_lea.vmem %s215, 512
      %v1932 = vld [vmem:[%s1931] sm:$0xf]
      %v1933 = vld [vmem:[%s1931 + $0x4] sm:$0xf]
      %v1934 = vld [vmem:[%s1931 + $0x8] sm:$0xf]
      %v1935 = vld [vmem:[%s1931 + $0xc] sm:$0xf]
      %v1936 = vld [vmem:[%s1931 + $0x10] sm:$0xf]
      %v1937 = vld [vmem:[%s1931 + $0x14] sm:$0xf]
      %v1938 = vld [vmem:[%s1931 + $0x18] sm:$0xf]
      %v1939 = vld [vmem:[%s1931 + $0x1c] sm:$0xf]
      %v1940 = vld [vmem:[%s1931 + $0x20] sm:$0xf]
      %v1941 = vld [vmem:[%s1931 + $0x24] sm:$0xf]
      %v1942 = vld [vmem:[%s1931 + $0x28] sm:$0xf]
      %v1943 = vld [vmem:[%s1931 + $0x2c] sm:$0xf]
      %v1944 = vld [vmem:[%s1931 + $0x30] sm:$0xf]
      %v1945 = vld [vmem:[%s1931 + $0x34] sm:$0xf]
      %v1946 = vld [vmem:[%s1931 + $0x38] sm:$0xf]
      %v1947 = vld [vmem:[%s1931 + $0x3c] sm:$0xf]
      %v1948 = vunpack.c.l.b16 %v1832
      %v1949 = vunpack.c.l.b16 %v1846
      %v1950 = vunpack.c.l.b16 %v1860
      %v1951 = vunpack.c.l.b16 %v1874
      %v1952 = vunpack.c.l.b16 %v1888
      %v1953 = vunpack.c.l.b16 %v1902
      %v1954 = vunpack.c.l.b16 %v1916
      %v1955 = vunpack.c.l.b16 %v1930
      %v1956 = vpack.c.b16 %v1949, %v1948
      %v1957 = vpack.c.b16 %v1951, %v1950
      %v1958 = vpack.c.b16 %v1953, %v1952
      %v1959 = vpack.c.b16 %v1955, %v1954
      %v1980 = vunpack.c.l.b16 %v1932
      %v1981 = vunpack.c.l.b16 %v1933
      %v1982 = vunpack.c.l.b16 %v1934
      %v1983 = vunpack.c.l.b16 %v1935
      %v1984 = vunpack.c.l.b16 %v1936
      %v1985 = vunpack.c.l.b16 %v1937
      %v1986 = vunpack.c.l.b16 %v1938
      %v1987 = vunpack.c.l.b16 %v1939
      %v1988 = vunpack.c.l.b16 %v1940
      %v1989 = vunpack.c.l.b16 %v1941
      %v1990 = vunpack.c.l.b16 %v1942
      %v1991 = vunpack.c.l.b16 %v1943
      %v1992 = vunpack.c.l.b16 %v1944
      %v1993 = vunpack.c.l.b16 %v1945
      %v1994 = vunpack.c.l.b16 %v1946
      %v1995 = vunpack.c.l.b16 %v1947
      %v1996 = vpack.c.b16 %v1981, %v1980
      %v1997 = vpack.c.b16 %v1983, %v1982
      %v1998 = vpack.c.b16 %v1985, %v1984
      %v1999 = vpack.c.b16 %v1987, %v1986
      %v2000 = vpack.c.b16 %v1989, %v1988
      %v2001 = vpack.c.b16 %v1991, %v1990
      %v2002 = vpack.c.b16 %v1993, %v1992
      %v2003 = vpack.c.b16 %v1995, %v1994
      %2012 = vmatprep.subr.bf16.mxu0 0
      %2013 = vmatpush1.bf16.msra.mxu0 %v1996
      %2014 = vmatprep.subr.bf16.mxu0 0
      %2015 = vmatpush1.bf16.msra.mxu0 %v1997
      %2016 = vmatprep.subr.bf16.mxu0 0
      %2017 = vmatpush1.bf16.msra.mxu0 %v1998
      %2018 = vmatprep.subr.bf16.mxu0 0
      %2019 = vmatpush1.bf16.msra.mxu0 %v1999
      %2020 = vmatprep.subr.bf16.mxu0 0
      %2021 = vmatpush1.bf16.msra.mxu0 %v2000
      %2022 = vmatprep.subr.bf16.mxu0 0
      %2023 = vmatpush1.bf16.msra.mxu0 %v2001
      %2024 = vmatprep.subr.bf16.mxu0 0
      %2025 = vmatpush1.bf16.msra.mxu0 %v2002
      %2026 = vmatprep.subr.bf16.mxu0 0
      %2027 = vmatpush1.bf16.msra.mxu0 %v2003
      %2028 = vmatprep.subr.bf16.mxu0 0
      %2029 = vmatpush1.bf16.msra.mxu0 0
      %2030 = vmatprep.subr.bf16.mxu0 0
      %2031 = vmatpush1.bf16.msra.mxu0 0
      %2032 = vmatprep.subr.bf16.mxu0 0
      %2033 = vmatpush1.bf16.msra.mxu0 0
      %2034 = vmatprep.subr.bf16.mxu0 0
      %2035 = vmatpush1.bf16.msra.mxu0 0
      %2036 = vmatprep.subr.bf16.mxu0 0
      %2037 = vmatpush1.bf16.msra.mxu0 0
      %2038 = vmatprep.subr.bf16.mxu0 0
      %2039 = vmatpush1.bf16.msra.mxu0 0
      %2040 = vmatprep.subr.bf16.mxu0 0
      %2041 = vmatpush1.bf16.msra.mxu0 0
      %2042 = vmatprep.subr.bf16.mxu0 0
      %2043 = vmatpush1.bf16.msra.mxu0 0
      %2044 = vmatprep.mubr.bf16.mxu0 0
      %2045 = vmatmul.mubr.bf16.gmra.mrb[0].mxu0 %v1956
      %v2046 = vpop.f32.mrb[0].mxu0
      %v2047 = vadd.f32 0.0, %v2046
      %v2048 = vpop.f32.mrb[0].mxu0
      %v2049 = vpop.f32.mrb[0].mxu0
      %v2050 = vadd.f32 0.0, %v2049
      %v2051 = vpop.f32.mrb[0].mxu0
      %2052 = vmatprep.mubr.bf16.mxu0 0
      %2053 = vmatmul.mubr.bf16.gmra.mrb[0].mxu0 %v1957
      %v2054 = vpop.f32.mrb[0].mxu0
      %v2055 = vadd.f32 0.0, %v2054
      %v2056 = vpop.f32.mrb[0].mxu0
      %v2057 = vpop.f32.mrb[0].mxu0
      %v2058 = vadd.f32 0.0, %v2057
      %v2059 = vpop.f32.mrb[0].mxu0
      %2060 = vmatprep.mubr.bf16.mxu0 0
      %2061 = vmatmul.mubr.bf16.gmra.mrb[0].mxu0 %v1958
      %v2062 = vpop.f32.mrb[0].mxu0
      %v2063 = vadd.f32 0.0, %v2062
      %v2064 = vpop.f32.mrb[0].mxu0
      %v2065 = vpop.f32.mrb[0].mxu0
      %v2066 = vadd.f32 0.0, %v2065
      %v2067 = vpop.f32.mrb[0].mxu0
      %2068 = vmatprep.mubr.bf16.mxu0 0
      %2069 = vmatmul.mubr.bf16.gmra.mrb[0].mxu0 %v1959
      %v2070 = vpop.f32.mrb[0].mxu0
      %v2071 = vadd.f32 0.0, %v2070
      %v2072 = vpop.f32.mrb[0].mxu0
      %v2073 = vpop.f32.mrb[0].mxu0
      %v2074 = vadd.f32 0.0, %v2073
      %v2075 = vpop.f32.mrb[0].mxu0
      %2076 = vdwg.mxu0
      %v2077 = vadd.f32 %v1795, %v2047
      %v2078 = vadd.f32 %v1796, %v2050
      %v2079 = vadd.f32 %v1797, %v2055
      %v2080 = vadd.f32 %v1798, %v2058
      %v2081 = vadd.f32 %v1799, %v2063
      %v2082 = vadd.f32 %v1800, %v2066
      %v2083 = vadd.f32 %v1801, %v2071
      %v2084 = vadd.f32 %v1802, %v2074
      %v2085 = vld [vmem:[%s218] sm:$0x1]
      %v2087 = vlaneseq
      %v2088 = vshrl.u32 %v2087, 7
      %v2089 = vsub.s32 0, %v2088
      %v2090 = vrot.slane %v2085, %v2089
      %v2092 = vadd.f32 %v2077, %v2090
      %v2093 = vadd.f32 %v2078, %v2090
      %v2094 = vadd.f32 %v2079, %v2090
      %v2095 = vadd.f32 %v2080, %v2090
      %v2096 = vadd.f32 %v2081, %v2090
      %v2097 = vadd.f32 %v2082, %v2090
      %v2098 = vadd.f32 %v2083, %v2090
      %v2099 = vadd.f32 %v2084, %v2090
      %v2100 = vmax.f32 %v2092, 0.0
      %v2101 = vmax.f32 %v2093, 0.0
      %v2102 = vmax.f32 %v2094, 0.0
      %v2103 = vmax.f32 %v2095, 0.0
      %v2104 = vmax.f32 %v2096, 0.0
      %v2105 = vmax.f32 %v2097, 0.0
      %v2106 = vmax.f32 %v2098, 0.0
      %v2107 = vmax.f32 %v2099, 0.0
      %v2108 = vpack.c.bf16 %v2100, %v2100
      %v2109 = vpack.c.bf16 %v2101, %v2101
      %v2110 = vpack.c.bf16 %v2102, %v2102
      %v2111 = vpack.c.bf16 %v2103, %v2103
      %v2112 = vpack.c.bf16 %v2104, %v2104
      %v2113 = vpack.c.bf16 %v2105, %v2105
      %v2114 = vpack.c.bf16 %v2106, %v2106
      %v2115 = vpack.c.bf16 %v2107, %v2107
      %2116 = vst [vmem:[%s226] sm:$0xf] %v2108
      %2117 = vst [vmem:[%s226 + $0x4] sm:$0xf] %v2109
      %2118 = vst [vmem:[%s226 + $0x8] sm:$0xf] %v2110
      %2119 = vst [vmem:[%s226 + $0xc] sm:$0xf] %v2111
      %2120 = vst [vmem:[%s226 + $0x10] sm:$0xf] %v2112
      %2121 = vst [vmem:[%s226 + $0x14] sm:$0xf] %v2113
      %2122 = vst [vmem:[%s226 + $0x18] sm:$0xf] %v2114
      %2123 = vst [vmem:[%s226 + $0x1c] sm:$0xf] %v2115
      %p2124 = scmp.lt.s32.totalorder %s19, 1
      %s2125 = scalar_select %p2124, %s19, 1
      %p2126 = scmp.lt.s32.totalorder %s18, 0
      %s2127 = scalar_select %p2126, %s18, 0
      %s2128 = smul.addr %s2125, 8
      %s2129 = sadd.s32 %s2127, %s2128
      %s2130 = smul.addr %s2129, 4
      %s2131 = scalar_lea.vmem %s3, %s2130
      // Predicated region
      $region33: #{basic_block_forward.2} parent=31 // pred_check
        %p2132 = pneg %p124
      $region34: #{basic_block_forward.2} parent=31 // pred_check_branch
        %2134 = sbr.rel (%p2132) target = $region36
      $region35: #{basic_block_forward.2} parent=31 // pred_region
        _
      $region36: #{basic_block_forward.2} parent=31 // pred_fallthru
        _
    $region32: #{basic_block_forward.2} parent=5 // pred_fallthru
      _
    %p2135 = scmp.le.s32.totalorder 2, %s9
    // Predicated region
    $region37: #{basic_block_forward.2} parent=5 // pred_check
      %p2136 = pneg %p2135
    $region38: #{basic_block_forward.2} parent=5 // pred_check_branch
      %2138 = sbr.rel (%p2136) target = $region40
    $region39: #{basic_block_forward.2} parent=5 // pred_region
      %s2139 = ssub.s32 %s9, 2
      // Predicated region
      $region41: #{basic_block_forward.2} parent=39 // pred_check
        %p2140 = pneg %p130
      $region42: #{basic_block_forward.2} parent=39 // pred_check_branch
        %2142 = sbr.rel (%p2140) target = $region44
      $region43: #{basic_block_forward.2} parent=39 // pred_region
        %p2143 = scmp.lt.s32.totalorder %s21, 1
        %s2144 = scalar_select %p2143, %s21, 1
        %p2145 = scmp.lt.s32.totalorder %s20, 0
        %s2146 = scalar_select %p2145, %s20, 0
        %s2147 = smul.addr %s2144, 8
        %s2148 = sadd.s32 %s2146, %s2147
        %s2149 = smul.addr %s2148, 4
        %s2150 = scalar_lea.vmem %s3, %s2149
      $region44: #{basic_block_forward.2} parent=39 // pred_fallthru
        _
    $region40: #{basic_block_forward.2} parent=5 // pred_fallthru
      _
  $region6: #{basic_block_forward.2} parent=0 // loop_footer
    %s13 = sadd.s32 1, %s9
  $region7: #{basic_block_forward.2} parent=0 // loop_footer_branch
    %8 = sbr.rel target = $region3
  $region8: #{basic_block_forward.2} parent=0 // loop_exit
    _

</llo_original>
